<compile_context>
chip_gen: v6e
topology: v6e:2x2x1
jax: 0.10.0
libtpu: 0.0.40
codegen_flags: <defaults>
</compile_context>

<pallas_src>
import functools
import math

import jax
import jax.numpy as jnp
from jax import lax
from jax.experimental import pallas as pl
from jax.experimental.pallas import tpu as pltpu

EPS = 1e-5


def _bn_act(x, gamma, beta, relu):
    """Training-mode BatchNorm1d fused to a single scale/shift, optional ReLU.

    One-pass statistics: s1 = sum(x), s2 = sum(x*x) -> mu, biased var.  x is f32
    (N, F); gamma/beta are f32 (1, F) rows or None (affine=False).
    """
    inv_n = 1.0 / x.shape[0]
    s1 = jnp.sum(x, axis=0, keepdims=True)
    s2 = jnp.sum(x * x, axis=0, keepdims=True)
    mu = s1 * inv_n
    var = jnp.maximum(s2 * inv_n - mu * mu, 0.0)      # clamp guards cancellation
    scale = lax.rsqrt(var + EPS)                      # EUP rsqrt
    if gamma is not None:
        scale = scale * gamma
    shift = -mu * scale
    if beta is not None:
        shift = shift + beta
    y = x * scale + shift                             # 1 mul + 1 add / element
    return jnp.maximum(y, 0.0) if relu else y


def _simsiam_kernel(
    x_ref,                 # (N, tk) bf16 — pooled features of this view, K-chunk
    ws_ref,                # (tk, prev) bf16 — stem weight K-chunk (streamed)
    w1_ref, w2_ref,        # (prev, prev) bf16 — projector blocks 1/2 (resident)
    w3_ref,                # (prev, dim)  bf16 — projector final Linear (resident)
    w4_ref,                # (dim, pred)  bf16 — predictor block 1 (resident)
    w5_ref,                # (pred, dim)  bf16 — predictor final Linear (resident)
    rows_ref,              # (1, P) f32 — packed biases / BN gamma,beta (resident)
    p_ref, z_ref,          # outputs: (N, dim) f32 each
    acc_ref,               # scratch: (N, prev) f32 — stem accumulator over K
    *, offs,
):
    k = pl.program_id(1)

    @pl.when(k == 0)
    def _():
        acc_ref[...] = jnp.zeros_like(acc_ref)

    # Stem matmul, K-tiled, accumulated in f32 on the MXU.
    acc_ref[...] += jnp.dot(x_ref[...], ws_ref[...],
                            preferred_element_type=jnp.float32)

    @pl.when(k == pl.num_programs(1) - 1)
    def _():
        bf16 = jnp.bfloat16
        prev = w1_ref.shape[1]
        dim = w3_ref.shape[1]
        pred = w4_ref.shape[1]

        def row(name, n):
            o = offs[name]
            return rows_ref[:, o:o + n]               # static, lane-aligned slice

        f = acc_ref[...] + row("bs", prev)

        # ---- projector (encoder.fc) ----
        h = jnp.dot(f.astype(bf16), w1_ref[...], preferred_element_type=jnp.float32)
        h = _bn_act(h, row("g1", prev), row("b1", prev), relu=True)
        h = jnp.dot(h.astype(bf16), w2_ref[...], preferred_element_type=jnp.float32)
        h = _bn_act(h, row("g2", prev), row("b2", prev), relu=True)
        h = jnp.dot(h.astype(bf16), w3_ref[...], preferred_element_type=jnp.float32) + row("b3", dim)
        z = _bn_act(h, None, None, relu=False)        # BN1d(dim, affine=False)

        # ---- predictor ----
        q = jnp.dot(z.astype(bf16), w4_ref[...], preferred_element_type=jnp.float32)
        q = _bn_act(q, row("g4", pred), row("b4", pred), relu=True)
        p = jnp.dot(q.astype(bf16), w5_ref[...], preferred_element_type=jnp.float32) + row("b5", dim)

        p_ref[...] = p.astype(p_ref.dtype)
        z_ref[...] = z.astype(z_ref.dtype)


def prepare_params(params):
    """One-time weight preprocessing, hoisted out of the per-step forward.

    Casts matmul weights to bf16 and packs every (1, features) bias / BN row
    into ONE f32 array (single DMA, static 128-aligned offsets).  Call once and
    reuse the result for every forward.
    """
    bf16 = jnp.bfloat16
    prep = {k: params[k].astype(bf16) for k in ("ws", "w1", "w2", "w3", "w4", "w5")}
    row_list = [
        ("bs", params["bs"]),
        ("g1", params["g1"]), ("b1", params["b1"]),
        ("g2", params["g2"]), ("b2", params["b2"]),
        ("b3", params["b3"]),
        ("g4", params["g4"]), ("b4", params["b4"]),
        ("b5", params["b5"]),
    ]
    offs, parts, off = {}, [], 0
    for name, arr in row_list:
        offs[name] = off
        parts.append(arr.astype(jnp.float32))
        off += arr.shape[1]
    prep["rows"] = jnp.concatenate(parts, axis=1)     # (1, P)
    return prep, offs


def _build_simsiam_call(prep, offs, V, N, C, tk, single_buffer_weights):
    prev = prep["w1"].shape[0]
    dim = prep["w3"].shape[1]
    pred = prep["w4"].shape[1]
    kt = C // tk

    def resident(a):
        # Constant block index across the whole grid -> parameter stays in VMEM.
        if single_buffer_weights:
            return pl.BlockSpec(a.shape, lambda v, k: (0,) * a.ndim,
                                pipeline_mode=pl.Buffered(1))
        return pl.BlockSpec(a.shape, lambda v, k: (0,) * a.ndim)

    in_specs = [
        pl.BlockSpec((None, N, tk), lambda v, k: (v, 0, k)),   # pooled x, K-streamed
        pl.BlockSpec((tk, prev), lambda v, k: (k, 0)),         # stem weight, K-streamed
        resident(prep["w1"]), resident(prep["w2"]), resident(prep["w3"]),
        resident(prep["w4"]), resident(prep["w5"]), resident(prep["rows"]),
    ]
    out_specs = (
        pl.BlockSpec((None, N, dim), lambda v, k: (v, 0, 0)),
        pl.BlockSpec((None, N, dim), lambda v, k: (v, 0, 0)),
    )
    scratch_shapes = [pltpu.VMEM((N, prev), jnp.float32)]

    weight_bytes = (prep["ws"].nbytes + prep["w1"].nbytes + prep["w2"].nbytes
                    + prep["w3"].nbytes + prep["w4"].nbytes + prep["w5"].nbytes
                    + prep["rows"].nbytes)
    stream_bytes = N * tk * 2 + tk * prev * 2                  # pipelined per-K-step blocks
    out_acc_bytes = 2 * N * dim * 4 + N * prev * 4

    # Generation-aware VMEM budget: ~3/4 of physical (96 MiB on v5e/v6e, 48 MiB on v7x).
    try:
        vmem_cap = int(pltpu.get_tpu_info().vmem_capacity_bytes)
    except Exception:
        vmem_cap = 64 << 20
    wmult = 1 if single_buffer_weights else 2
    want = wmult * weight_bytes + 2 * stream_bytes + 2 * out_acc_bytes + (4 << 20)
    vmem_limit = int(min(max(want, 16 << 20), (3 * vmem_cap) // 4))

    matmul_flops = 2 * N * (C * prev + 2 * prev * prev + prev * dim
                            + dim * pred + pred * dim)
    cost = pl.CostEstimate(
        flops=int(V * matmul_flops),
        transcendentals=int(V * (2 * prev + dim + pred)),
        bytes_accessed=int(V * N * C * 2 + weight_bytes + 2 * V * N * dim * 4),
    )

    return pl.pallas_call(
        functools.partial(_simsiam_kernel, offs=offs),
        out_shape=(
            jax.ShapeDtypeStruct((V, N, dim), jnp.float32),
            jax.ShapeDtypeStruct((V, N, dim), jnp.float32),
        ),
        grid_spec=pltpu.PrefetchScalarGridSpec(
            num_scalar_prefetch=0,
            grid=(V, kt),                                      # views x stem-K tiles
            in_specs=in_specs,
            out_specs=out_specs,
            scratch_shapes=scratch_shapes,
        ),
        compiler_params=pltpu.CompilerParams(
            # View axis "parallel": 2-way megacore split on v7x (no-op on v5e/v6e).
            # TODO(synk): A/B against "arbitrary" when HBM-bound on duplicated weight reads.
            dimension_semantics=("parallel", "arbitrary"),
            vmem_limit_bytes=vmem_limit,
        ),
        cost_estimate=cost,
    )


def simsiam_views(prep, offs, x_views):
    """Run encoder + predictor on V stacked views in one fused pallas_call.

    x_views: (V, N, C, H, W).  Returns (p, z), each (V, N, dim) f32.
    """
    V, N, C, H, W = x_views.shape

    # Global-average-pool in f32 BEFORE the stem matmul (do NOT fold GAP into
    # the weight — that multiplied weight / activation traffic by H*W).
    xp = jnp.mean(x_views.astype(jnp.float32), axis=(3, 4)).astype(jnp.bfloat16)  # (V, N, C)

    tk = 512 if C % 512 == 0 else C                    # stem K-tile (1 tile at demo scale)

    args = (xp, prep["ws"], prep["w1"], prep["w2"], prep["w3"],
            prep["w4"], prep["w5"], prep["rows"])
    try:
        p, z = _build_simsiam_call(prep, offs, V, N, C, tk,
                                   single_buffer_weights=True)(*args)
    except Exception:
        # Graceful fallback if this Pallas build rejects pipeline_mode=pl.Buffered(1).
        p, z = _build_simsiam_call(prep, offs, V, N, C, tk,
                                   single_buffer_weights=False)(*args)
    return p, z


def simsiam_forward(prep, offs, x1, x2=None, sampling=False):
    """Mirrors SimSiam.forward (forward pass only)."""
    if sampling:
        p, z = simsiam_views(prep, offs, x1[None])     # forward_1view
        return p[0], z[0]
    x_views = jnp.stack([x1, x2], axis=0)              # forward_2views, one fused call
    p, z = simsiam_views(prep, offs, x_views)
    return p[0], p[1], lax.stop_gradient(z[0]), lax.stop_gradient(z[1])


def init_params(key, in_channels, prev_dim=128, dim=128, pred_dim=128):
    """Deterministic PyTorch-style (Kaiming-uniform) init.

    Linear weights are stored pre-transposed as (fan_in, fan_out) so the kernel
    computes y = x @ W; biases / BN params are (1, features) rows.  All feature
    dims are multiples of 128 (lane-dense); real SimSiam uses 2048 / 2048 / 512.
    """
    ks = jax.random.split(key, 8)

    def lin_w(k, fan_in, fan_out):
        bound = 1.0 / math.sqrt(fan_in)
        return jax.random.uniform(k, (fan_in, fan_out), jnp.float32, -bound, bound)

    def lin_b(k, fan_in, fan_out):
        bound = 1.0 / math.sqrt(fan_in)
        return jax.random.uniform(k, (1, fan_out), jnp.float32, -bound, bound)

    ones = lambda n: jnp.ones((1, n), jnp.float32)
    zeros = lambda n: jnp.zeros((1, n), jnp.float32)

    return {
        # backbone stand-in stem (GAP happens outside, in f32)
        "ws": lin_w(ks[0], in_channels, prev_dim),
        "bs": lin_b(ks[1], in_channels, prev_dim),
        # projector block 1 (Linear no-bias + BN affine)
        "w1": lin_w(ks[2], prev_dim, prev_dim), "g1": ones(prev_dim), "b1": zeros(prev_dim),
        # projector block 2
        "w2": lin_w(ks[3], prev_dim, prev_dim), "g2": ones(prev_dim), "b2": zeros(prev_dim),
        # projector final Linear(prev_dim, dim) with (frozen) bias; final BN has no params
        "w3": lin_w(ks[4], prev_dim, dim), "b3": lin_b(ks[5], prev_dim, dim),
        # predictor block 1 (Linear no-bias + BN affine)
        "w4": lin_w(ks[6], dim, pred_dim), "g4": ones(pred_dim), "b4": zeros(pred_dim),
        # predictor final Linear(pred_dim, dim) with bias
        "w5": lin_w(ks[7], pred_dim, dim), "b5": zeros(dim),
    }


if __name__ == "__main__":
    key = jax.random.PRNGKey(0)
    k_x1, k_x2, k_p = jax.random.split(key, 3)

    # Small, module-consistent demo shapes: batch=8, channels=4, spatial=16x16.
    # prev_dim=dim=pred_dim=128 stand in for 2048/2048/512.  N=8 keeps the demo
    # tiny; at real scale size N >= 256 (MXU row width on v6e/v7x) — BN needs the
    # whole per-view batch resident, so batch size is the M-utilization lever.
    N, C, H, W = 8, 4, 16, 16
    prev_dim, dim, pred_dim = 128, 128, 128

    x1 = jax.random.normal(k_x1, (N, C, H, W), jnp.float32)
    x2 = jax.random.normal(k_x2, (N, C, H, W), jnp.float32)
    params = init_params(k_p, C, prev_dim=prev_dim, dim=dim, pred_dim=pred_dim)
    prep, offs = prepare_params(params)        # hoisted: once per training run

    p1, p2, z1, z2 = simsiam_forward(prep, offs, x1, x2)
    jax.block_until_ready((p1, p2, z1, z2))

    assert p1.shape == (N, dim) and p2.shape == (N, dim)
    assert z1.shape == (N, dim) and z2.shape == (N, dim)
    assert bool(jnp.all(jnp.isfinite(p1))) and bool(jnp.all(jnp.isfinite(z1)))
    assert bool(jnp.all(jnp.isfinite(p2))) and bool(jnp.all(jnp.isfinite(z2)))
    print("KERNEL_OK")
</pallas_src>

<mosaic_0001>
module attributes {stable_mosaic.version = 11 : i64} {
  func.func @_simsiam_kernel(%arg0: i32, %arg1: i32, %arg2: memref<1x8x4xbf16, #tpu.memory_space<vmem>>, %arg3: memref<4x128xbf16, #tpu.memory_space<vmem>>, %arg4: memref<128x128xbf16, #tpu.memory_space<vmem>>, %arg5: memref<128x128xbf16, #tpu.memory_space<vmem>>, %arg6: memref<128x128xbf16, #tpu.memory_space<vmem>>, %arg7: memref<128x128xbf16, #tpu.memory_space<vmem>>, %arg8: memref<128x128xbf16, #tpu.memory_space<vmem>>, %arg9: memref<1x1152xf32, #tpu.memory_space<vmem>>, %arg10: memref<1x8x128xf32, #tpu.memory_space<vmem>>, %arg11: memref<1x8x128xf32, #tpu.memory_space<vmem>>, %arg12: memref<8x128xf32, #tpu.memory_space<vmem>>) attributes {dimension_semantics = [#tpu.dimension_semantics<parallel>, #tpu.dimension_semantics<arbitrary>], iteration_bounds = array<i64: 2, 1>, scalar_prefetch = 0 : i64, scratch_operands = 1 : i64, tpu.core_type = #tpu.core_type<tc>, window_params = [{transform_indices = @transform_0, window_bounds = array<i64: 1, 8, 4>}, {transform_indices = @transform_1, window_bounds = array<i64: 4, 128>}, {pipeline_mode = #tpu.pipeline_mode<synchronous>, transform_indices = @transform_2, window_bounds = array<i64: 128, 128>}, {pipeline_mode = #tpu.pipeline_mode<synchronous>, transform_indices = @transform_3, window_bounds = array<i64: 128, 128>}, {pipeline_mode = #tpu.pipeline_mode<synchronous>, transform_indices = @transform_4, window_bounds = array<i64: 128, 128>}, {pipeline_mode = #tpu.pipeline_mode<synchronous>, transform_indices = @transform_5, window_bounds = array<i64: 128, 128>}, {pipeline_mode = #tpu.pipeline_mode<synchronous>, transform_indices = @transform_6, window_bounds = array<i64: 128, 128>}, {pipeline_mode = #tpu.pipeline_mode<synchronous>, transform_indices = @transform_7, window_bounds = array<i64: 1, 1152>}, {transform_indices = @transform_8, window_bounds = array<i64: 1, 8, 128>}, {transform_indices = @transform_9, window_bounds = array<i64: 1, 8, 128>}]} {
    %c0_i32 = arith.constant 0 : i32
    %0 = arith.cmpi eq, %arg1, %c0_i32 : i32
    %1 = arith.extui %0 : i1 to i32
    %c0_i32_0 = arith.constant 0 : i32
    %2 = arith.cmpi ne, %1, %c0_i32_0 : i32
    scf.if %2 {
      %cst_11 = arith.constant 0.000000e+00 : f32
      %13 = vector.broadcast %cst_11 : f32 to vector<8x128xf32>
      %c0_12 = arith.constant 0 : index
      %c0_13 = arith.constant 0 : index
      %14 = vector.load %arg12[%c0_12, %c0_13] : memref<8x128xf32, #tpu.memory_space<vmem>>, vector<8x128xf32>
      tpu.vector_store %arg12[%c0_12, %c0_13], %13 {strides = array<i32>} : memref<8x128xf32, #tpu.memory_space<vmem>>, vector<8x128xf32>,
    } else {
    }
    %c0 = arith.constant 0 : index
    %c0_1 = arith.constant 0 : index
    %3 = vector.load %arg12[%c0, %c0_1] : memref<8x128xf32, #tpu.memory_space<vmem>>, vector<8x128xf32>
    %c0_2 = arith.constant 0 : index
    %c0_3 = arith.constant 0 : index
    %c0_4 = arith.constant 0 : index
    %4 = vector.load %arg2[%c0_2, %c0_3, %c0_4] : memref<1x8x4xbf16, #tpu.memory_space<vmem>>, vector<1x8x4xbf16>
    %5 = vector.shape_cast %4 : vector<1x8x4xbf16> to vector<8x4xbf16>
    %c0_5 = arith.constant 0 : index
    %c0_6 = arith.constant 0 : index
    %6 = vector.load %arg3[%c0_5, %c0_6] : memref<4x128xbf16, #tpu.memory_space<vmem>>, vector<4x128xbf16>
    %cst = arith.constant dense<0.000000e+00> : vector<8x128xf32>
    %7 = tpu.matmul %5, %6, %cst {dimension_numbers = #tpu.dot_dimension_numbers<[1], [0], [0], [1], [0, 0, 1, 1], [], []>} : vector<8x4xbf16>, vector<4x128xbf16>, vector<8x128xf32> -> vector<8x128xf32>
    %8 = arith.addf %3, %7 : vector<8x128xf32>
    %c0_7 = arith.constant 0 : index
    %c0_8 = arith.constant 0 : index
    %9 = vector.load %arg12[%c0_7, %c0_8] : memref<8x128xf32, #tpu.memory_space<vmem>>, vector<8x128xf32>
    tpu.vector_store %arg12[%c0_7, %c0_8], %8 {strides = array<i32>} : memref<8x128xf32, #tpu.memory_space<vmem>>, vector<8x128xf32>,
    %c0_i32_9 = arith.constant 0 : i32
    %10 = arith.cmpi eq, %arg1, %c0_i32_9 : i32
    %11 = arith.extui %10 : i1 to i32
    %c0_i32_10 = arith.constant 0 : i32
    %12 = arith.cmpi ne, %11, %c0_i32_10 : i32
    scf.if %12 {
      %c0_11 = arith.constant 0 : index
      %c0_12 = arith.constant 0 : index
      %13 = vector.load %arg12[%c0_11, %c0_12] : memref<8x128xf32, #tpu.memory_space<vmem>>, vector<8x128xf32>
      %c0_13 = arith.constant 0 : index
      %c0_14 = arith.constant 0 : index
      %14 = vector.load %arg9[%c0_13, %c0_14] : memref<1x1152xf32, #tpu.memory_space<vmem>>, vector<1x128xf32>
      %15 = vector.broadcast %14 : vector<1x128xf32> to vector<8x128xf32>
      %16 = arith.addf %13, %15 : vector<8x128xf32>
      %17 = arith.truncf %16 : vector<8x128xf32> to vector<8x128xbf16>
      %c0_15 = arith.constant 0 : index
      %c0_16 = arith.constant 0 : index
      %18 = vector.load %arg4[%c0_15, %c0_16] : memref<128x128xbf16, #tpu.memory_space<vmem>>, vector<128x128xbf16>
      %cst_17 = arith.constant dense<0.000000e+00> : vector<8x128xf32>
      %19 = tpu.matmul %17, %18, %cst_17 {dimension_numbers = #tpu.dot_dimension_numbers<[1], [0], [0], [1], [0, 0, 1, 1], [], []>} : vector<8x128xbf16>, vector<128x128xbf16>, vector<8x128xf32> -> vector<8x128xf32>
      %c0_18 = arith.constant 0 : index
      %c128 = arith.constant 128 : index
      %20 = vector.load %arg9[%c0_18, %c128] : memref<1x1152xf32, #tpu.memory_space<vmem>>, vector<1x128xf32>
      %c0_19 = arith.constant 0 : index
      %c256 = arith.constant 256 : index
      %21 = vector.load %arg9[%c0_19, %c256] : memref<1x1152xf32, #tpu.memory_space<vmem>>, vector<1x128xf32>
      %cst_20 = arith.constant dense<0.000000e+00> : vector<128xf32>
      %22 = vector.multi_reduction <add>, %19, %cst_20 [0] : vector<8x128xf32> to vector<128xf32>
      %23 = vector.shape_cast %22 : vector<128xf32> to vector<1x128xf32>
      %24 = arith.mulf %19, %19 : vector<8x128xf32>
      %cst_21 = arith.constant dense<0.000000e+00> : vector<128xf32>
      %25 = vector.multi_reduction <add>, %24, %cst_21 [0] : vector<8x128xf32> to vector<128xf32>
      %26 = vector.shape_cast %25 : vector<128xf32> to vector<1x128xf32>
      %cst_22 = arith.constant 1.250000e-01 : f32
      %27 = vector.broadcast %cst_22 : f32 to vector<1x128xf32>
      %28 = arith.mulf %23, %27 : vector<1x128xf32>
      %cst_23 = arith.constant 1.250000e-01 : f32
      %29 = vector.broadcast %cst_23 : f32 to vector<1x128xf32>
      %30 = arith.mulf %26, %29 : vector<1x128xf32>
      %31 = arith.mulf %28, %28 : vector<1x128xf32>
      %32 = arith.subf %30, %31 : vector<1x128xf32>
      %cst_24 = arith.constant 0.000000e+00 : f32
      %33 = vector.broadcast %cst_24 : f32 to vector<1x128xf32>
      %34 = arith.maximumf %32, %33 : vector<1x128xf32>
      %cst_25 = arith.constant 9.99999974E-6 : f32
      %35 = vector.broadcast %cst_25 : f32 to vector<1x128xf32>
      %36 = arith.addf %34, %35 : vector<1x128xf32>
      %37 = math.rsqrt %36 : vector<1x128xf32>
      %38 = arith.mulf %37, %20 : vector<1x128xf32>
      %cst_26 = arith.constant 0.000000e+00 : f32
      %39 = vector.broadcast %cst_26 : f32 to vector<1x128xf32>
      %40 = arith.subf %39, %28 : vector<1x128xf32>
      %41 = arith.mulf %40, %38 : vector<1x128xf32>
      %42 = arith.addf %41, %21 : vector<1x128xf32>
      %43 = vector.broadcast %38 : vector<1x128xf32> to vector<8x128xf32>
      %44 = arith.mulf %19, %43 : vector<8x128xf32>
      %45 = vector.broadcast %42 : vector<1x128xf32> to vector<8x128xf32>
      %46 = arith.addf %44, %45 : vector<8x128xf32>
      %cst_27 = arith.constant 0.000000e+00 : f32
      %47 = vector.broadcast %cst_27 : f32 to vector<8x128xf32>
      %48 = arith.maximumf %46, %47 : vector<8x128xf32>
      %49 = arith.truncf %48 : vector<8x128xf32> to vector<8x128xbf16>
      %c0_28 = arith.constant 0 : index
      %c0_29 = arith.constant 0 : index
      %50 = vector.load %arg5[%c0_28, %c0_29] : memref<128x128xbf16, #tpu.memory_space<vmem>>, vector<128x128xbf16>
      %cst_30 = arith.constant dense<0.000000e+00> : vector<8x128xf32>
      %51 = tpu.matmul %49, %50, %cst_30 {dimension_numbers = #tpu.dot_dimension_numbers<[1], [0], [0], [1], [0, 0, 1, 1], [], []>} : vector<8x128xbf16>, vector<128x128xbf16>, vector<8x128xf32> -> vector<8x128xf32>
      %c0_31 = arith.constant 0 : index
      %c384 = arith.constant 384 : index
      %52 = vector.load %arg9[%c0_31, %c384] : memref<1x1152xf32, #tpu.memory_space<vmem>>, vector<1x128xf32>
      %c0_32 = arith.constant 0 : index
      %c512 = arith.constant 512 : index
      %53 = vector.load %arg9[%c0_32, %c512] : memref<1x1152xf32, #tpu.memory_space<vmem>>, vector<1x128xf32>
      %cst_33 = arith.constant dense<0.000000e+00> : vector<128xf32>
      %54 = vector.multi_reduction <add>, %51, %cst_33 [0] : vector<8x128xf32> to vector<128xf32>
      %55 = vector.shape_cast %54 : vector<128xf32> to vector<1x128xf32>
      %56 = arith.mulf %51, %51 : vector<8x128xf32>
      %cst_34 = arith.constant dense<0.000000e+00> : vector<128xf32>
      %57 = vector.multi_reduction <add>, %56, %cst_34 [0] : vector<8x128xf32> to vector<128xf32>
      %58 = vector.shape_cast %57 : vector<128xf32> to vector<1x128xf32>
      %cst_35 = arith.constant 1.250000e-01 : f32
      %59 = vector.broadcast %cst_35 : f32 to vector<1x128xf32>
      %60 = arith.mulf %55, %59 : vector<1x128xf32>
      %cst_36 = arith.constant 1.250000e-01 : f32
      %61 = vector.broadcast %cst_36 : f32 to vector<1x128xf32>
      %62 = arith.mulf %58, %61 : vector<1x128xf32>
      %63 = arith.mulf %60, %60 : vector<1x128xf32>
      %64 = arith.subf %62, %63 : vector<1x128xf32>
      %cst_37 = arith.constant 0.000000e+00 : f32
      %65 = vector.broadcast %cst_37 : f32 to vector<1x128xf32>
      %66 = arith.maximumf %64, %65 : vector<1x128xf32>
      %cst_38 = arith.constant 9.99999974E-6 : f32
      %67 = vector.broadcast %cst_38 : f32 to vector<1x128xf32>
      %68 = arith.addf %66, %67 : vector<1x128xf32>
      %69 = math.rsqrt %68 : vector<1x128xf32>
      %70 = arith.mulf %69, %52 : vector<1x128xf32>
      %cst_39 = arith.constant 0.000000e+00 : f32
      %71 = vector.broadcast %cst_39 : f32 to vector<1x128xf32>
      %72 = arith.subf %71, %60 : vector<1x128xf32>
      %73 = arith.mulf %72, %70 : vector<1x128xf32>
      %74 = arith.addf %73, %53 : vector<1x128xf32>
      %75 = vector.broadcast %70 : vector<1x128xf32> to vector<8x128xf32>
      %76 = arith.mulf %51, %75 : vector<8x128xf32>
      %77 = vector.broadcast %74 : vector<1x128xf32> to vector<8x128xf32>
      %78 = arith.addf %76, %77 : vector<8x128xf32>
      %cst_40 = arith.constant 0.000000e+00 : f32
      %79 = vector.broadcast %cst_40 : f32 to vector<8x128xf32>
      %80 = arith.maximumf %78, %79 : vector<8x128xf32>
      %81 = arith.truncf %80 : vector<8x128xf32> to vector<8x128xbf16>
      %c0_41 = arith.constant 0 : index
      %c0_42 = arith.constant 0 : index
      %82 = vector.load %arg6[%c0_41, %c0_42] : memref<128x128xbf16, #tpu.memory_space<vmem>>, vector<128x128xbf16>
      %cst_43 = arith.constant dense<0.000000e+00> : vector<8x128xf32>
      %83 = tpu.matmul %81, %82, %cst_43 {dimension_numbers = #tpu.dot_dimension_numbers<[1], [0], [0], [1], [0, 0, 1, 1], [], []>} : vector<8x128xbf16>, vector<128x128xbf16>, vector<8x128xf32> -> vector<8x128xf32>
      %c0_44 = arith.constant 0 : index
      %c640 = arith.constant 640 : index
      %84 = vector.load %arg9[%c0_44, %c640] : memref<1x1152xf32, #tpu.memory_space<vmem>>, vector<1x128xf32>
      %85 = vector.broadcast %84 : vector<1x128xf32> to vector<8x128xf32>
      %86 = arith.addf %83, %85 : vector<8x128xf32>
      %cst_45 = arith.constant dense<0.000000e+00> : vector<128xf32>
      %87 = vector.multi_reduction <add>, %86, %cst_45 [0] : vector<8x128xf32> to vector<128xf32>
      %88 = vector.shape_cast %87 : vector<128xf32> to vector<1x128xf32>
      %89 = arith.mulf %86, %86 : vector<8x128xf32>
      %cst_46 = arith.constant dense<0.000000e+00> : vector<128xf32>
      %90 = vector.multi_reduction <add>, %89, %cst_46 [0] : vector<8x128xf32> to vector<128xf32>
      %91 = vector.shape_cast %90 : vector<128xf32> to vector<1x128xf32>
      %cst_47 = arith.constant 1.250000e-01 : f32
      %92 = vector.broadcast %cst_47 : f32 to vector<1x128xf32>
      %93 = arith.mulf %88, %92 : vector<1x128xf32>
      %cst_48 = arith.constant 1.250000e-01 : f32
      %94 = vector.broadcast %cst_48 : f32 to vector<1x128xf32>
      %95 = arith.mulf %91, %94 : vector<1x128xf32>
      %96 = arith.mulf %93, %93 : vector<1x128xf32>
      %97 = arith.subf %95, %96 : vector<1x128xf32>
      %cst_49 = arith.constant 0.000000e+00 : f32
      %98 = vector.broadcast %cst_49 : f32 to vector<1x128xf32>
      %99 = arith.maximumf %97, %98 : vector<1x128xf32>
      %cst_50 = arith.constant 9.99999974E-6 : f32
      %100 = vector.broadcast %cst_50 : f32 to vector<1x128xf32>
      %101 = arith.addf %99, %100 : vector<1x128xf32>
      %102 = math.rsqrt %101 : vector<1x128xf32>
      %cst_51 = arith.constant 0.000000e+00 : f32
      %103 = vector.broadcast %cst_51 : f32 to vector<1x128xf32>
      %104 = arith.subf %103, %93 : vector<1x128xf32>
      %105 = arith.mulf %104, %102 : vector<1x128xf32>
      %106 = vector.broadcast %102 : vector<1x128xf32> to vector<8x128xf32>
      %107 = arith.mulf %86, %106 : vector<8x128xf32>
      %108 = vector.broadcast %105 : vector<1x128xf32> to vector<8x128xf32>
      %109 = arith.addf %107, %108 : vector<8x128xf32>
      %110 = arith.truncf %109 : vector<8x128xf32> to vector<8x128xbf16>
      %c0_52 = arith.constant 0 : index
      %c0_53 = arith.constant 0 : index
      %111 = vector.load %arg7[%c0_52, %c0_53] : memref<128x128xbf16, #tpu.memory_space<vmem>>, vector<128x128xbf16>
      %cst_54 = arith.constant dense<0.000000e+00> : vector<8x128xf32>
      %112 = tpu.matmul %110, %111, %cst_54 {dimension_numbers = #tpu.dot_dimension_numbers<[1], [0], [0], [1], [0, 0, 1, 1], [], []>} : vector<8x128xbf16>, vector<128x128xbf16>, vector<8x128xf32> -> vector<8x128xf32>
      %c0_55 = arith.constant 0 : index
      %c768 = arith.constant 768 : index
      %113 = vector.load %arg9[%c0_55, %c768] : memref<1x1152xf32, #tpu.memory_space<vmem>>, vector<1x128xf32>
      %c0_56 = arith.constant 0 : index
      %c896 = arith.constant 896 : index
      %114 = vector.load %arg9[%c0_56, %c896] : memref<1x1152xf32, #tpu.memory_space<vmem>>, vector<1x128xf32>
      %cst_57 = arith.constant dense<0.000000e+00> : vector<128xf32>
      %115 = vector.multi_reduction <add>, %112, %cst_57 [0] : vector<8x128xf32> to vector<128xf32>
      %116 = vector.shape_cast %115 : vector<128xf32> to vector<1x128xf32>
      %117 = arith.mulf %112, %112 : vector<8x128xf32>
      %cst_58 = arith.constant dense<0.000000e+00> : vector<128xf32>
      %118 = vector.multi_reduction <add>, %117, %cst_58 [0] : vector<8x128xf32> to vector<128xf32>
      %119 = vector.shape_cast %118 : vector<128xf32> to vector<1x128xf32>
      %cst_59 = arith.constant 1.250000e-01 : f32
      %120 = vector.broadcast %cst_59 : f32 to vector<1x128xf32>
      %121 = arith.mulf %116, %120 : vector<1x128xf32>
      %cst_60 = arith.constant 1.250000e-01 : f32
      %122 = vector.broadcast %cst_60 : f32 to vector<1x128xf32>
      %123 = arith.mulf %119, %122 : vector<1x128xf32>
      %124 = arith.mulf %121, %121 : vector<1x128xf32>
      %125 = arith.subf %123, %124 : vector<1x128xf32>
      %cst_61 = arith.constant 0.000000e+00 : f32
      %126 = vector.broadcast %cst_61 : f32 to vector<1x128xf32>
      %127 = arith.maximumf %125, %126 : vector<1x128xf32>
      %cst_62 = arith.constant 9.99999974E-6 : f32
      %128 = vector.broadcast %cst_62 : f32 to vector<1x128xf32>
      %129 = arith.addf %127, %128 : vector<1x128xf32>
      %130 = math.rsqrt %129 : vector<1x128xf32>
      %131 = arith.mulf %130, %113 : vector<1x128xf32>
      %cst_63 = arith.constant 0.000000e+00 : f32
      %132 = vector.broadcast %cst_63 : f32 to vector<1x128xf32>
      %133 = arith.subf %132, %121 : vector<1x128xf32>
      %134 = arith.mulf %133, %131 : vector<1x128xf32>
      %135 = arith.addf %134, %114 : vector<1x128xf32>
      %136 = vector.broadcast %131 : vector<1x128xf32> to vector<8x128xf32>
      %137 = arith.mulf %112, %136 : vector<8x128xf32>
      %138 = vector.broadcast %135 : vector<1x128xf32> to vector<8x128xf32>
      %139 = arith.addf %137, %138 : vector<8x128xf32>
      %cst_64 = arith.constant 0.000000e+00 : f32
      %140 = vector.broadcast %cst_64 : f32 to vector<8x128xf32>
      %141 = arith.maximumf %139, %140 : vector<8x128xf32>
      %142 = arith.truncf %141 : vector<8x128xf32> to vector<8x128xbf16>
      %c0_65 = arith.constant 0 : index
      %c0_66 = arith.constant 0 : index
      %143 = vector.load %arg8[%c0_65, %c0_66] : memref<128x128xbf16, #tpu.memory_space<vmem>>, vector<128x128xbf16>
      %cst_67 = arith.constant dense<0.000000e+00> : vector<8x128xf32>
      %144 = tpu.matmul %142, %143, %cst_67 {dimension_numbers = #tpu.dot_dimension_numbers<[1], [0], [0], [1], [0, 0, 1, 1], [], []>} : vector<8x128xbf16>, vector<128x128xbf16>, vector<8x128xf32> -> vector<8x128xf32>
      %c0_68 = arith.constant 0 : index
      %c1024 = arith.constant 1024 : index
      %145 = vector.load %arg9[%c0_68, %c1024] : memref<1x1152xf32, #tpu.memory_space<vmem>>, vector<1x128xf32>
      %146 = vector.broadcast %145 : vector<1x128xf32> to vector<8x128xf32>
      %147 = arith.addf %144, %146 : vector<8x128xf32>
      %c0_69 = arith.constant 0 : index
      %c0_70 = arith.constant 0 : index
      %c0_71 = arith.constant 0 : index
      %148 = vector.load %arg10[%c0_69, %c0_70, %c0_71] : memref<1x8x128xf32, #tpu.memory_space<vmem>>, vector<1x8x128xf32>
      %149 = vector.shape_cast %148 : vector<1x8x128xf32> to vector<8x128xf32>
      %150 = vector.shape_cast %147 : vector<8x128xf32> to vector<1x8x128xf32>
      tpu.vector_store %arg10[%c0_69, %c0_70, %c0_71], %150 {strides = array<i32>} : memref<1x8x128xf32, #tpu.memory_space<vmem>>, vector<1x8x128xf32>,
      %c0_72 = arith.constant 0 : index
      %c0_73 = arith.constant 0 : index
      %c0_74 = arith.constant 0 : index
      %151 = vector.load %arg11[%c0_72, %c0_73, %c0_74] : memref<1x8x128xf32, #tpu.memory_space<vmem>>, vector<1x8x128xf32>
      %152 = vector.shape_cast %151 : vector<1x8x128xf32> to vector<8x128xf32>
      %153 = vector.shape_cast %109 : vector<8x128xf32> to vector<1x8x128xf32>
      tpu.vector_store %arg11[%c0_72, %c0_73, %c0_74], %153 {strides = array<i32>} : memref<1x8x128xf32, #tpu.memory_space<vmem>>, vector<1x8x128xf32>,
    } else {
    }
    return
  }
  func.func @transform_0(%arg0: i32, %arg1: i32) -> (i32, i32, i32) {
    %c0_i32 = arith.constant 0 : i32
    %c0_i32_0 = arith.constant 0 : i32
    return %arg0, %c0_i32, %arg1 : i32, i32, i32
  }
  func.func @transform_1(%arg0: i32, %arg1: i32) -> (i32, i32) {
    %c0_i32 = arith.constant 0 : i32
    %c0_i32_0 = arith.constant 0 : i32
    return %arg1, %c0_i32 : i32, i32
  }
  func.func @transform_2(%arg0: i32, %arg1: i32) -> (i32, i32) {
    %c0_i32 = arith.constant 0 : i32
    %c0_i32_0 = arith.constant 0 : i32
    %c0_i32_1 = arith.constant 0 : i32
    return %c0_i32, %c0_i32_0 : i32, i32
  }
  func.func @transform_3(%arg0: i32, %arg1: i32) -> (i32, i32) {
    %c0_i32 = arith.constant 0 : i32
    %c0_i32_0 = arith.constant 0 : i32
    %c0_i32_1 = arith.constant 0 : i32
    return %c0_i32, %c0_i32_0 : i32, i32
  }
  func.func @transform_4(%arg0: i32, %arg1: i32) -> (i32, i32) {
    %c0_i32 = arith.constant 0 : i32
    %c0_i32_0 = arith.constant 0 : i32
    %c0_i32_1 = arith.constant 0 : i32
    return %c0_i32, %c0_i32_0 : i32, i32
  }
  func.func @transform_5(%arg0: i32, %arg1: i32) -> (i32, i32) {
    %c0_i32 = arith.constant 0 : i32
    %c0_i32_0 = arith.constant 0 : i32
    %c0_i32_1 = arith.constant 0 : i32
    return %c0_i32, %c0_i32_0 : i32, i32
  }
  func.func @transform_6(%arg0: i32, %arg1: i32) -> (i32, i32) {
    %c0_i32 = arith.constant 0 : i32
    %c0_i32_0 = arith.constant 0 : i32
    %c0_i32_1 = arith.constant 0 : i32
    return %c0_i32, %c0_i32_0 : i32, i32
  }
  func.func @transform_7(%arg0: i32, %arg1: i32) -> (i32, i32) {
    %c0_i32 = arith.constant 0 : i32
    %c0_i32_0 = arith.constant 0 : i32
    %c0_i32_1 = arith.constant 0 : i32
    return %c0_i32, %c0_i32_0 : i32, i32
  }
  func.func @transform_8(%arg0: i32, %arg1: i32) -> (i32, i32, i32) {
    %c0_i32 = arith.constant 0 : i32
    %c0_i32_0 = arith.constant 0 : i32
    %c0_i32_1 = arith.constant 0 : i32
    return %arg0, %c0_i32, %c0_i32_0 : i32, i32, i32
  }
  func.func @transform_9(%arg0: i32, %arg1: i32) -> (i32, i32, i32) {
    %c0_i32 = arith.constant 0 : i32
    %c0_i32_0 = arith.constant 0 : i32
    %c0_i32_1 = arith.constant 0 : i32
    return %arg0, %c0_i32, %c0_i32_0 : i32, i32, i32
  }
}

module attributes {stable_mosaic.version = 11 : i64} {
  func.func @_simsiam_kernel(%arg0: i32, %arg1: i32, %arg2: memref<1x8x4xbf16, #tpu.memory_space<vmem>>, %arg3: memref<4x128xbf16, #tpu.memory_space<vmem>>, %arg4: memref<128x128xbf16, #tpu.memory_space<vmem>>, %arg5: memref<128x128xbf16, #tpu.memory_space<vmem>>, %arg6: memref<128x128xbf16, #tpu.memory_space<vmem>>, %arg7: memref<128x128xbf16, #tpu.memory_space<vmem>>, %arg8: memref<128x128xbf16, #tpu.memory_space<vmem>>, %arg9: memref<1x1152xf32, #tpu.memory_space<vmem>>, %arg10: memref<1x8x128xf32, #tpu.memory_space<vmem>>, %arg11: memref<1x8x128xf32, #tpu.memory_space<vmem>>, %arg12: memref<8x128xf32, #tpu.memory_space<vmem>>) attributes {dimension_semantics = [#tpu.dimension_semantics<parallel>, #tpu.dimension_semantics<arbitrary>], iteration_bounds = array<i64: 2, 1>, scalar_prefetch = 0 : i64, scratch_operands = 1 : i64, tpu.core_type = #tpu.core_type<tc>, window_params = [{transform_indices = @transform_0, window_bounds = array<i64: 1, 8, 4>}, {transform_indices = @transform_1, window_bounds = array<i64: 4, 128>}, {pipeline_mode = #tpu.pipeline_mode<synchronous>, transform_indices = @transform_2, window_bounds = array<i64: 128, 128>}, {pipeline_mode = #tpu.pipeline_mode<synchronous>, transform_indices = @transform_3, window_bounds = array<i64: 128, 128>}, {pipeline_mode = #tpu.pipeline_mode<synchronous>, transform_indices = @transform_4, window_bounds = array<i64: 128, 128>}, {pipeline_mode = #tpu.pipeline_mode<synchronous>, transform_indices = @transform_5, window_bounds = array<i64: 128, 128>}, {pipeline_mode = #tpu.pipeline_mode<synchronous>, transform_indices = @transform_6, window_bounds = array<i64: 128, 128>}, {pipeline_mode = #tpu.pipeline_mode<synchronous>, transform_indices = @transform_7, window_bounds = array<i64: 1, 1152>}, {transform_indices = @transform_8, window_bounds = array<i64: 1, 8, 128>}, {transform_indices = @transform_9, window_bounds = array<i64: 1, 8, 128>}]} {
    %c0_i32 = arith.constant 0 : i32
    %0 = arith.cmpi eq, %arg1, %c0_i32 : i32
    %1 = arith.extui %0 : i1 to i32
    %c0_i32_0 = arith.constant 0 : i32
    %2 = arith.cmpi ne, %1, %c0_i32_0 : i32
    scf.if %2 {
      %cst_11 = arith.constant 0.000000e+00 : f32
      %13 = vector.broadcast %cst_11 : f32 to vector<8x128xf32>
      %c0_12 = arith.constant 0 : index
      %c0_13 = arith.constant 0 : index
      %14 = vector.load %arg12[%c0_12, %c0_13] : memref<8x128xf32, #tpu.memory_space<vmem>>, vector<8x128xf32>
      tpu.vector_store %arg12[%c0_12, %c0_13], %13 {strides = array<i32>} : memref<8x128xf32, #tpu.memory_space<vmem>>, vector<8x128xf32>,
    } else {
    }
    %c0 = arith.constant 0 : index
    %c0_1 = arith.constant 0 : index
    %3 = vector.load %arg12[%c0, %c0_1] : memref<8x128xf32, #tpu.memory_space<vmem>>, vector<8x128xf32>
    %c0_2 = arith.constant 0 : index
    %c0_3 = arith.constant 0 : index
    %c0_4 = arith.constant 0 : index
    %4 = vector.load %arg2[%c0_2, %c0_3, %c0_4] : memref<1x8x4xbf16, #tpu.memory_space<vmem>>, vector<1x8x4xbf16>
    %5 = vector.shape_cast %4 : vector<1x8x4xbf16> to vector<8x4xbf16>
    %c0_5 = arith.constant 0 : index
    %c0_6 = arith.constant 0 : index
    %6 = vector.load %arg3[%c0_5, %c0_6] : memref<4x128xbf16, #tpu.memory_space<vmem>>, vector<4x128xbf16>
    %cst = arith.constant dense<0.000000e+00> : vector<8x128xf32>
    %7 = tpu.matmul %5, %6, %cst {dimension_numbers = #tpu.dot_dimension_numbers<[1], [0], [0], [1], [0, 0, 1, 1], [], []>} : vector<8x4xbf16>, vector<4x128xbf16>, vector<8x128xf32> -> vector<8x128xf32>
    %8 = arith.addf %3, %7 : vector<8x128xf32>
    %c0_7 = arith.constant 0 : index
    %c0_8 = arith.constant 0 : index
    %9 = vector.load %arg12[%c0_7, %c0_8] : memref<8x128xf32, #tpu.memory_space<vmem>>, vector<8x128xf32>
    tpu.vector_store %arg12[%c0_7, %c0_8], %8 {strides = array<i32>} : memref<8x128xf32, #tpu.memory_space<vmem>>, vector<8x128xf32>,
    %c0_i32_9 = arith.constant 0 : i32
    %10 = arith.cmpi eq, %arg1, %c0_i32_9 : i32
    %11 = arith.extui %10 : i1 to i32
    %c0_i32_10 = arith.constant 0 : i32
    %12 = arith.cmpi ne, %11, %c0_i32_10 : i32
    scf.if %12 {
      %c0_11 = arith.constant 0 : index
      %c0_12 = arith.constant 0 : index
      %13 = vector.load %arg12[%c0_11, %c0_12] : memref<8x128xf32, #tpu.memory_space<vmem>>, vector<8x128xf32>
      %c0_13 = arith.constant 0 : index
      %c0_14 = arith.constant 0 : index
      %14 = vector.load %arg9[%c0_13, %c0_14] : memref<1x1152xf32, #tpu.memory_space<vmem>>, vector<1x128xf32>
      %15 = vector.broadcast %14 : vector<1x128xf32> to vector<8x128xf32>
      %16 = arith.addf %13, %15 : vector<8x128xf32>
      %17 = arith.truncf %16 : vector<8x128xf32> to vector<8x128xbf16>
      %c0_15 = arith.constant 0 : index
      %c0_16 = arith.constant 0 : index
      %18 = vector.load %arg4[%c0_15, %c0_16] : memref<128x128xbf16, #tpu.memory_space<vmem>>, vector<128x128xbf16>
      %cst_17 = arith.constant dense<0.000000e+00> : vector<8x128xf32>
      %19 = tpu.matmul %17, %18, %cst_17 {dimension_numbers = #tpu.dot_dimension_numbers<[1], [0], [0], [1], [0, 0, 1, 1], [], []>} : vector<8x128xbf16>, vector<128x128xbf16>, vector<8x128xf32> -> vector<8x128xf32>
      %c0_18 = arith.constant 0 : index
      %c128 = arith.constant 128 : index
      %20 = vector.load %arg9[%c0_18, %c128] : memref<1x1152xf32, #tpu.memory_space<vmem>>, vector<1x128xf32>
      %c0_19 = arith.constant 0 : index
      %c256 = arith.constant 256 : index
      %21 = vector.load %arg9[%c0_19, %c256] : memref<1x1152xf32, #tpu.memory_space<vmem>>, vector<1x128xf32>
      %cst_20 = arith.constant dense<0.000000e+00> : vector<128xf32>
      %22 = vector.multi_reduction <add>, %19, %cst_20 [0] : vector<8x128xf32> to vector<128xf32>
      %23 = vector.shape_cast %22 : vector<128xf32> to vector<1x128xf32>
      %24 = arith.mulf %19, %19 : vector<8x128xf32>
      %cst_21 = arith.constant dense<0.000000e+00> : vector<128xf32>
      %25 = vector.multi_reduction <add>, %24, %cst_21 [0] : vector<8x128xf32> to vector<128xf32>
      %26 = vector.shape_cast %25 : vector<128xf32> to vector<1x128xf32>
      %cst_22 = arith.constant 1.250000e-01 : f32
      %27 = vector.broadcast %cst_22 : f32 to vector<1x128xf32>
      %28 = arith.mulf %23, %27 : vector<1x128xf32>
      %cst_23 = arith.constant 1.250000e-01 : f32
      %29 = vector.broadcast %cst_23 : f32 to vector<1x128xf32>
      %30 = arith.mulf %26, %29 : vector<1x128xf32>
      %31 = arith.mulf %28, %28 : vector<1x128xf32>
      %32 = arith.subf %30, %31 : vector<1x128xf32>
      %cst_24 = arith.constant 0.000000e+00 : f32
      %33 = vector.broadcast %cst_24 : f32 to vector<1x128xf32>
      %34 = arith.maximumf %32, %33 : vector<1x128xf32>
      %cst_25 = arith.constant 9.99999974E-6 : f32
      %35 = vector.broadcast %cst_25 : f32 to vector<1x128xf32>
      %36 = arith.addf %34, %35 : vector<1x128xf32>
      %37 = math.rsqrt %36 : vector<1x128xf32>
      %38 = arith.mulf %37, %20 : vector<1x128xf32>
      %cst_26 = arith.constant 0.000000e+00 : f32
      %39 = vector.broadcast %cst_26 : f32 to vector<1x128xf32>
      %40 = arith.subf %39, %28 : vector<1x128xf32>
      %41 = arith.mulf %40, %38 : vector<1x128xf32>
      %42 = arith.addf %41, %21 : vector<1x128xf32>
      %43 = vector.broadcast %38 : vector<1x128xf32> to vector<8x128xf32>
      %44 = arith.mulf %19, %43 : vector<8x128xf32>
      %45 = vector.broadcast %42 : vector<1x128xf32> to vector<8x128xf32>
      %46 = arith.addf %44, %45 : vector<8x128xf32>
      %cst_27 = arith.constant 0.000000e+00 : f32
      %47 = vector.broadcast %cst_27 : f32 to vector<8x128xf32>
      %48 = arith.maximumf %46, %47 : vector<8x128xf32>
      %49 = arith.truncf %48 : vector<8x128xf32> to vector<8x128xbf16>
      %c0_28 = arith.constant 0 : index
      %c0_29 = arith.constant 0 : index
      %50 = vector.load %arg5[%c0_28, %c0_29] : memref<128x128xbf16, #tpu.memory_space<vmem>>, vector<128x128xbf16>
      %cst_30 = arith.constant dense<0.000000e+00> : vector<8x128xf32>
      %51 = tpu.matmul %49, %50, %cst_30 {dimension_numbers = #tpu.dot_dimension_numbers<[1], [0], [0], [1], [0, 0, 1, 1], [], []>} : vector<8x128xbf16>, vector<128x128xbf16>, vector<8x128xf32> -> vector<8x128xf32>
      %c0_31 = arith.constant 0 : index
      %c384 = arith.constant 384 : index
      %52 = vector.load %arg9[%c0_31, %c384] : memref<1x1152xf32, #tpu.memory_space<vmem>>, vector<1x128xf32>
      %c0_32 = arith.constant 0 : index
      %c512 = arith.constant 512 : index
      %53 = vector.load %arg9[%c0_32, %c512] : memref<1x1152xf32, #tpu.memory_space<vmem>>, vector<1x128xf32>
      %cst_33 = arith.constant dense<0.000000e+00> : vector<128xf32>
      %54 = vector.multi_reduction <add>, %51, %cst_33 [0] : vector<8x128xf32> to vector<128xf32>
      %55 = vector.shape_cast %54 : vector<128xf32> to vector<1x128xf32>
      %56 = arith.mulf %51, %51 : vector<8x128xf32>
      %cst_34 = arith.constant dense<0.000000e+00> : vector<128xf32>
      %57 = vector.multi_reduction <add>, %56, %cst_34 [0] : vector<8x128xf32> to vector<128xf32>
      %58 = vector.shape_cast %57 : vector<128xf32> to vector<1x128xf32>
      %cst_35 = arith.constant 1.250000e-01 : f32
      %59 = vector.broadcast %cst_35 : f32 to vector<1x128xf32>
      %60 = arith.mulf %55, %59 : vector<1x128xf32>
      %cst_36 = arith.constant 1.250000e-01 : f32
      %61 = vector.broadcast %cst_36 : f32 to vector<1x128xf32>
      %62 = arith.mulf %58, %61 : vector<1x128xf32>
      %63 = arith.mulf %60, %60 : vector<1x128xf32>
      %64 = arith.subf %62, %63 : vector<1x128xf32>
      %cst_37 = arith.constant 0.000000e+00 : f32
      %65 = vector.broadcast %cst_37 : f32 to vector<1x128xf32>
      %66 = arith.maximumf %64, %65 : vector<1x128xf32>
      %cst_38 = arith.constant 9.99999974E-6 : f32
      %67 = vector.broadcast %cst_38 : f32 to vector<1x128xf32>
      %68 = arith.addf %66, %67 : vector<1x128xf32>
      %69 = math.rsqrt %68 : vector<1x128xf32>
      %70 = arith.mulf %69, %52 : vector<1x128xf32>
      %cst_39 = arith.constant 0.000000e+00 : f32
      %71 = vector.broadcast %cst_39 : f32 to vector<1x128xf32>
      %72 = arith.subf %71, %60 : vector<1x128xf32>
      %73 = arith.mulf %72, %70 : vector<1x128xf32>
      %74 = arith.addf %73, %53 : vector<1x128xf32>
      %75 = vector.broadcast %70 : vector<1x128xf32> to vector<8x128xf32>
      %76 = arith.mulf %51, %75 : vector<8x128xf32>
      %77 = vector.broadcast %74 : vector<1x128xf32> to vector<8x128xf32>
      %78 = arith.addf %76, %77 : vector<8x128xf32>
      %cst_40 = arith.constant 0.000000e+00 : f32
      %79 = vector.broadcast %cst_40 : f32 to vector<8x128xf32>
      %80 = arith.maximumf %78, %79 : vector<8x128xf32>
      %81 = arith.truncf %80 : vector<8x128xf32> to vector<8x128xbf16>
      %c0_41 = arith.constant 0 : index
      %c0_42 = arith.constant 0 : index
      %82 = vector.load %arg6[%c0_41, %c0_42] : memref<128x128xbf16, #tpu.memory_space<vmem>>, vector<128x128xbf16>
      %cst_43 = arith.constant dense<0.000000e+00> : vector<8x128xf32>
      %83 = tpu.matmul %81, %82, %cst_43 {dimension_numbers = #tpu.dot_dimension_numbers<[1], [0], [0], [1], [0, 0, 1, 1], [], []>} : vector<8x128xbf16>, vector<128x128xbf16>, vector<8x128xf32> -> vector<8x128xf32>
      %c0_44 = arith.constant 0 : index
      %c640 = arith.constant 640 : index
      %84 = vector.load %arg9[%c0_44, %c640] : memref<1x1152xf32, #tpu.memory_space<vmem>>, vector<1x128xf32>
      %85 = vector.broadcast %84 : vector<1x128xf32> to vector<8x128xf32>
      %86 = arith.addf %83, %85 : vector<8x128xf32>
      %cst_45 = arith.constant dense<0.000000e+00> : vector<128xf32>
      %87 = vector.multi_reduction <add>, %86, %cst_45 [0] : vector<8x128xf32> to vector<128xf32>
      %88 = vector.shape_cast %87 : vector<128xf32> to vector<1x128xf32>
      %89 = arith.mulf %86, %86 : vector<8x128xf32>
      %cst_46 = arith.constant dense<0.000000e+00> : vector<128xf32>
      %90 = vector.multi_reduction <add>, %89, %cst_46 [0] : vector<8x128xf32> to vector<128xf32>
      %91 = vector.shape_cast %90 : vector<128xf32> to vector<1x128xf32>
      %cst_47 = arith.constant 1.250000e-01 : f32
      %92 = vector.broadcast %cst_47 : f32 to vector<1x128xf32>
      %93 = arith.mulf %88, %92 : vector<1x128xf32>
      %cst_48 = arith.constant 1.250000e-01 : f32
      %94 = vector.broadcast %cst_48 : f32 to vector<1x128xf32>
      %95 = arith.mulf %91, %94 : vector<1x128xf32>
      %96 = arith.mulf %93, %93 : vector<1x128xf32>
      %97 = arith.subf %95, %96 : vector<1x128xf32>
      %cst_49 = arith.constant 0.000000e+00 : f32
      %98 = vector.broadcast %cst_49 : f32 to vector<1x128xf32>
      %99 = arith.maximumf %97, %98 : vector<1x128xf32>
      %cst_50 = arith.constant 9.99999974E-6 : f32
      %100 = vector.broadcast %cst_50 : f32 to vector<1x128xf32>
      %101 = arith.addf %99, %100 : vector<1x128xf32>
      %102 = math.rsqrt %101 : vector<1x128xf32>
      %cst_51 = arith.constant 0.000000e+00 : f32
      %103 = vector.broadcast %cst_51 : f32 to vector<1x128xf32>
      %104 = arith.subf %103, %93 : vector<1x128xf32>
      %105 = arith.mulf %104, %102 : vector<1x128xf32>
      %106 = vector.broadcast %102 : vector<1x128xf32> to vector<8x128xf32>
      %107 = arith.mulf %86, %106 : vector<8x128xf32>
      %108 = vector.broadcast %105 : vector<1x128xf32> to vector<8x128xf32>
      %109 = arith.addf %107, %108 : vector<8x128xf32>
      %110 = arith.truncf %109 : vector<8x128xf32> to vector<8x128xbf16>
      %c0_52 = arith.constant 0 : index
      %c0_53 = arith.constant 0 : index
      %111 = vector.load %arg7[%c0_52, %c0_53] : memref<128x128xbf16, #tpu.memory_space<vmem>>, vector<128x128xbf16>
      %cst_54 = arith.constant dense<0.000000e+00> : vector<8x128xf32>
      %112 = tpu.matmul %110, %111, %cst_54 {dimension_numbers = #tpu.dot_dimension_numbers<[1], [0], [0], [1], [0, 0, 1, 1], [], []>} : vector<8x128xbf16>, vector<128x128xbf16>, vector<8x128xf32> -> vector<8x128xf32>
      %c0_55 = arith.constant 0 : index
      %c768 = arith.constant 768 : index
      %113 = vector.load %arg9[%c0_55, %c768] : memref<1x1152xf32, #tpu.memory_space<vmem>>, vector<1x128xf32>
      %c0_56 = arith.constant 0 : index
      %c896 = arith.constant 896 : index
      %114 = vector.load %arg9[%c0_56, %c896] : memref<1x1152xf32, #tpu.memory_space<vmem>>, vector<1x128xf32>
      %cst_57 = arith.constant dense<0.000000e+00> : vector<128xf32>
      %115 = vector.multi_reduction <add>, %112, %cst_57 [0] : vector<8x128xf32> to vector<128xf32>
      %116 = vector.shape_cast %115 : vector<128xf32> to vector<1x128xf32>
      %117 = arith.mulf %112, %112 : vector<8x128xf32>
      %cst_58 = arith.constant dense<0.000000e+00> : vector<128xf32>
      %118 = vector.multi_reduction <add>, %117, %cst_58 [0] : vector<8x128xf32> to vector<128xf32>
      %119 = vector.shape_cast %118 : vector<128xf32> to vector<1x128xf32>
      %cst_59 = arith.constant 1.250000e-01 : f32
      %120 = vector.broadcast %cst_59 : f32 to vector<1x128xf32>
      %121 = arith.mulf %116, %120 : vector<1x128xf32>
      %cst_60 = arith.constant 1.250000e-01 : f32
      %122 = vector.broadcast %cst_60 : f32 to vector<1x128xf32>
      %123 = arith.mulf %119, %122 : vector<1x128xf32>
      %124 = arith.mulf %121, %121 : vector<1x128xf32>
      %125 = arith.subf %123, %124 : vector<1x128xf32>
      %cst_61 = arith.constant 0.000000e+00 : f32
      %126 = vector.broadcast %cst_61 : f32 to vector<1x128xf32>
      %127 = arith.maximumf %125, %126 : vector<1x128xf32>
      %cst_62 = arith.constant 9.99999974E-6 : f32
      %128 = vector.broadcast %cst_62 : f32 to vector<1x128xf32>
      %129 = arith.addf %127, %128 : vector<1x128xf32>
      %130 = math.rsqrt %129 : vector<1x128xf32>
      %131 = arith.mulf %130, %113 : vector<1x128xf32>
      %cst_63 = arith.constant 0.000000e+00 : f32
      %132 = vector.broadcast %cst_63 : f32 to vector<1x128xf32>
      %133 = arith.subf %132, %121 : vector<1x128xf32>
      %134 = arith.mulf %133, %131 : vector<1x128xf32>
      %135 = arith.addf %134, %114 : vector<1x128xf32>
      %136 = vector.broadcast %131 : vector<1x128xf32> to vector<8x128xf32>
      %137 = arith.mulf %112, %136 : vector<8x128xf32>
      %138 = vector.broadcast %135 : vector<1x128xf32> to vector<8x128xf32>
      %139 = arith.addf %137, %138 : vector<8x128xf32>
      %cst_64 = arith.constant 0.000000e+00 : f32
      %140 = vector.broadcast %cst_64 : f32 to vector<8x128xf32>
      %141 = arith.maximumf %139, %140 : vector<8x128xf32>
      %142 = arith.truncf %141 : vector<8x128xf32> to vector<8x128xbf16>
      %c0_65 = arith.constant 0 : index
      %c0_66 = arith.constant 0 : index
      %143 = vector.load %arg8[%c0_65, %c0_66] : memref<128x128xbf16, #tpu.memory_space<vmem>>, vector<128x128xbf16>
      %cst_67 = arith.constant dense<0.000000e+00> : vector<8x128xf32>
      %144 = tpu.matmul %142, %143, %cst_67 {dimension_numbers = #tpu.dot_dimension_numbers<[1], [0], [0], [1], [0, 0, 1, 1], [], []>} : vector<8x128xbf16>, vector<128x128xbf16>, vector<8x128xf32> -> vector<8x128xf32>
      %c0_68 = arith.constant 0 : index
      %c1024 = arith.constant 1024 : index
      %145 = vector.load %arg9[%c0_68, %c1024] : memref<1x1152xf32, #tpu.memory_space<vmem>>, vector<1x128xf32>
      %146 = vector.broadcast %145 : vector<1x128xf32> to vector<8x128xf32>
      %147 = arith.addf %144, %146 : vector<8x128xf32>
      %c0_69 = arith.constant 0 : index
      %c0_70 = arith.constant 0 : index
      %c0_71 = arith.constant 0 : index
      %148 = vector.load %arg10[%c0_69, %c0_70, %c0_71] : memref<1x8x128xf32, #tpu.memory_space<vmem>>, vector<1x8x128xf32>
      %149 = vector.shape_cast %148 : vector<1x8x128xf32> to vector<8x128xf32>
      %150 = vector.shape_cast %147 : vector<8x128xf32> to vector<1x8x128xf32>
      tpu.vector_store %arg10[%c0_69, %c0_70, %c0_71], %150 {strides = array<i32>} : memref<1x8x128xf32, #tpu.memory_space<vmem>>, vector<1x8x128xf32>,
      %c0_72 = arith.constant 0 : index
      %c0_73 = arith.constant 0 : index
      %c0_74 = arith.constant 0 : index
      %151 = vector.load %arg11[%c0_72, %c0_73, %c0_74] : memref<1x8x128xf32, #tpu.memory_space<vmem>>, vector<1x8x128xf32>
      %152 = vector.shape_cast %151 : vector<1x8x128xf32> to vector<8x128xf32>
      %153 = vector.shape_cast %109 : vector<8x128xf32> to vector<1x8x128xf32>
      tpu.vector_store %arg11[%c0_72, %c0_73, %c0_74], %153 {strides = array<i32>} : memref<1x8x128xf32, #tpu.memory_space<vmem>>, vector<1x8x128xf32>,
    } else {
    }
    return
  }
  func.func @transform_0(%arg0: i32, %arg1: i32) -> (i32, i32, i32) {
    %c0_i32 = arith.constant 0 : i32
    %c0_i32_0 = arith.constant 0 : i32
    return %arg0, %c0_i32, %arg1 : i32, i32, i32
  }
  func.func @transform_1(%arg0: i32, %arg1: i32) -> (i32, i32) {
    %c0_i32 = arith.constant 0 : i32
    %c0_i32_0 = arith.constant 0 : i32
    return %arg1, %c0_i32 : i32, i32
  }
  func.func @transform_2(%arg0: i32, %arg1: i32) -> (i32, i32) {
    %c0_i32 = arith.constant 0 : i32
    %c0_i32_0 = arith.constant 0 : i32
    %c0_i32_1 = arith.constant 0 : i32
    return %c0_i32, %c0_i32_0 : i32, i32
  }
  func.func @transform_3(%arg0: i32, %arg1: i32) -> (i32, i32) {
    %c0_i32 = arith.constant 0 : i32
    %c0_i32_0 = arith.constant 0 : i32
    %c0_i32_1 = arith.constant 0 : i32
    return %c0_i32, %c0_i32_0 : i32, i32
  }
  func.func @transform_4(%arg0: i32, %arg1: i32) -> (i32, i32) {
    %c0_i32 = arith.constant 0 : i32
    %c0_i32_0 = arith.constant 0 : i32
    %c0_i32_1 = arith.constant 0 : i32
    return %c0_i32, %c0_i32_0 : i32, i32
  }
  func.func @transform_5(%arg0: i32, %arg1: i32) -> (i32, i32) {
    %c0_i32 = arith.constant 0 : i32
    %c0_i32_0 = arith.constant 0 : i32
    %c0_i32_1 = arith.constant 0 : i32
    return %c0_i32, %c0_i32_0 : i32, i32
  }
  func.func @transform_6(%arg0: i32, %arg1: i32) -> (i32, i32) {
    %c0_i32 = arith.constant 0 : i32
    %c0_i32_0 = arith.constant 0 : i32
    %c0_i32_1 = arith.constant 0 : i32
    return %c0_i32, %c0_i32_0 : i32, i32
  }
  func.func @transform_7(%arg0: i32, %arg1: i32) -> (i32, i32) {
    %c0_i32 = arith.constant 0 : i32
    %c0_i32_0 = arith.constant 0 : i32
    %c0_i32_1 = arith.constant 0 : i32
    return %c0_i32, %c0_i32_0 : i32, i32
  }
  func.func @transform_8(%arg0: i32, %arg1: i32) -> (i32, i32, i32) {
    %c0_i32 = arith.constant 0 : i32
    %c0_i32_0 = arith.constant 0 : i32
    %c0_i32_1 = arith.constant 0 : i32
    return %arg0, %c0_i32, %c0_i32_0 : i32, i32, i32
  }
  func.func @transform_9(%arg0: i32, %arg1: i32) -> (i32, i32, i32) {
    %c0_i32 = arith.constant 0 : i32
    %c0_i32_0 = arith.constant 0 : i32
    %c0_i32_1 = arith.constant 0 : i32
    return %arg0, %c0_i32, %c0_i32_0 : i32, i32, i32
  }
}

</mosaic_0001>

<llo_original>
// kernel: tpu_custom_call.1
$region0: #{tpu_custom_call.1}
  #allocation0 [shape = 'u32[]', space=smem, size = 0x4, offset = 0x4, fixed_abs, tag = 'smem constant byte address 0x4 - core index']
  #allocation1 [shape = 'u32[144,128]{1,0:T(1,128)}', space=vmem, size = 0x12000, scoped, tag = 'internal scratch']
  #allocation2 [shape = 'f32[8,128]{1,0:T(8,128)}', space=vmem, size = 0x1000, scoped, tag = 'scratch operand']
  %s0 = inlined_call_operand.vmem [shape: bf16[2,8,4], index: 0, kind: input, shape index: {}]
  %s1 = inlined_call_operand.vmem [shape: bf16[4,128], index: 1, kind: input, shape index: {}]
  %s2 = inlined_call_operand.hbm [shape: bf16[128,128], index: 2, kind: input, shape index: {}]
  %s3 = inlined_call_operand.hbm [shape: bf16[128,128], index: 3, kind: input, shape index: {}]
  %s4 = inlined_call_operand.hbm [shape: bf16[128,128], index: 4, kind: input, shape index: {}]
  %s5 = inlined_call_operand.hbm [shape: bf16[128,128], index: 5, kind: input, shape index: {}]
  %s6 = inlined_call_operand.hbm [shape: bf16[128,128], index: 6, kind: input, shape index: {}]
  %s7 = inlined_call_operand.vmem [shape: f32[1,1152], index: 7, kind: input, shape index: {}]
  %s8 = inlined_call_operand.hbm [shape: f32[2,8,128], index: 8, kind: output, shape index: {0}]
  %s9 = inlined_call_operand.hbm [shape: f32[2,8,128], index: 9, kind: output, shape index: {1}]
  %10 = xla_tuple %s8, %s9
  %s11 = sld [smem:[#allocation0]]
  $region101: #{tpu_custom_call.1} parent=0
    _
  %s13 = ssub.s32 1, %s11
  %s14 = scalar_select 0, %s13, %s11
  $region1: #{tpu_custom_call.1} parent=0
    #allocation3 [shape = 'u8[32768]{0}', space=vmem, size = 0x8000, scoped, tag = 'input window, operand 2, single buffered']
    #allocation4 [shape = 's32[2]{0}', space=sflag, size = 0x8, scoped, tag = 'scoped memory for tpu_custom_call.1']
    #allocation5 [shape = 's32[2]{0}', space=sflag, size = 0x8, scoped, tag = 'scoped memory for tpu_custom_call.1']
    #allocation6 [shape = 'u8[32768]{0}', space=vmem, size = 0x8000, scoped, tag = 'input window, operand 3, single buffered']
    #allocation7 [shape = 's32[1]{0}', space=sflag, size = 0x4, scoped, tag = 'scoped memory for tpu_custom_call.1']
    #allocation8 [shape = 'u8[32768]{0}', space=vmem, size = 0x8000, scoped, tag = 'input window, operand 4, single buffered']
    #allocation9 [shape = 'u8[32768]{0}', space=vmem, size = 0x8000, scoped, tag = 'input window, operand 5, single buffered']
    #allocation10 [shape = 's32[1]{0}', space=sflag, size = 0x4, scoped, tag = 'scoped memory for tpu_custom_call.1']
    #allocation11 [shape = 'u8[32768]{0}', space=vmem, size = 0x8000, scoped, tag = 'input window, operand 6, single buffered']
    #allocation12 [shape = 'u8[8192]{0}', space=vmem, size = 0x2000, scoped, tag = 'output window, operand 0']
    #allocation13 [shape = 'u8[8192]{0}', space=vmem, size = 0x2000, scoped, tag = 'output window, operand 1']
    #allocation14 [shape = 's32[2]{0}', space=sflag, size = 0x8, scoped, tag = 'scoped memory for tpu_custom_call.1']
    %15 = vsyncpa [#allocation4], 0
    %16 = vsyncpa [#allocation7], 0
    %17 = vsyncpa [#allocation10], 0
    %18 = vsyncpa [#allocation5], 0
    %s19 = scalar_lea.sflag [#allocation5], 1
    %20 = vsyncpa %s19, 0
    %21 = vsyncpa [#allocation14], 0
    %s22 = scalar_lea.sflag [#allocation14], 1
    %23 = vsyncpa %s22, 0
    loop: start=0, step=1, limit=4
    $region2: #{tpu_custom_call.1} parent=1 // loop_pre_header
      _
    $region3: #{tpu_custom_call.1} parent=1 // loop_header
      %s25 = sphi 0, %s29
      %p26 = scmp.ge.s32.totalorder %s25, 4
      %s32 = sphi 0, %s44
      %s33 = sphi 0, %s40
      %s34 = sphi 0, %s32
      %s35 = sphi 0, %s33
      %s36 = sphi 0, %s34
      %s37 = sphi 0, %s35
      %s49 = sphi 0, %s51
      %s52 = sphi 0, %s49
      %s53 = sphi 0, %s52
      %s69 = sphi 0, %s53
      %s75 = sphi 0, %s77
      %s78 = sphi 0, %s75
      %s79 = sphi 0, %s78
      %s95 = sphi 0, %s79
      %s99 = sphi 0, %s99
      %s101 = sphi 0, %s99
      %s102 = sphi 0, %s101
      %s116 = sphi 0, %s102
      %s120 = sphi 0, %s120
      %s122 = sphi 0, %s120
      %s123 = sphi 0, %s122
      %s137 = sphi 0, %s123
      %s141 = sphi 0, %s141
      %s143 = sphi 0, %s141
      %s144 = sphi 0, %s143
      %s158 = sphi 0, %s144
      %s162 = sphi 0, %s162
      %s164 = sphi 0, %s162
      %s165 = sphi 0, %s164
      %s179 = sphi 0, %s165
      %s183 = sphi 0, %s183
      %s185 = sphi 0, %s183
      %s186 = sphi 0, %s185
      %s200 = sphi 0, %s186
      %s204 = sphi 0, %s204
      %s206 = sphi 0, %s204
      %s207 = sphi 0, %s206
      %s221 = sphi 0, %s207
      %s227 = sphi 0, %s229
      %s230 = sphi 0, %s227
      %s231 = sphi 0, %s230
      %s247 = sphi 0, %s231
      %s253 = sphi 0, %s255
      %s256 = sphi 0, %s253
      %s257 = sphi 0, %s256
      %s273 = sphi 0, %s257
    $region4: #{tpu_custom_call.1} parent=1 // loop_header_branch
      %28 = sbr.rel (%p26) target = $region8
    $region5: #{tpu_custom_call.1} parent=1 // loop_body
      %s30 = ssub.s32 %s25, 1
      %s31 = ssub.s32 %s25, 2
      %s38 = sadd.s32 1, %s33
      %p39 = scmp.ge.s32.totalorder %s38, 1
      %s40 = scalar_select %p39, 0, %s38
      %s41 = sadd.s32 1, %s32
      %s42 = scalar_select %p39, %s41, %s32
      %p43 = scmp.ge.s32.totalorder %s42, 2
      %s44 = scalar_select %p43, 0, %s42
      %s45 = ssub.s32 %s32, %s44
      %s46 = ssub.s32 %s33, %s40
      %s47 = sor.u32 %s45, %s46
      %p48 = scmp.eq.s32.totalorder %s47, 0
      %s50 = sadd.s32 %s49, 1
      %s51 = scalar_select %p48, %s49, %s50
      %p54 = pneg %p48
      %p55 = scmp.eq.s32.totalorder %s25, 1
      %p56 = por %p54, %p55
      %p57 = scmp.ne.s32.totalorder %s49, %s52
      %p58 = scmp.eq.s32.totalorder %s25, 0
      %p59 = por %p57, %p58
      %p60 = scmp.ne.s32.totalorder %s49, %s52
      %p61 = scmp.eq.s32.totalorder %s30, 1
      %p62 = por %p60, %p61
      %p63 = scmp.ne.s32.totalorder %s52, %s53
      %p64 = scmp.eq.s32.totalorder %s30, 0
      %p65 = por %p63, %p64
      %p66 = scmp.ne.s32.totalorder %s52, %s53
      %p67 = scmp.eq.s32.totalorder %s31, 1
      %p68 = por %p66, %p67
      %p70 = scmp.ne.s32.totalorder %s53, %s69
      %p71 = scmp.eq.s32.totalorder %s31, 0
      %p72 = por %p70, %p71
      %s73 = ssub.s32 %s33, %s40
      %p74 = scmp.eq.s32.totalorder %s73, 0
      %s76 = sadd.s32 %s75, 1
      %s77 = scalar_select %p74, %s75, %s76
      %p80 = pneg %p74
      %p81 = scmp.eq.s32.totalorder %s25, 1
      %p82 = por %p80, %p81
      %p83 = scmp.ne.s32.totalorder %s75, %s78
      %p84 = scmp.eq.s32.totalorder %s25, 0
      %p85 = por %p83, %p84
      %p86 = scmp.ne.s32.totalorder %s75, %s78
      %p87 = scmp.eq.s32.totalorder %s30, 1
      %p88 = por %p86, %p87
      %p89 = scmp.ne.s32.totalorder %s78, %s79
      %p90 = scmp.eq.s32.totalorder %s30, 0
      %p91 = por %p89, %p90
      %p92 = scmp.ne.s32.totalorder %s78, %s79
      %p93 = scmp.eq.s32.totalorder %s31, 1
      %p94 = por %p92, %p93
      %p96 = scmp.ne.s32.totalorder %s79, %s95
      %p97 = scmp.eq.s32.totalorder %s31, 0
      %p98 = por %p96, %p97
      %s100 = sadd.s32 %s99, 1
      %p103 = scmp.eq.s32.totalorder %s25, 1
      %p104 = scmp.ne.s32.totalorder %s99, %s101
      %p105 = scmp.eq.s32.totalorder %s25, 0
      %p106 = por %p104, %p105
      %p107 = scmp.ne.s32.totalorder %s99, %s101
      %p108 = scmp.eq.s32.totalorder %s30, 1
      %p109 = por %p107, %p108
      %p110 = scmp.ne.s32.totalorder %s101, %s102
      %p111 = scmp.eq.s32.totalorder %s30, 0
      %p112 = por %p110, %p111
      %p113 = scmp.ne.s32.totalorder %s101, %s102
      %p114 = scmp.eq.s32.totalorder %s31, 1
      %p115 = por %p113, %p114
      %p117 = scmp.ne.s32.totalorder %s102, %s116
      %p118 = scmp.eq.s32.totalorder %s31, 0
      %p119 = por %p117, %p118
      %s121 = sadd.s32 %s120, 1
      %p124 = scmp.eq.s32.totalorder %s25, 1
      %p125 = scmp.ne.s32.totalorder %s120, %s122
      %p126 = scmp.eq.s32.totalorder %s25, 0
      %p127 = por %p125, %p126
      %p128 = scmp.ne.s32.totalorder %s120, %s122
      %p129 = scmp.eq.s32.totalorder %s30, 1
      %p130 = por %p128, %p129
      %p131 = scmp.ne.s32.totalorder %s122, %s123
      %p132 = scmp.eq.s32.totalorder %s30, 0
      %p133 = por %p131, %p132
      %p134 = scmp.ne.s32.totalorder %s122, %s123
      %p135 = scmp.eq.s32.totalorder %s31, 1
      %p136 = por %p134, %p135
      %p138 = scmp.ne.s32.totalorder %s123, %s137
      %p139 = scmp.eq.s32.totalorder %s31, 0
      %p140 = por %p138, %p139
      %s142 = sadd.s32 %s141, 1
      %p145 = scmp.eq.s32.totalorder %s25, 1
      %p146 = scmp.ne.s32.totalorder %s141, %s143
      %p147 = scmp.eq.s32.totalorder %s25, 0
      %p148 = por %p146, %p147
      %p149 = scmp.ne.s32.totalorder %s141, %s143
      %p150 = scmp.eq.s32.totalorder %s30, 1
      %p151 = por %p149, %p150
      %p152 = scmp.ne.s32.totalorder %s143, %s144
      %p153 = scmp.eq.s32.totalorder %s30, 0
      %p154 = por %p152, %p153
      %p155 = scmp.ne.s32.totalorder %s143, %s144
      %p156 = scmp.eq.s32.totalorder %s31, 1
      %p157 = por %p155, %p156
      %p159 = scmp.ne.s32.totalorder %s144, %s158
      %p160 = scmp.eq.s32.totalorder %s31, 0
      %p161 = por %p159, %p160
      %s163 = sadd.s32 %s162, 1
      %p166 = scmp.eq.s32.totalorder %s25, 1
      %p167 = scmp.ne.s32.totalorder %s162, %s164
      %p168 = scmp.eq.s32.totalorder %s25, 0
      %p169 = por %p167, %p168
      %p170 = scmp.ne.s32.totalorder %s162, %s164
      %p171 = scmp.eq.s32.totalorder %s30, 1
      %p172 = por %p170, %p171
      %p173 = scmp.ne.s32.totalorder %s164, %s165
      %p174 = scmp.eq.s32.totalorder %s30, 0
      %p175 = por %p173, %p174
      %p176 = scmp.ne.s32.totalorder %s164, %s165
      %p177 = scmp.eq.s32.totalorder %s31, 1
      %p178 = por %p176, %p177
      %p180 = scmp.ne.s32.totalorder %s165, %s179
      %p181 = scmp.eq.s32.totalorder %s31, 0
      %p182 = por %p180, %p181
      %s184 = sadd.s32 %s183, 1
      %p187 = scmp.eq.s32.totalorder %s25, 1
      %p188 = scmp.ne.s32.totalorder %s183, %s185
      %p189 = scmp.eq.s32.totalorder %s25, 0
      %p190 = por %p188, %p189
      %p191 = scmp.ne.s32.totalorder %s183, %s185
      %p192 = scmp.eq.s32.totalorder %s30, 1
      %p193 = por %p191, %p192
      %p194 = scmp.ne.s32.totalorder %s185, %s186
      %p195 = scmp.eq.s32.totalorder %s30, 0
      %p196 = por %p194, %p195
      %p197 = scmp.ne.s32.totalorder %s185, %s186
      %p198 = scmp.eq.s32.totalorder %s31, 1
      %p199 = por %p197, %p198
      %p201 = scmp.ne.s32.totalorder %s186, %s200
      %p202 = scmp.eq.s32.totalorder %s31, 0
      %p203 = por %p201, %p202
      %s205 = sadd.s32 %s204, 1
      %p208 = scmp.eq.s32.totalorder %s25, 1
      %p209 = scmp.ne.s32.totalorder %s204, %s206
      %p210 = scmp.eq.s32.totalorder %s25, 0
      %p211 = por %p209, %p210
      %p212 = scmp.ne.s32.totalorder %s204, %s206
      %p213 = scmp.eq.s32.totalorder %s30, 1
      %p214 = por %p212, %p213
      %p215 = scmp.ne.s32.totalorder %s206, %s207
      %p216 = scmp.eq.s32.totalorder %s30, 0
      %p217 = por %p215, %p216
      %p218 = scmp.ne.s32.totalorder %s206, %s207
      %p219 = scmp.eq.s32.totalorder %s31, 1
      %p220 = por %p218, %p219
      %p222 = scmp.ne.s32.totalorder %s207, %s221
      %p223 = scmp.eq.s32.totalorder %s31, 0
      %p224 = por %p222, %p223
      %s225 = ssub.s32 %s32, %s44
      %p226 = scmp.eq.s32.totalorder %s225, 0
      %s228 = sadd.s32 %s227, 1
      %s229 = scalar_select %p226, %s227, %s228
      %p232 = pneg %p226
      %p233 = scmp.eq.s32.totalorder %s25, 1
      %p234 = por %p232, %p233
      %p235 = scmp.ne.s32.totalorder %s227, %s230
      %p236 = scmp.eq.s32.totalorder %s25, 0
      %p237 = por %p235, %p236
      %p238 = scmp.ne.s32.totalorder %s227, %s230
      %p239 = scmp.eq.s32.totalorder %s30, 1
      %p240 = por %p238, %p239
      %p241 = scmp.ne.s32.totalorder %s230, %s231
      %p242 = scmp.eq.s32.totalorder %s30, 0
      %p243 = por %p241, %p242
      %p244 = scmp.ne.s32.totalorder %s230, %s231
      %p245 = scmp.eq.s32.totalorder %s31, 1
      %p246 = por %p244, %p245
      %p248 = scmp.ne.s32.totalorder %s231, %s247
      %p249 = scmp.eq.s32.totalorder %s31, 0
      %p250 = por %p248, %p249
      %s251 = ssub.s32 %s32, %s44
      %p252 = scmp.eq.s32.totalorder %s251, 0
      %s254 = sadd.s32 %s253, 1
      %s255 = scalar_select %p252, %s253, %s254
      %p258 = pneg %p252
      %p259 = scmp.eq.s32.totalorder %s25, 1
      %p260 = por %p258, %p259
      %p261 = scmp.ne.s32.totalorder %s253, %s256
      %p262 = scmp.eq.s32.totalorder %s25, 0
      %p263 = por %p261, %p262
      %p264 = scmp.ne.s32.totalorder %s253, %s256
      %p265 = scmp.eq.s32.totalorder %s30, 1
      %p266 = por %p264, %p265
      %p267 = scmp.ne.s32.totalorder %s256, %s257
      %p268 = scmp.eq.s32.totalorder %s30, 0
      %p269 = por %p267, %p268
      %p270 = scmp.ne.s32.totalorder %s256, %s257
      %p271 = scmp.eq.s32.totalorder %s31, 1
      %p272 = por %p270, %p271
      %p274 = scmp.ne.s32.totalorder %s257, %s273
      %p275 = scmp.eq.s32.totalorder %s31, 0
      %p276 = por %p274, %p275
      %p277 = scmp.le.s32.totalorder 1, %s25
      %p278 = scmp.lt.s32.totalorder %s25, 3
      %p279 = pnand %p277, %p278
      %p280 = pneg %p279
      // Predicated region
      $region9: #{tpu_custom_call.1} parent=5 // pred_check
        _
      $region10: #{tpu_custom_call.1} parent=5 // pred_check_branch
        %282 = sbr.rel (%p279) target = $region12
      $region11: #{tpu_custom_call.1} parent=5 // pred_region
        %s283 = ssub.s32 %s25, 1
        // Predicated region
        $region13: #{tpu_custom_call.1} parent=11 // pred_check
          %p284 = pneg %p91
        $region14: #{tpu_custom_call.1} parent=11 // pred_check_branch
          %286 = sbr.rel (%p284) target = $region16
        $region15: #{tpu_custom_call.1} parent=11 // pred_region
          %p287 = scmp.lt.s32.totalorder %s35, 0
          %s288 = scalar_select %p287, %s35, 0
          %s289 = smul.addr %s288, 2
          %s290 = scalar_lea.vmem %s1, %s289
        $region16: #{tpu_custom_call.1} parent=11 // pred_fallthru
          _
        // Predicated region
        $region17: #{tpu_custom_call.1} parent=11 // pred_check
          %p291 = pneg %p112
        $region18: #{tpu_custom_call.1} parent=11 // pred_check_branch
          %293 = sbr.rel (%p291) target = $region20
        $region19: #{tpu_custom_call.1} parent=11 // pred_region
          %s295 = ssub.s32 1024, 1024
          %296 = vsyncadd [#allocation4], %s295
          %s297 = sshll.u32 [#allocation3], 4
          %s298 = int_to_ptr.vmem [resolvable:$true] %s297
          %303 = dma.hbm_to_vmem [thread:$0]  %s2, 1024, %s298, [#allocation4], 64, 64, 4
        $region20: #{tpu_custom_call.1} parent=11 // pred_fallthru
          _
        // Predicated region
        $region21: #{tpu_custom_call.1} parent=11 // pred_check
          %p304 = pneg %p133
        $region22: #{tpu_custom_call.1} parent=11 // pred_check_branch
          %306 = sbr.rel (%p304) target = $region24
        $region23: #{tpu_custom_call.1} parent=11 // pred_region
          %s308 = ssub.s32 1024, 1024
          %309 = vsyncadd [#allocation7], %s308
          %s310 = sshll.u32 [#allocation6], 4
          %s311 = int_to_ptr.vmem [resolvable:$true] %s310
          %316 = dma.hbm_to_vmem [thread:$0]  %s3, 1024, %s311, [#allocation7], 64, 64, 4
        $region24: #{tpu_custom_call.1} parent=11 // pred_fallthru
          _
        // Predicated region
        $region25: #{tpu_custom_call.1} parent=11 // pred_check
          %p317 = pneg %p154
        $region26: #{tpu_custom_call.1} parent=11 // pred_check_branch
          %319 = sbr.rel (%p317) target = $region28
        $region27: #{tpu_custom_call.1} parent=11 // pred_region
          %s321 = ssub.s32 1024, 1024
          %322 = vsyncadd [#allocation7], %s321
          %s323 = sshll.u32 [#allocation8], 4
          %s324 = int_to_ptr.vmem [resolvable:$true] %s323
          %329 = dma.hbm_to_vmem [thread:$0]  %s4, 1024, %s324, [#allocation7], 64, 64, 4
        $region28: #{tpu_custom_call.1} parent=11 // pred_fallthru
          _
        // Predicated region
        $region29: #{tpu_custom_call.1} parent=11 // pred_check
          %p330 = pneg %p175
        $region30: #{tpu_custom_call.1} parent=11 // pred_check_branch
          %332 = sbr.rel (%p330) target = $region32
        $region31: #{tpu_custom_call.1} parent=11 // pred_region
          %s334 = ssub.s32 1024, 1024
          %335 = vsyncadd [#allocation10], %s334
          %s336 = sshll.u32 [#allocation9], 4
          %s337 = int_to_ptr.vmem [resolvable:$true] %s336
          %342 = dma.hbm_to_vmem [thread:$0]  %s5, 1024, %s337, [#allocation10], 64, 64, 4
        $region32: #{tpu_custom_call.1} parent=11 // pred_fallthru
          _
        // Predicated region
        $region33: #{tpu_custom_call.1} parent=11 // pred_check
          %p343 = pneg %p196
        $region34: #{tpu_custom_call.1} parent=11 // pred_check_branch
          %345 = sbr.rel (%p343) target = $region36
        $region35: #{tpu_custom_call.1} parent=11 // pred_region
          %s347 = ssub.s32 1024, 1024
          %348 = vsyncadd [#allocation10], %s347
          %s349 = sshll.u32 [#allocation11], 4
          %s350 = int_to_ptr.vmem [resolvable:$true] %s349
          %355 = dma.hbm_to_vmem [thread:$0]  %s6, 1024, %s350, [#allocation10], 64, 64, 4
        $region36: #{tpu_custom_call.1} parent=11 // pred_fallthru
          _
        // Predicated region
        $region37: #{tpu_custom_call.1} parent=11 // pred_check
          %p356 = pneg %p217
        $region38: #{tpu_custom_call.1} parent=11 // pred_check_branch
          %358 = sbr.rel (%p356) target = $region40
        $region39: #{tpu_custom_call.1} parent=11 // pred_region
          _
        $region40: #{tpu_custom_call.1} parent=11 // pred_fallthru
          _
      $region12: #{tpu_custom_call.1} parent=5 // pred_fallthru
        _
      %p359 = scmp.lt.s32.totalorder %s25, 2
      // Predicated region
      $region41: #{tpu_custom_call.1} parent=5 // pred_check
        %p360 = pneg %p359
      $region42: #{tpu_custom_call.1} parent=5 // pred_check_branch
        %362 = sbr.rel (%p360) target = $region44
      $region43: #{tpu_custom_call.1} parent=5 // pred_region
        // Predicated region
        $region45: #{tpu_custom_call.1} parent=43 // pred_check
          %p363 = pneg %p59
        $region46: #{tpu_custom_call.1} parent=43 // pred_check_branch
          %365 = sbr.rel (%p363) target = $region48
        $region47: #{tpu_custom_call.1} parent=43 // pred_region
          %p366 = scmp.lt.s32.totalorder %s32, 1
          %s367 = scalar_select %p366, %s32, 1
          %p368 = scmp.lt.s32.totalorder %s33, 0
          %s369 = scalar_select %p368, %s33, 0
          %s370 = sadd.s32 %s369, %s367
          %s371 = smul.addr %s370, 4
          %s372 = scalar_lea.vmem %s0, %s371
        $region48: #{tpu_custom_call.1} parent=43 // pred_fallthru
          _
      $region44: #{tpu_custom_call.1} parent=5 // pred_fallthru
        _
      %p373 = scmp.le.s32.totalorder 1, %s25
      %p374 = scmp.lt.s32.totalorder %s25, 3
      %p375 = pnand %p373, %p374
      %p376 = pneg %p375
      // Predicated region
      $region49: #{tpu_custom_call.1} parent=5 // pred_check
        _
      $region50: #{tpu_custom_call.1} parent=5 // pred_check_branch
        %378 = sbr.rel (%p375) target = $region52
      $region51: #{tpu_custom_call.1} parent=5 // pred_region
        %s379 = ssub.s32 %s25, 1
        // Predicated region
        $region53: #{tpu_custom_call.1} parent=51 // pred_check
          %p380 = pneg %p112
        $region54: #{tpu_custom_call.1} parent=51 // pred_check_branch
          %382 = sbr.rel (%p380) target = $region56
        $region55: #{tpu_custom_call.1} parent=51 // pred_region
          %383 = dma.done [#allocation4], 1024
        $region56: #{tpu_custom_call.1} parent=51 // pred_fallthru
          _
        // Predicated region
        $region57: #{tpu_custom_call.1} parent=51 // pred_check
          %p384 = pneg %p133
        $region58: #{tpu_custom_call.1} parent=51 // pred_check_branch
          %386 = sbr.rel (%p384) target = $region60
        $region59: #{tpu_custom_call.1} parent=51 // pred_region
          %387 = dma.done [#allocation7], 1024
        $region60: #{tpu_custom_call.1} parent=51 // pred_fallthru
          _
        // Predicated region
        $region61: #{tpu_custom_call.1} parent=51 // pred_check
          %p388 = pneg %p154
        $region62: #{tpu_custom_call.1} parent=51 // pred_check_branch
          %390 = sbr.rel (%p388) target = $region64
        $region63: #{tpu_custom_call.1} parent=51 // pred_region
          %391 = dma.done [#allocation7], 1024
        $region64: #{tpu_custom_call.1} parent=51 // pred_fallthru
          _
        // Predicated region
        $region65: #{tpu_custom_call.1} parent=51 // pred_check
          %p392 = pneg %p175
        $region66: #{tpu_custom_call.1} parent=51 // pred_check_branch
          %394 = sbr.rel (%p392) target = $region68
        $region67: #{tpu_custom_call.1} parent=51 // pred_region
          %395 = dma.done [#allocation10], 1024
        $region68: #{tpu_custom_call.1} parent=51 // pred_fallthru
          _
        // Predicated region
        $region69: #{tpu_custom_call.1} parent=51 // pred_check
          %p396 = pneg %p196
        $region70: #{tpu_custom_call.1} parent=51 // pred_check_branch
          %398 = sbr.rel (%p396) target = $region72
        $region71: #{tpu_custom_call.1} parent=51 // pred_region
          %399 = dma.done [#allocation10], 1024
        $region72: #{tpu_custom_call.1} parent=51 // pred_fallthru
          _
        %p400 = scmp.lt.s32.totalorder %s34, 1
        %s401 = scalar_select %p400, %s34, 1
        %p402 = scmp.lt.s32.totalorder %s35, 0
        %s403 = scalar_select %p402, %s35, 0
        %s404 = sadd.s32 %s403, %s401
        %s405 = smul.addr %s404, 4
        %s406 = scalar_lea.vmem %s0, %s405
        %p407 = pneg %p65
        %p408 = pneg %p62
        %p409 = scmp.lt.s32.totalorder %s35, 0
        %s410 = scalar_select %p409, %s35, 0
        %s411 = smul.addr %s410, 2
        %s412 = scalar_lea.vmem %s1, %s411
        %p413 = pneg %p91
        %p414 = pneg %p88
        %p415 = pneg %p112
        %p416 = pneg %p109
        %p417 = pneg %p133
        %p418 = pneg %p130
        %p419 = pneg %p154
        %p420 = pneg %p151
        %p421 = pneg %p175
        %p422 = pneg %p172
        %p423 = pneg %p196
        %p424 = pneg %p193
        %p425 = pneg %p217
        %p426 = pneg %p214
        %p427 = pneg %p243
        %p428 = pneg %p240
        %s429 = sand.u32 %s230, 1
        %s430 = scalar_lea.sflag [#allocation5], %s429
        %s431 = sand.u32 %s230, 1
        %s432 = smul.addr %s431, 8
        %s433 = scalar_lea.vmem [#allocation12], %s432
        %p434 = pneg %p269
        %p435 = pneg %p266
        %s436 = sand.u32 %s256, 1
        %s437 = scalar_lea.sflag [#allocation14], %s436
        %s438 = sand.u32 %s256, 1
        %s439 = smul.addr %s438, 8
        %s440 = scalar_lea.vmem [#allocation13], %s439
        %p441 = scmp.lt.s32.totalorder %s34, 1
        %s442 = scalar_select %p441, %s34, 1
        %p443 = scmp.lt.s32.totalorder %s35, 0
        %s444 = scalar_select %p443, %s35, 0
        %s445 = sadd.s32 %s444, %s442
        %s446 = smul.addr %s445, 4
        %s447 = scalar_lea.vmem %s0, %s446
        %p448 = scmp.lt.s32.totalorder %s35, 0
        %s449 = scalar_select %p448, %s35, 0
        %s450 = smul.addr %s449, 2
        %s451 = scalar_lea.vmem %s1, %s450
        %p453 = scmp.eq.s32.totalorder %s35, 0
        // Predicated region
        $region73: #{tpu_custom_call.1} parent=51 // pred_check
          %p454 = pneg %p453
        $region74: #{tpu_custom_call.1} parent=51 // pred_check_branch
          %456 = sbr.rel (%p454) target = $region76
        $region75: #{tpu_custom_call.1} parent=51 // pred_region
          %457 = vst [vmem:[#allocation2] sm:$0xff] 0.0
        $region76: #{tpu_custom_call.1} parent=51 // pred_fallthru
          _
        %v458 = vld [vmem:[#allocation2] sm:$0xff]
        %v459 = vld [vmem:[%s447] sm:$0xf]
        %v460 = vld [vmem:[%s451] sm:$0x3]
        %vm461 = vcmask 31744
        %v463 = vsel %vm461, %v459, 0
        %vm465 = vcmask 1041408
        %v467 = vsel %vm465, %v460, 0
        %469 = vmatprep.subr.bf16.mxu0 0
        %470 = vmatpush1.bf16.msra.mxu0 0
        %471 = vmatprep.subr.bf16.mxu0 0
        %472 = vmatpush1.bf16.msra.mxu0 0
        %473 = vmatprep.subr.bf16.mxu0 0
        %474 = vmatpush1.bf16.msra.mxu0 0
        %475 = vmatprep.subr.bf16.mxu0 0
        %476 = vmatpush1.bf16.msra.mxu0 0
        %477 = vmatprep.subr.bf16.mxu0 0
        %478 = vmatpush1.bf16.msra.mxu0 0
        %479 = vmatprep.subr.bf16.mxu0 0
        %480 = vmatpush1.bf16.msra.mxu0 0
        %481 = vmatprep.subr.bf16.mxu0 0
        %482 = vmatpush1.bf16.msra.mxu0 0
        %483 = vmatprep.subr.bf16.mxu0 0
        %484 = vmatpush1.bf16.msra.mxu0 %v467
        %485 = vmatprep.subr.bf16.mxu0 0
        %486 = vmatpush2.bf16.msra.mxu0 0
        %487 = vmatprep.subr.bf16.mxu0 0
        %488 = vmatpush2.bf16.msra.mxu0 0
        %489 = vmatprep.subr.bf16.mxu0 0
        %490 = vmatpush2.bf16.msra.mxu0 0
        %491 = vmatprep.subr.bf16.mxu0 0
        %492 = vmatpush2.bf16.msra.mxu0 0
        %493 = vmatprep.subr.bf16.mxu0 0
        %494 = vmatpush2.bf16.msra.mxu0 0
        %495 = vmatprep.subr.bf16.mxu0 0
        %496 = vmatpush2.bf16.msra.mxu0 0
        %497 = vmatprep.subr.bf16.mxu0 0
        %498 = vmatpush2.bf16.msra.mxu0 0
        %499 = vmatprep.subr.bf16.mxu0 0
        %500 = vmatpush2.bf16.msra.mxu0 0
        %501 = vmatprep.mubr.bf16.mxu0 0
        %502 = vmatmul.mubr.bf16.gmra.mxu0 %v463
        %v503 = vpop.f32.mrf.mxu0
        %v504 = vadd.f32 0.0, %v503
        %v505 = vpop.f32.mrf.mxu0
        %v506 = vpop.f32.mrf.mxu0
        %v507 = vpop.f32.mrf.mxu0
        %508 = vdwg.mxu0
        %v509 = vadd.f32 %v458, %v504
        %510 = vst [vmem:[#allocation2] sm:$0xff] %v509
        // Predicated region
        $region77: #{tpu_custom_call.1} parent=51 // pred_check
          %p511 = pneg %p453
        $region78: #{tpu_custom_call.1} parent=51 // pred_check_branch
          %513 = sbr.rel (%p511) target = $region80
        $region79: #{tpu_custom_call.1} parent=51 // pred_region
          %v514 = vld [vmem:[#allocation2] sm:$0xff]
          %v515 = vld [vmem:[%s7] sm:$0x1]
          %v517 = vlaneseq
          %v518 = vshrl.u32 %v517, 7
          %v519 = vsub.s32 0, %v518
          %v520 = vrot.slane %v515, %v519
          %v522 = vadd.f32 %v514, %v520
          %v523 = vpack.c.bf16 %v522, %v522
          %v524 = vld [vmem:[#allocation3] sm:$0xf]
          %v525 = vld [vmem:[#allocation3 + $0x4] sm:$0xf]
          %v526 = vld [vmem:[#allocation3 + $0x8] sm:$0xf]
          %v527 = vld [vmem:[#allocation3 + $0xc] sm:$0xf]
          %v528 = vld [vmem:[#allocation3 + $0x10] sm:$0xf]
          %v529 = vld [vmem:[#allocation3 + $0x14] sm:$0xf]
          %v530 = vld [vmem:[#allocation3 + $0x18] sm:$0xf]
          %v531 = vld [vmem:[#allocation3 + $0x1c] sm:$0xf]
          %v532 = vld [vmem:[#allocation3 + $0x20] sm:$0xf]
          %v533 = vld [vmem:[#allocation3 + $0x24] sm:$0xf]
          %v534 = vld [vmem:[#allocation3 + $0x28] sm:$0xf]
          %v535 = vld [vmem:[#allocation3 + $0x2c] sm:$0xf]
          %v536 = vld [vmem:[#allocation3 + $0x30] sm:$0xf]
          %v537 = vld [vmem:[#allocation3 + $0x34] sm:$0xf]
          %v538 = vld [vmem:[#allocation3 + $0x38] sm:$0xf]
          %v539 = vld [vmem:[#allocation3 + $0x3c] sm:$0xf]
          %v556 = vunpack.c.l.b16 %v524
          %v557 = vunpack.c.l.b16 %v525
          %v558 = vunpack.c.l.b16 %v526
          %v559 = vunpack.c.l.b16 %v527
          %v560 = vunpack.c.l.b16 %v528
          %v561 = vunpack.c.l.b16 %v529
          %v562 = vunpack.c.l.b16 %v530
          %v563 = vunpack.c.l.b16 %v531
          %v564 = vunpack.c.l.b16 %v532
          %v565 = vunpack.c.l.b16 %v533
          %v566 = vunpack.c.l.b16 %v534
          %v567 = vunpack.c.l.b16 %v535
          %v568 = vunpack.c.l.b16 %v536
          %v569 = vunpack.c.l.b16 %v537
          %v570 = vunpack.c.l.b16 %v538
          %v571 = vunpack.c.l.b16 %v539
          %v572 = vpack.c.b16 %v557, %v556
          %v573 = vpack.c.b16 %v559, %v558
          %v574 = vpack.c.b16 %v561, %v560
          %v575 = vpack.c.b16 %v563, %v562
          %v576 = vpack.c.b16 %v565, %v564
          %v577 = vpack.c.b16 %v567, %v566
          %v578 = vpack.c.b16 %v569, %v568
          %v579 = vpack.c.b16 %v571, %v570
          %588 = vmatprep.subr.bf16.mxu0 0
          %589 = vmatpush1.bf16.msra.mxu0 %v579
          %590 = vmatprep.subr.bf16.mxu0 0
          %591 = vmatpush1.bf16.msra.mxu0 %v578
          %592 = vmatprep.subr.bf16.mxu0 0
          %593 = vmatpush1.bf16.msra.mxu0 %v577
          %594 = vmatprep.subr.bf16.mxu0 0
          %595 = vmatpush1.bf16.msra.mxu0 %v576
          %596 = vmatprep.subr.bf16.mxu0 0
          %597 = vmatpush1.bf16.msra.mxu0 %v575
          %598 = vmatprep.subr.bf16.mxu0 0
          %599 = vmatpush1.bf16.msra.mxu0 %v574
          %600 = vmatprep.subr.bf16.mxu0 0
          %601 = vmatpush1.bf16.msra.mxu0 %v573
          %602 = vmatprep.subr.bf16.mxu0 0
          %603 = vmatpush1.bf16.msra.mxu0 %v572
          %604 = vmatprep.subr.bf16.mxu0 0
          %605 = vmatpush2.bf16.msra.mxu0 0
          %606 = vmatprep.subr.bf16.mxu0 0
          %607 = vmatpush2.bf16.msra.mxu0 0
          %608 = vmatprep.subr.bf16.mxu0 0
          %609 = vmatpush2.bf16.msra.mxu0 0
          %610 = vmatprep.subr.bf16.mxu0 0
          %611 = vmatpush2.bf16.msra.mxu0 0
          %612 = vmatprep.subr.bf16.mxu0 0
          %613 = vmatpush2.bf16.msra.mxu0 0
          %614 = vmatprep.subr.bf16.mxu0 0
          %615 = vmatpush2.bf16.msra.mxu0 0
          %616 = vmatprep.subr.bf16.mxu0 0
          %617 = vmatpush2.bf16.msra.mxu0 0
          %618 = vmatprep.subr.bf16.mxu0 0
          %619 = vmatpush2.bf16.msra.mxu0 0
          %620 = vmatprep.mubr.bf16.mxu0 0
          %621 = vmatmul.mubr.bf16.gmra.mxu0 %v523
          %v622 = vpop.f32.mrf.mxu0
          %v623 = vadd.f32 0.0, %v622
          %v624 = vpop.f32.mrf.mxu0
          %v625 = vpop.f32.mrf.mxu0
          %v626 = vpop.f32.mrf.mxu0
          %627 = vdwg.mxu0
          %v628 = vld [vmem:[%s7 + $0x1] sm:$0x1]
          %v629 = vld [vmem:[%s7 + $0x2] sm:$0x1]
          %v630 = vrot.slane %v623, 4
          %v631 = vadd.f32 %v623, %v630
          %v632 = vrot.slane %v631, 2
          %v633 = vadd.f32 %v631, %v632
          %v634 = vrot.slane %v633, 1
          %v635 = vadd.f32 %v633, %v634
          %v636 = vmul.f32 %v623, %v623
          %v637 = vrot.slane %v636, 4
          %v638 = vadd.f32 %v636, %v637
          %v639 = vrot.slane %v638, 2
          %v640 = vadd.f32 %v638, %v639
          %v641 = vrot.slane %v640, 1
          %v642 = vadd.f32 %v640, %v641
          %v643 = vmul.f32 %v635, 0.125
          %v644 = vmul.f32 %v642, 0.125
          %v645 = vmul.f32 %v643, %v643
          %v646 = vsub.f32 %v644, %v645
          %v647 = vmax.f32 %v646, 0.0
          %v648 = vadd.f32 %v647, 1e-05
          %v649 = vrsqrt.pop %v648
          %v650 = vmul.f32 %v649, %v628
          %v651 = vsub.f32 0.0, %v643
          %v652 = vmul.f32 %v651, %v650
          %v653 = vadd.f32 %v652, %v629
          %v654 = vlaneseq
          %v655 = vshrl.u32 %v654, 7
          %v656 = vsub.s32 0, %v655
          %v657 = vrot.slane %v650, %v656
          %v658 = vmul.f32 %v623, %v657
          %v659 = vlaneseq
          %v660 = vshrl.u32 %v659, 7
          %v661 = vsub.s32 0, %v660
          %v662 = vrot.slane %v653, %v661
          %v663 = vadd.f32 %v658, %v662
          %v664 = vmax.f32 %v663, 0.0
          %v665 = vpack.c.bf16 %v664, %v664
          %v666 = vld [vmem:[#allocation6] sm:$0xf]
          %v667 = vld [vmem:[#allocation6 + $0x4] sm:$0xf]
          %v668 = vld [vmem:[#allocation6 + $0x8] sm:$0xf]
          %v669 = vld [vmem:[#allocation6 + $0xc] sm:$0xf]
          %v670 = vld [vmem:[#allocation6 + $0x10] sm:$0xf]
          %v671 = vld [vmem:[#allocation6 + $0x14] sm:$0xf]
          %v672 = vld [vmem:[#allocation6 + $0x18] sm:$0xf]
          %v673 = vld [vmem:[#allocation6 + $0x1c] sm:$0xf]
          %v674 = vld [vmem:[#allocation6 + $0x20] sm:$0xf]
          %v675 = vld [vmem:[#allocation6 + $0x24] sm:$0xf]
          %v676 = vld [vmem:[#allocation6 + $0x28] sm:$0xf]
          %v677 = vld [vmem:[#allocation6 + $0x2c] sm:$0xf]
          %v678 = vld [vmem:[#allocation6 + $0x30] sm:$0xf]
          %v679 = vld [vmem:[#allocation6 + $0x34] sm:$0xf]
          %v680 = vld [vmem:[#allocation6 + $0x38] sm:$0xf]
          %v681 = vld [vmem:[#allocation6 + $0x3c] sm:$0xf]
          %v698 = vunpack.c.l.b16 %v666
          %v699 = vunpack.c.l.b16 %v667
          %v700 = vunpack.c.l.b16 %v668
          %v701 = vunpack.c.l.b16 %v669
          %v702 = vunpack.c.l.b16 %v670
          %v703 = vunpack.c.l.b16 %v671
          %v704 = vunpack.c.l.b16 %v672
          %v705 = vunpack.c.l.b16 %v673
          %v706 = vunpack.c.l.b16 %v674
          %v707 = vunpack.c.l.b16 %v675
          %v708 = vunpack.c.l.b16 %v676
          %v709 = vunpack.c.l.b16 %v677
          %v710 = vunpack.c.l.b16 %v678
          %v711 = vunpack.c.l.b16 %v679
          %v712 = vunpack.c.l.b16 %v680
          %v713 = vunpack.c.l.b16 %v681
          %v714 = vpack.c.b16 %v699, %v698
          %v715 = vpack.c.b16 %v701, %v700
          %v716 = vpack.c.b16 %v703, %v702
          %v717 = vpack.c.b16 %v705, %v704
          %v718 = vpack.c.b16 %v707, %v706
          %v719 = vpack.c.b16 %v709, %v708
          %v720 = vpack.c.b16 %v711, %v710
          %v721 = vpack.c.b16 %v713, %v712
          %730 = vmatprep.subr.bf16.mxu0 0
          %731 = vmatpush1.bf16.msra.mxu0 %v721
          %732 = vmatprep.subr.bf16.mxu0 0
          %733 = vmatpush1.bf16.msra.mxu0 %v720
          %734 = vmatprep.subr.bf16.mxu0 0
          %735 = vmatpush1.bf16.msra.mxu0 %v719
          %736 = vmatprep.subr.bf16.mxu0 0
          %737 = vmatpush1.bf16.msra.mxu0 %v718
          %738 = vmatprep.subr.bf16.mxu0 0
          %739 = vmatpush1.bf16.msra.mxu0 %v717
          %740 = vmatprep.subr.bf16.mxu0 0
          %741 = vmatpush1.bf16.msra.mxu0 %v716
          %742 = vmatprep.subr.bf16.mxu0 0
          %743 = vmatpush1.bf16.msra.mxu0 %v715
          %744 = vmatprep.subr.bf16.mxu0 0
          %745 = vmatpush1.bf16.msra.mxu0 %v714
          %746 = vmatprep.subr.bf16.mxu0 0
          %747 = vmatpush2.bf16.msra.mxu0 0
          %748 = vmatprep.subr.bf16.mxu0 0
          %749 = vmatpush2.bf16.msra.mxu0 0
          %750 = vmatprep.subr.bf16.mxu0 0
          %751 = vmatpush2.bf16.msra.mxu0 0
          %752 = vmatprep.subr.bf16.mxu0 0
          %753 = vmatpush2.bf16.msra.mxu0 0
          %754 = vmatprep.subr.bf16.mxu0 0
          %755 = vmatpush2.bf16.msra.mxu0 0
          %756 = vmatprep.subr.bf16.mxu0 0
          %757 = vmatpush2.bf16.msra.mxu0 0
          %758 = vmatprep.subr.bf16.mxu0 0
          %759 = vmatpush2.bf16.msra.mxu0 0
          %760 = vmatprep.subr.bf16.mxu0 0
          %761 = vmatpush2.bf16.msra.mxu0 0
          %762 = vmatprep.mubr.bf16.mxu0 0
          %763 = vmatmul.mubr.bf16.gmra.mxu0 %v665
          %v764 = vpop.f32.mrf.mxu0
          %v765 = vadd.f32 0.0, %v764
          %v766 = vpop.f32.mrf.mxu0
          %v767 = vpop.f32.mrf.mxu0
          %v768 = vpop.f32.mrf.mxu0
          %769 = vdwg.mxu0
          %v770 = vld [vmem:[%s7 + $0x3] sm:$0x1]
          %v771 = vld [vmem:[%s7 + $0x4] sm:$0x1]
          %v772 = vrot.slane %v765, 4
          %v773 = vadd.f32 %v765, %v772
          %v774 = vrot.slane %v773, 2
          %v775 = vadd.f32 %v773, %v774
          %v776 = vrot.slane %v775, 1
          %v777 = vadd.f32 %v775, %v776
          %v778 = vmul.f32 %v765, %v765
          %v779 = vrot.slane %v778, 4
          %v780 = vadd.f32 %v778, %v779
          %v781 = vrot.slane %v780, 2
          %v782 = vadd.f32 %v780, %v781
          %v783 = vrot.slane %v782, 1
          %v784 = vadd.f32 %v782, %v783
          %v785 = vmul.f32 %v777, 0.125
          %v786 = vmul.f32 %v784, 0.125
          %v787 = vmul.f32 %v785, %v785
          %v788 = vsub.f32 %v786, %v787
          %v789 = vmax.f32 %v788, 0.0
          %v790 = vadd.f32 %v789, 1e-05
          %v791 = vrsqrt.pop %v790
          %v792 = vmul.f32 %v791, %v770
          %v793 = vsub.f32 0.0, %v785
          %v794 = vmul.f32 %v793, %v792
          %v795 = vadd.f32 %v794, %v771
          %v796 = vlaneseq
          %v797 = vshrl.u32 %v796, 7
          %v798 = vsub.s32 0, %v797
          %v799 = vrot.slane %v792, %v798
          %v800 = vmul.f32 %v765, %v799
          %v801 = vlaneseq
          %v802 = vshrl.u32 %v801, 7
          %v803 = vsub.s32 0, %v802
          %v804 = vrot.slane %v795, %v803
          %v805 = vadd.f32 %v800, %v804
          %v806 = vmax.f32 %v805, 0.0
          %v807 = vpack.c.bf16 %v806, %v806
          %v808 = vld [vmem:[#allocation8] sm:$0xf]
          %v809 = vld [vmem:[#allocation8 + $0x4] sm:$0xf]
          %v810 = vld [vmem:[#allocation8 + $0x8] sm:$0xf]
          %v811 = vld [vmem:[#allocation8 + $0xc] sm:$0xf]
          %v812 = vld [vmem:[#allocation8 + $0x10] sm:$0xf]
          %v813 = vld [vmem:[#allocation8 + $0x14] sm:$0xf]
          %v814 = vld [vmem:[#allocation8 + $0x18] sm:$0xf]
          %v815 = vld [vmem:[#allocation8 + $0x1c] sm:$0xf]
          %v816 = vld [vmem:[#allocation8 + $0x20] sm:$0xf]
          %v817 = vld [vmem:[#allocation8 + $0x24] sm:$0xf]
          %v818 = vld [vmem:[#allocation8 + $0x28] sm:$0xf]
          %v819 = vld [vmem:[#allocation8 + $0x2c] sm:$0xf]
          %v820 = vld [vmem:[#allocation8 + $0x30] sm:$0xf]
          %v821 = vld [vmem:[#allocation8 + $0x34] sm:$0xf]
          %v822 = vld [vmem:[#allocation8 + $0x38] sm:$0xf]
          %v823 = vld [vmem:[#allocation8 + $0x3c] sm:$0xf]
          %v824 = vld [vmem:[%s7 + $0x5] sm:$0x1]
          %v826 = vlaneseq
          %v827 = vshrl.u32 %v826, 7
          %v828 = vsub.s32 0, %v827
          %v829 = vrot.slane %v824, %v828
          %v847 = vunpack.c.l.b16 %v808
          %v848 = vunpack.c.l.b16 %v809
          %v849 = vunpack.c.l.b16 %v810
          %v850 = vunpack.c.l.b16 %v811
          %v851 = vunpack.c.l.b16 %v812
          %v852 = vunpack.c.l.b16 %v813
          %v853 = vunpack.c.l.b16 %v814
          %v854 = vunpack.c.l.b16 %v815
          %v855 = vunpack.c.l.b16 %v816
          %v856 = vunpack.c.l.b16 %v817
          %v857 = vunpack.c.l.b16 %v818
          %v858 = vunpack.c.l.b16 %v819
          %v859 = vunpack.c.l.b16 %v820
          %v860 = vunpack.c.l.b16 %v821
          %v861 = vunpack.c.l.b16 %v822
          %v862 = vunpack.c.l.b16 %v823
          %v863 = vpack.c.b16 %v848, %v847
          %v864 = vpack.c.b16 %v850, %v849
          %v865 = vpack.c.b16 %v852, %v851
          %v866 = vpack.c.b16 %v854, %v853
          %v867 = vpack.c.b16 %v856, %v855
          %v868 = vpack.c.b16 %v858, %v857
          %v869 = vpack.c.b16 %v860, %v859
          %v870 = vpack.c.b16 %v862, %v861
          %879 = vmatprep.subr.bf16.mxu0 0
          %880 = vmatpush1.bf16.msra.mxu0 %v870
          %881 = vmatprep.subr.bf16.mxu0 0
          %882 = vmatpush1.bf16.msra.mxu0 %v869
          %883 = vmatprep.subr.bf16.mxu0 0
          %884 = vmatpush1.bf16.msra.mxu0 %v868
          %885 = vmatprep.subr.bf16.mxu0 0
          %886 = vmatpush1.bf16.msra.mxu0 %v867
          %887 = vmatprep.subr.bf16.mxu0 0
          %888 = vmatpush1.bf16.msra.mxu0 %v866
          %889 = vmatprep.subr.bf16.mxu0 0
          %890 = vmatpush1.bf16.msra.mxu0 %v865
          %891 = vmatprep.subr.bf16.mxu0 0
          %892 = vmatpush1.bf16.msra.mxu0 %v864
          %893 = vmatprep.subr.bf16.mxu0 0
          %894 = vmatpush1.bf16.msra.mxu0 %v863
          %895 = vmatprep.subr.bf16.mxu0 0
          %896 = vmatpush2.bf16.msra.mxu0 0
          %897 = vmatprep.subr.bf16.mxu0 0
          %898 = vmatpush2.bf16.msra.mxu0 0
          %899 = vmatprep.subr.bf16.mxu0 0
          %900 = vmatpush2.bf16.msra.mxu0 0
          %901 = vmatprep.subr.bf16.mxu0 0
          %902 = vmatpush2.bf16.msra.mxu0 0
          %903 = vmatprep.subr.bf16.mxu0 0
          %904 = vmatpush2.bf16.msra.mxu0 0
          %905 = vmatprep.subr.bf16.mxu0 0
          %906 = vmatpush2.bf16.msra.mxu0 0
          %907 = vmatprep.subr.bf16.mxu0 0
          %908 = vmatpush2.bf16.msra.mxu0 0
          %909 = vmatprep.subr.bf16.mxu0 0
          %910 = vmatpush2.bf16.msra.mxu0 0
          %911 = vmatprep.mubr.bf16.mxu0 0
          %912 = vmatmul.mubr.bf16.gmra.mxu0 %v807
          %v913 = vpop.f32.mrf.mxu0
          %v914 = vadd.f32 %v829, %v913
          %v915 = vpop.f32.mrf.mxu0
          %v916 = vpop.f32.mrf.mxu0
          %v917 = vpop.f32.mrf.mxu0
          %918 = vdwg.mxu0
          %v919 = vrot.slane %v914, 4
          %v920 = vadd.f32 %v914, %v919
          %v921 = vrot.slane %v920, 2
          %v922 = vadd.f32 %v920, %v921
          %v923 = vrot.slane %v922, 1
          %v924 = vadd.f32 %v922, %v923
          %v925 = vmul.f32 %v914, %v914
          %v926 = vrot.slane %v925, 4
          %v927 = vadd.f32 %v925, %v926
          %v928 = vrot.slane %v927, 2
          %v929 = vadd.f32 %v927, %v928
          %v930 = vrot.slane %v929, 1
          %v931 = vadd.f32 %v929, %v930
          %v932 = vmul.f32 %v924, 0.125
          %v933 = vmul.f32 %v931, 0.125
          %v934 = vmul.f32 %v932, %v932
          %v935 = vsub.f32 %v933, %v934
          %v936 = vmax.f32 %v935, 0.0
          %v937 = vadd.f32 %v936, 1e-05
          %v938 = vrsqrt.pop %v937
          %v939 = vsub.f32 0.0, %v932
          %v940 = vmul.f32 %v939, %v938
          %v941 = vmul.f32 %v914, %v938
          %v942 = vadd.f32 %v941, %v940
          %v943 = vpack.c.bf16 %v942, %v942
          %v944 = vld [vmem:[#allocation9] sm:$0xf]
          %v945 = vld [vmem:[#allocation9 + $0x4] sm:$0xf]
          %v946 = vld [vmem:[#allocation9 + $0x8] sm:$0xf]
          %v947 = vld [vmem:[#allocation9 + $0xc] sm:$0xf]
          %v948 = vld [vmem:[#allocation9 + $0x10] sm:$0xf]
          %v949 = vld [vmem:[#allocation9 + $0x14] sm:$0xf]
          %v950 = vld [vmem:[#allocation9 + $0x18] sm:$0xf]
          %v951 = vld [vmem:[#allocation9 + $0x1c] sm:$0xf]
          %v952 = vld [vmem:[#allocation9 + $0x20] sm:$0xf]
          %v953 = vld [vmem:[#allocation9 + $0x24] sm:$0xf]
          %v954 = vld [vmem:[#allocation9 + $0x28] sm:$0xf]
          %v955 = vld [vmem:[#allocation9 + $0x2c] sm:$0xf]
          %v956 = vld [vmem:[#allocation9 + $0x30] sm:$0xf]
          %v957 = vld [vmem:[#allocation9 + $0x34] sm:$0xf]
          %v958 = vld [vmem:[#allocation9 + $0x38] sm:$0xf]
          %v959 = vld [vmem:[#allocation9 + $0x3c] sm:$0xf]
          %v976 = vunpack.c.l.b16 %v944
          %v977 = vunpack.c.l.b16 %v945
          %v978 = vunpack.c.l.b16 %v946
          %v979 = vunpack.c.l.b16 %v947
          %v980 = vunpack.c.l.b16 %v948
          %v981 = vunpack.c.l.b16 %v949
          %v982 = vunpack.c.l.b16 %v950
          %v983 = vunpack.c.l.b16 %v951
          %v984 = vunpack.c.l.b16 %v952
          %v985 = vunpack.c.l.b16 %v953
          %v986 = vunpack.c.l.b16 %v954
          %v987 = vunpack.c.l.b16 %v955
          %v988 = vunpack.c.l.b16 %v956
          %v989 = vunpack.c.l.b16 %v957
          %v990 = vunpack.c.l.b16 %v958
          %v991 = vunpack.c.l.b16 %v959
          %v992 = vpack.c.b16 %v977, %v976
          %v993 = vpack.c.b16 %v979, %v978
          %v994 = vpack.c.b16 %v981, %v980
          %v995 = vpack.c.b16 %v983, %v982
          %v996 = vpack.c.b16 %v985, %v984
          %v997 = vpack.c.b16 %v987, %v986
          %v998 = vpack.c.b16 %v989, %v988
          %v999 = vpack.c.b16 %v991, %v990
          %1008 = vmatprep.subr.bf16.mxu0 0
          %1009 = vmatpush1.bf16.msra.mxu0 %v999
          %1010 = vmatprep.subr.bf16.mxu0 0
          %1011 = vmatpush1.bf16.msra.mxu0 %v998
          %1012 = vmatprep.subr.bf16.mxu0 0
          %1013 = vmatpush1.bf16.msra.mxu0 %v997
          %1014 = vmatprep.subr.bf16.mxu0 0
          %1015 = vmatpush1.bf16.msra.mxu0 %v996
          %1016 = vmatprep.subr.bf16.mxu0 0
          %1017 = vmatpush1.bf16.msra.mxu0 %v995
          %1018 = vmatprep.subr.bf16.mxu0 0
          %1019 = vmatpush1.bf16.msra.mxu0 %v994
          %1020 = vmatprep.subr.bf16.mxu0 0
          %1021 = vmatpush1.bf16.msra.mxu0 %v993
          %1022 = vmatprep.subr.bf16.mxu0 0
          %1023 = vmatpush1.bf16.msra.mxu0 %v992
          %1024 = vmatprep.subr.bf16.mxu0 0
          %1025 = vmatpush2.bf16.msra.mxu0 0
          %1026 = vmatprep.subr.bf16.mxu0 0
          %1027 = vmatpush2.bf16.msra.mxu0 0
          %1028 = vmatprep.subr.bf16.mxu0 0
          %1029 = vmatpush2.bf16.msra.mxu0 0
          %1030 = vmatprep.subr.bf16.mxu0 0
          %1031 = vmatpush2.bf16.msra.mxu0 0
          %1032 = vmatprep.subr.bf16.mxu0 0
          %1033 = vmatpush2.bf16.msra.mxu0 0
          %1034 = vmatprep.subr.bf16.mxu0 0
          %1035 = vmatpush2.bf16.msra.mxu0 0
          %1036 = vmatprep.subr.bf16.mxu0 0
          %1037 = vmatpush2.bf16.msra.mxu0 0
          %1038 = vmatprep.subr.bf16.mxu0 0
          %1039 = vmatpush2.bf16.msra.mxu0 0
          %1040 = vmatprep.mubr.bf16.mxu0 0
          %1041 = vmatmul.mubr.bf16.gmra.mxu0 %v943
          %v1042 = vpop.f32.mrf.mxu0
          %v1043 = vadd.f32 0.0, %v1042
          %v1044 = vpop.f32.mrf.mxu0
          %v1045 = vpop.f32.mrf.mxu0
          %v1046 = vpop.f32.mrf.mxu0
          %1047 = vdwg.mxu0
          %v1048 = vld [vmem:[%s7 + $0x6] sm:$0x1]
          %v1049 = vld [vmem:[%s7 + $0x7] sm:$0x1]
          %v1050 = vrot.slane %v1043, 4
          %v1051 = vadd.f32 %v1043, %v1050
          %v1052 = vrot.slane %v1051, 2
          %v1053 = vadd.f32 %v1051, %v1052
          %v1054 = vrot.slane %v1053, 1
          %v1055 = vadd.f32 %v1053, %v1054
          %v1056 = vmul.f32 %v1043, %v1043
          %v1057 = vrot.slane %v1056, 4
          %v1058 = vadd.f32 %v1056, %v1057
          %v1059 = vrot.slane %v1058, 2
          %v1060 = vadd.f32 %v1058, %v1059
          %v1061 = vrot.slane %v1060, 1
          %v1062 = vadd.f32 %v1060, %v1061
          %v1063 = vmul.f32 %v1055, 0.125
          %v1064 = vmul.f32 %v1062, 0.125
          %v1065 = vmul.f32 %v1063, %v1063
          %v1066 = vsub.f32 %v1064, %v1065
          %v1067 = vmax.f32 %v1066, 0.0
          %v1068 = vadd.f32 %v1067, 1e-05
          %v1069 = vrsqrt.pop %v1068
          %v1070 = vmul.f32 %v1069, %v1048
          %v1071 = vsub.f32 0.0, %v1063
          %v1072 = vmul.f32 %v1071, %v1070
          %v1073 = vadd.f32 %v1072, %v1049
          %v1074 = vlaneseq
          %v1075 = vshrl.u32 %v1074, 7
          %v1076 = vsub.s32 0, %v1075
          %v1077 = vrot.slane %v1070, %v1076
          %v1078 = vmul.f32 %v1043, %v1077
          %v1079 = vlaneseq
          %v1080 = vshrl.u32 %v1079, 7
          %v1081 = vsub.s32 0, %v1080
          %v1082 = vrot.slane %v1073, %v1081
          %v1083 = vadd.f32 %v1078, %v1082
          %v1084 = vmax.f32 %v1083, 0.0
          %v1085 = vpack.c.bf16 %v1084, %v1084
          %v1086 = vld [vmem:[#allocation11] sm:$0xf]
          %v1087 = vld [vmem:[#allocation11 + $0x4] sm:$0xf]
          %v1088 = vld [vmem:[#allocation11 + $0x8] sm:$0xf]
          %v1089 = vld [vmem:[#allocation11 + $0xc] sm:$0xf]
          %v1090 = vld [vmem:[#allocation11 + $0x10] sm:$0xf]
          %v1091 = vld [vmem:[#allocation11 + $0x14] sm:$0xf]
          %v1092 = vld [vmem:[#allocation11 + $0x18] sm:$0xf]
          %v1093 = vld [vmem:[#allocation11 + $0x1c] sm:$0xf]
          %v1094 = vld [vmem:[#allocation11 + $0x20] sm:$0xf]
          %v1095 = vld [vmem:[#allocation11 + $0x24] sm:$0xf]
          %v1096 = vld [vmem:[#allocation11 + $0x28] sm:$0xf]
          %v1097 = vld [vmem:[#allocation11 + $0x2c] sm:$0xf]
          %v1098 = vld [vmem:[#allocation11 + $0x30] sm:$0xf]
          %v1099 = vld [vmem:[#allocation11 + $0x34] sm:$0xf]
          %v1100 = vld [vmem:[#allocation11 + $0x38] sm:$0xf]
          %v1101 = vld [vmem:[#allocation11 + $0x3c] sm:$0xf]
          %v1102 = vld [vmem:[%s7 + $0x8] sm:$0x1]
          %v1104 = vlaneseq
          %v1105 = vshrl.u32 %v1104, 7
          %v1106 = vsub.s32 0, %v1105
          %v1107 = vrot.slane %v1102, %v1106
          %v1125 = vunpack.c.l.b16 %v1086
          %v1126 = vunpack.c.l.b16 %v1087
          %v1127 = vunpack.c.l.b16 %v1088
          %v1128 = vunpack.c.l.b16 %v1089
          %v1129 = vunpack.c.l.b16 %v1090
          %v1130 = vunpack.c.l.b16 %v1091
          %v1131 = vunpack.c.l.b16 %v1092
          %v1132 = vunpack.c.l.b16 %v1093
          %v1133 = vunpack.c.l.b16 %v1094
          %v1134 = vunpack.c.l.b16 %v1095
          %v1135 = vunpack.c.l.b16 %v1096
          %v1136 = vunpack.c.l.b16 %v1097
          %v1137 = vunpack.c.l.b16 %v1098
          %v1138 = vunpack.c.l.b16 %v1099
          %v1139 = vunpack.c.l.b16 %v1100
          %v1140 = vunpack.c.l.b16 %v1101
          %v1141 = vpack.c.b16 %v1126, %v1125
          %v1142 = vpack.c.b16 %v1128, %v1127
          %v1143 = vpack.c.b16 %v1130, %v1129
          %v1144 = vpack.c.b16 %v1132, %v1131
          %v1145 = vpack.c.b16 %v1134, %v1133
          %v1146 = vpack.c.b16 %v1136, %v1135
          %v1147 = vpack.c.b16 %v1138, %v1137
          %v1148 = vpack.c.b16 %v1140, %v1139
          %1157 = vmatprep.subr.bf16.mxu0 0
          %1158 = vmatpush1.bf16.msra.mxu0 %v1148
          %1159 = vmatprep.subr.bf16.mxu0 0
          %1160 = vmatpush1.bf16.msra.mxu0 %v1147
          %1161 = vmatprep.subr.bf16.mxu0 0
          %1162 = vmatpush1.bf16.msra.mxu0 %v1146
          %1163 = vmatprep.subr.bf16.mxu0 0
          %1164 = vmatpush1.bf16.msra.mxu0 %v1145
          %1165 = vmatprep.subr.bf16.mxu0 0
          %1166 = vmatpush1.bf16.msra.mxu0 %v1144
          %1167 = vmatprep.subr.bf16.mxu0 0
          %1168 = vmatpush1.bf16.msra.mxu0 %v1143
          %1169 = vmatprep.subr.bf16.mxu0 0
          %1170 = vmatpush1.bf16.msra.mxu0 %v1142
          %1171 = vmatprep.subr.bf16.mxu0 0
          %1172 = vmatpush1.bf16.msra.mxu0 %v1141
          %1173 = vmatprep.subr.bf16.mxu0 0
          %1174 = vmatpush2.bf16.msra.mxu0 0
          %1175 = vmatprep.subr.bf16.mxu0 0
          %1176 = vmatpush2.bf16.msra.mxu0 0
          %1177 = vmatprep.subr.bf16.mxu0 0
          %1178 = vmatpush2.bf16.msra.mxu0 0
          %1179 = vmatprep.subr.bf16.mxu0 0
          %1180 = vmatpush2.bf16.msra.mxu0 0
          %1181 = vmatprep.subr.bf16.mxu0 0
          %1182 = vmatpush2.bf16.msra.mxu0 0
          %1183 = vmatprep.subr.bf16.mxu0 0
          %1184 = vmatpush2.bf16.msra.mxu0 0
          %1185 = vmatprep.subr.bf16.mxu0 0
          %1186 = vmatpush2.bf16.msra.mxu0 0
          %1187 = vmatprep.subr.bf16.mxu0 0
          %1188 = vmatpush2.bf16.msra.mxu0 0
          %1189 = vmatprep.mubr.bf16.mxu0 0
          %1190 = vmatmul.mubr.bf16.gmra.mxu0 %v1085
          %v1191 = vpop.f32.mrf.mxu0
          %v1192 = vadd.f32 %v1107, %v1191
          %v1193 = vpop.f32.mrf.mxu0
          %v1194 = vpop.f32.mrf.mxu0
          %v1195 = vpop.f32.mrf.mxu0
          %1196 = vdwg.mxu0
          %1197 = vst [vmem:[%s433] sm:$0xff] %v1192
          %1198 = vst [vmem:[%s440] sm:$0xff] %v942
        $region80: #{tpu_custom_call.1} parent=51 // pred_fallthru
          _
        %s1199 = sand.u32 %s230, 1
        %s1200 = scalar_lea.sflag [#allocation5], %s1199
        %s1201 = sand.u32 %s230, 1
        %s1202 = smul.addr %s1201, 8
        %s1203 = scalar_lea.vmem [#allocation12], %s1202
        %s1204 = sand.u32 %s256, 1
        %s1205 = scalar_lea.sflag [#allocation14], %s1204
        %s1206 = sand.u32 %s256, 1
        %s1207 = smul.addr %s1206, 8
        %s1208 = scalar_lea.vmem [#allocation13], %s1207
        // Predicated region
        $region81: #{tpu_custom_call.1} parent=51 // pred_check
          %p1209 = pneg %p240
        $region82: #{tpu_custom_call.1} parent=51 // pred_check_branch
          %1211 = sbr.rel (%p1209) target = $region84
        $region83: #{tpu_custom_call.1} parent=51 // pred_region
          %s1213 = ssub.s32 128, 128
          %1214 = vsyncadd %s1200, %s1213
          %s1215 = smul.addr %s34, 128
          %s1216 = scalar_lea.hbm %s8, %s1215
          %s1218 = sshll.u32 %s1203, 4
          %s1219 = int_to_ptr.vmem [resolvable:$true] %s1218
          %1221 = dma.vmem_to_hbm [thread:$0]  %s1219, 128, %s1216, %s1200
        $region84: #{tpu_custom_call.1} parent=51 // pred_fallthru
          _
        // Predicated region
        $region85: #{tpu_custom_call.1} parent=51 // pred_check
          %p1222 = pneg %p266
        $region86: #{tpu_custom_call.1} parent=51 // pred_check_branch
          %1224 = sbr.rel (%p1222) target = $region88
        $region87: #{tpu_custom_call.1} parent=51 // pred_region
          %s1226 = ssub.s32 128, 128
          %1227 = vsyncadd %s1205, %s1226
          %s1228 = smul.addr %s34, 128
          %s1229 = scalar_lea.hbm %s9, %s1228
          %s1231 = sshll.u32 %s1208, 4
          %s1232 = int_to_ptr.vmem [resolvable:$true] %s1231
          %1234 = dma.vmem_to_hbm [thread:$0]  %s1232, 128, %s1229, %s1205
        $region88: #{tpu_custom_call.1} parent=51 // pred_fallthru
          _
      $region52: #{tpu_custom_call.1} parent=5 // pred_fallthru
        _
      %p1235 = scmp.le.s32.totalorder 2, %s25
      // Predicated region
      $region89: #{tpu_custom_call.1} parent=5 // pred_check
        %p1236 = pneg %p1235
      $region90: #{tpu_custom_call.1} parent=5 // pred_check_branch
        %1238 = sbr.rel (%p1236) target = $region92
      $region91: #{tpu_custom_call.1} parent=5 // pred_region
        %s1239 = ssub.s32 %s25, 2
        // Predicated region
        $region93: #{tpu_custom_call.1} parent=91 // pred_check
          %p1240 = pneg %p246
        $region94: #{tpu_custom_call.1} parent=91 // pred_check_branch
          %1242 = sbr.rel (%p1240) target = $region96
        $region95: #{tpu_custom_call.1} parent=91 // pred_region
          %s1243 = sand.u32 %s231, 1
          %s1244 = scalar_lea.sflag [#allocation5], %s1243
          %s1245 = sand.u32 %s231, 1
          %s1246 = smul.addr %s1245, 8
          %s1247 = scalar_lea.vmem [#allocation12], %s1246
          %1248 = dma.done %s1244, 128
        $region96: #{tpu_custom_call.1} parent=91 // pred_fallthru
          _
        // Predicated region
        $region97: #{tpu_custom_call.1} parent=91 // pred_check
          %p1249 = pneg %p272
        $region98: #{tpu_custom_call.1} parent=91 // pred_check_branch
          %1251 = sbr.rel (%p1249) target = $region100
        $region99: #{tpu_custom_call.1} parent=91 // pred_region
          %s1252 = sand.u32 %s257, 1
          %s1253 = scalar_lea.sflag [#allocation14], %s1252
          %s1254 = sand.u32 %s257, 1
          %s1255 = smul.addr %s1254, 8
          %s1256 = scalar_lea.vmem [#allocation13], %s1255
          %1257 = dma.done %s1253, 128
        $region100: #{tpu_custom_call.1} parent=91 // pred_fallthru
          _
      $region92: #{tpu_custom_call.1} parent=5 // pred_fallthru
        _
    $region6: #{tpu_custom_call.1} parent=1 // loop_footer
      %s29 = sadd.s32 1, %s25
    $region7: #{tpu_custom_call.1} parent=1 // loop_footer_branch
      %24 = sbr.rel target = $region3
    $region8: #{tpu_custom_call.1} parent=1 // loop_exit
      _
    %1258 = vsyncpa [#allocation4], 1
    %s1259 = scalar_lea.sflag [#allocation4], 1
    %1260 = vsyncpa %s1259, 1
    %1261 = vsyncpa [#allocation7], 1
    %1262 = vsyncpa [#allocation10], 1
    %1263 = vsyncpa [#allocation5], 1
    %s1264 = scalar_lea.sflag [#allocation5], 1
    %1265 = vsyncpa %s1264, 1
    %1266 = vsyncpa [#allocation14], 1
    %s1267 = scalar_lea.sflag [#allocation14], 1
    %1268 = vsyncpa %s1267, 1

// kernel: tpu_custom_call.1
$region0: #{tpu_custom_call.1}
  #allocation0 [shape = 'u32[]', space=smem, size = 0x4, offset = 0x4, fixed_abs, tag = 'smem constant byte address 0x4 - core index']
  #allocation1 [shape = 'u32[144,128]{1,0:T(1,128)}', space=vmem, size = 0x12000, scoped, tag = 'internal scratch']
  #allocation2 [shape = 'f32[8,128]{1,0:T(8,128)}', space=vmem, size = 0x1000, scoped, tag = 'scratch operand']
  %s0 = inlined_call_operand.vmem [shape: bf16[2,8,4], index: 0, kind: input, shape index: {}]
  %s1 = inlined_call_operand.vmem [shape: bf16[4,128], index: 1, kind: input, shape index: {}]
  %s2 = inlined_call_operand.hbm [shape: bf16[128,128], index: 2, kind: input, shape index: {}]
  %s3 = inlined_call_operand.hbm [shape: bf16[128,128], index: 3, kind: input, shape index: {}]
  %s4 = inlined_call_operand.hbm [shape: bf16[128,128], index: 4, kind: input, shape index: {}]
  %s5 = inlined_call_operand.hbm [shape: bf16[128,128], index: 5, kind: input, shape index: {}]
  %s6 = inlined_call_operand.hbm [shape: bf16[128,128], index: 6, kind: input, shape index: {}]
  %s7 = inlined_call_operand.vmem [shape: f32[1,1152], index: 7, kind: input, shape index: {}]
  %s8 = inlined_call_operand.hbm [shape: f32[2,8,128], index: 8, kind: output, shape index: {0}]
  %s9 = inlined_call_operand.hbm [shape: f32[2,8,128], index: 9, kind: output, shape index: {1}]
  %10 = xla_tuple %s8, %s9
  %s11 = sld [smem:[#allocation0]]
  $region101: #{tpu_custom_call.1} parent=0
    _
  %s13 = ssub.s32 1, %s11
  %s14 = scalar_select 0, %s13, %s11
  $region1: #{tpu_custom_call.1} parent=0
    #allocation3 [shape = 'u8[32768]{0}', space=vmem, size = 0x8000, scoped, tag = 'input window, operand 2, single buffered']
    #allocation4 [shape = 's32[2]{0}', space=sflag, size = 0x8, scoped, tag = 'scoped memory for tpu_custom_call.1']
    #allocation5 [shape = 's32[2]{0}', space=sflag, size = 0x8, scoped, tag = 'scoped memory for tpu_custom_call.1']
    #allocation6 [shape = 'u8[32768]{0}', space=vmem, size = 0x8000, scoped, tag = 'input window, operand 3, single buffered']
    #allocation7 [shape = 's32[1]{0}', space=sflag, size = 0x4, scoped, tag = 'scoped memory for tpu_custom_call.1']
    #allocation8 [shape = 'u8[32768]{0}', space=vmem, size = 0x8000, scoped, tag = 'input window, operand 4, single buffered']
    #allocation9 [shape = 'u8[32768]{0}', space=vmem, size = 0x8000, scoped, tag = 'input window, operand 5, single buffered']
    #allocation10 [shape = 's32[1]{0}', space=sflag, size = 0x4, scoped, tag = 'scoped memory for tpu_custom_call.1']
    #allocation11 [shape = 'u8[32768]{0}', space=vmem, size = 0x8000, scoped, tag = 'input window, operand 6, single buffered']
    #allocation12 [shape = 'u8[8192]{0}', space=vmem, size = 0x2000, scoped, tag = 'output window, operand 0']
    #allocation13 [shape = 'u8[8192]{0}', space=vmem, size = 0x2000, scoped, tag = 'output window, operand 1']
    #allocation14 [shape = 's32[2]{0}', space=sflag, size = 0x8, scoped, tag = 'scoped memory for tpu_custom_call.1']
    %15 = vsyncpa [#allocation4], 0
    %16 = vsyncpa [#allocation7], 0
    %17 = vsyncpa [#allocation10], 0
    %18 = vsyncpa [#allocation5], 0
    %s19 = scalar_lea.sflag [#allocation5], 1
    %20 = vsyncpa %s19, 0
    %21 = vsyncpa [#allocation14], 0
    %s22 = scalar_lea.sflag [#allocation14], 1
    %23 = vsyncpa %s22, 0
    loop: start=0, step=1, limit=4
    $region2: #{tpu_custom_call.1} parent=1 // loop_pre_header
      _
    $region3: #{tpu_custom_call.1} parent=1 // loop_header
      %s25 = sphi 0, %s29
      %p26 = scmp.ge.s32.totalorder %s25, 4
      %s32 = sphi 0, %s44
      %s33 = sphi 0, %s40
      %s34 = sphi 0, %s32
      %s35 = sphi 0, %s33
      %s36 = sphi 0, %s34
      %s37 = sphi 0, %s35
      %s49 = sphi 0, %s51
      %s52 = sphi 0, %s49
      %s53 = sphi 0, %s52
      %s69 = sphi 0, %s53
      %s75 = sphi 0, %s77
      %s78 = sphi 0, %s75
      %s79 = sphi 0, %s78
      %s95 = sphi 0, %s79
      %s99 = sphi 0, %s99
      %s101 = sphi 0, %s99
      %s102 = sphi 0, %s101
      %s116 = sphi 0, %s102
      %s120 = sphi 0, %s120
      %s122 = sphi 0, %s120
      %s123 = sphi 0, %s122
      %s137 = sphi 0, %s123
      %s141 = sphi 0, %s141
      %s143 = sphi 0, %s141
      %s144 = sphi 0, %s143
      %s158 = sphi 0, %s144
      %s162 = sphi 0, %s162
      %s164 = sphi 0, %s162
      %s165 = sphi 0, %s164
      %s179 = sphi 0, %s165
      %s183 = sphi 0, %s183
      %s185 = sphi 0, %s183
      %s186 = sphi 0, %s185
      %s200 = sphi 0, %s186
      %s204 = sphi 0, %s204
      %s206 = sphi 0, %s204
      %s207 = sphi 0, %s206
      %s221 = sphi 0, %s207
      %s227 = sphi 0, %s229
      %s230 = sphi 0, %s227
      %s231 = sphi 0, %s230
      %s247 = sphi 0, %s231
      %s253 = sphi 0, %s255
      %s256 = sphi 0, %s253
      %s257 = sphi 0, %s256
      %s273 = sphi 0, %s257
    $region4: #{tpu_custom_call.1} parent=1 // loop_header_branch
      %28 = sbr.rel (%p26) target = $region8
    $region5: #{tpu_custom_call.1} parent=1 // loop_body
      %s30 = ssub.s32 %s25, 1
      %s31 = ssub.s32 %s25, 2
      %s38 = sadd.s32 1, %s33
      %p39 = scmp.ge.s32.totalorder %s38, 1
      %s40 = scalar_select %p39, 0, %s38
      %s41 = sadd.s32 1, %s32
      %s42 = scalar_select %p39, %s41, %s32
      %p43 = scmp.ge.s32.totalorder %s42, 2
      %s44 = scalar_select %p43, 0, %s42
      %s45 = ssub.s32 %s32, %s44
      %s46 = ssub.s32 %s33, %s40
      %s47 = sor.u32 %s45, %s46
      %p48 = scmp.eq.s32.totalorder %s47, 0
      %s50 = sadd.s32 %s49, 1
      %s51 = scalar_select %p48, %s49, %s50
      %p54 = pneg %p48
      %p55 = scmp.eq.s32.totalorder %s25, 1
      %p56 = por %p54, %p55
      %p57 = scmp.ne.s32.totalorder %s49, %s52
      %p58 = scmp.eq.s32.totalorder %s25, 0
      %p59 = por %p57, %p58
      %p60 = scmp.ne.s32.totalorder %s49, %s52
      %p61 = scmp.eq.s32.totalorder %s30, 1
      %p62 = por %p60, %p61
      %p63 = scmp.ne.s32.totalorder %s52, %s53
      %p64 = scmp.eq.s32.totalorder %s30, 0
      %p65 = por %p63, %p64
      %p66 = scmp.ne.s32.totalorder %s52, %s53
      %p67 = scmp.eq.s32.totalorder %s31, 1
      %p68 = por %p66, %p67
      %p70 = scmp.ne.s32.totalorder %s53, %s69
      %p71 = scmp.eq.s32.totalorder %s31, 0
      %p72 = por %p70, %p71
      %s73 = ssub.s32 %s33, %s40
      %p74 = scmp.eq.s32.totalorder %s73, 0
      %s76 = sadd.s32 %s75, 1
      %s77 = scalar_select %p74, %s75, %s76
      %p80 = pneg %p74
      %p81 = scmp.eq.s32.totalorder %s25, 1
      %p82 = por %p80, %p81
      %p83 = scmp.ne.s32.totalorder %s75, %s78
      %p84 = scmp.eq.s32.totalorder %s25, 0
      %p85 = por %p83, %p84
      %p86 = scmp.ne.s32.totalorder %s75, %s78
      %p87 = scmp.eq.s32.totalorder %s30, 1
      %p88 = por %p86, %p87
      %p89 = scmp.ne.s32.totalorder %s78, %s79
      %p90 = scmp.eq.s32.totalorder %s30, 0
      %p91 = por %p89, %p90
      %p92 = scmp.ne.s32.totalorder %s78, %s79
      %p93 = scmp.eq.s32.totalorder %s31, 1
      %p94 = por %p92, %p93
      %p96 = scmp.ne.s32.totalorder %s79, %s95
      %p97 = scmp.eq.s32.totalorder %s31, 0
      %p98 = por %p96, %p97
      %s100 = sadd.s32 %s99, 1
      %p103 = scmp.eq.s32.totalorder %s25, 1
      %p104 = scmp.ne.s32.totalorder %s99, %s101
      %p105 = scmp.eq.s32.totalorder %s25, 0
      %p106 = por %p104, %p105
      %p107 = scmp.ne.s32.totalorder %s99, %s101
      %p108 = scmp.eq.s32.totalorder %s30, 1
      %p109 = por %p107, %p108
      %p110 = scmp.ne.s32.totalorder %s101, %s102
      %p111 = scmp.eq.s32.totalorder %s30, 0
      %p112 = por %p110, %p111
      %p113 = scmp.ne.s32.totalorder %s101, %s102
      %p114 = scmp.eq.s32.totalorder %s31, 1
      %p115 = por %p113, %p114
      %p117 = scmp.ne.s32.totalorder %s102, %s116
      %p118 = scmp.eq.s32.totalorder %s31, 0
      %p119 = por %p117, %p118
      %s121 = sadd.s32 %s120, 1
      %p124 = scmp.eq.s32.totalorder %s25, 1
      %p125 = scmp.ne.s32.totalorder %s120, %s122
      %p126 = scmp.eq.s32.totalorder %s25, 0
      %p127 = por %p125, %p126
      %p128 = scmp.ne.s32.totalorder %s120, %s122
      %p129 = scmp.eq.s32.totalorder %s30, 1
      %p130 = por %p128, %p129
      %p131 = scmp.ne.s32.totalorder %s122, %s123
      %p132 = scmp.eq.s32.totalorder %s30, 0
      %p133 = por %p131, %p132
      %p134 = scmp.ne.s32.totalorder %s122, %s123
      %p135 = scmp.eq.s32.totalorder %s31, 1
      %p136 = por %p134, %p135
      %p138 = scmp.ne.s32.totalorder %s123, %s137
      %p139 = scmp.eq.s32.totalorder %s31, 0
      %p140 = por %p138, %p139
      %s142 = sadd.s32 %s141, 1
      %p145 = scmp.eq.s32.totalorder %s25, 1
      %p146 = scmp.ne.s32.totalorder %s141, %s143
      %p147 = scmp.eq.s32.totalorder %s25, 0
      %p148 = por %p146, %p147
      %p149 = scmp.ne.s32.totalorder %s141, %s143
      %p150 = scmp.eq.s32.totalorder %s30, 1
      %p151 = por %p149, %p150
      %p152 = scmp.ne.s32.totalorder %s143, %s144
      %p153 = scmp.eq.s32.totalorder %s30, 0
      %p154 = por %p152, %p153
      %p155 = scmp.ne.s32.totalorder %s143, %s144
      %p156 = scmp.eq.s32.totalorder %s31, 1
      %p157 = por %p155, %p156
      %p159 = scmp.ne.s32.totalorder %s144, %s158
      %p160 = scmp.eq.s32.totalorder %s31, 0
      %p161 = por %p159, %p160
      %s163 = sadd.s32 %s162, 1
      %p166 = scmp.eq.s32.totalorder %s25, 1
      %p167 = scmp.ne.s32.totalorder %s162, %s164
      %p168 = scmp.eq.s32.totalorder %s25, 0
      %p169 = por %p167, %p168
      %p170 = scmp.ne.s32.totalorder %s162, %s164
      %p171 = scmp.eq.s32.totalorder %s30, 1
      %p172 = por %p170, %p171
      %p173 = scmp.ne.s32.totalorder %s164, %s165
      %p174 = scmp.eq.s32.totalorder %s30, 0
      %p175 = por %p173, %p174
      %p176 = scmp.ne.s32.totalorder %s164, %s165
      %p177 = scmp.eq.s32.totalorder %s31, 1
      %p178 = por %p176, %p177
      %p180 = scmp.ne.s32.totalorder %s165, %s179
      %p181 = scmp.eq.s32.totalorder %s31, 0
      %p182 = por %p180, %p181
      %s184 = sadd.s32 %s183, 1
      %p187 = scmp.eq.s32.totalorder %s25, 1
      %p188 = scmp.ne.s32.totalorder %s183, %s185
      %p189 = scmp.eq.s32.totalorder %s25, 0
      %p190 = por %p188, %p189
      %p191 = scmp.ne.s32.totalorder %s183, %s185
      %p192 = scmp.eq.s32.totalorder %s30, 1
      %p193 = por %p191, %p192
      %p194 = scmp.ne.s32.totalorder %s185, %s186
      %p195 = scmp.eq.s32.totalorder %s30, 0
      %p196 = por %p194, %p195
      %p197 = scmp.ne.s32.totalorder %s185, %s186
      %p198 = scmp.eq.s32.totalorder %s31, 1
      %p199 = por %p197, %p198
      %p201 = scmp.ne.s32.totalorder %s186, %s200
      %p202 = scmp.eq.s32.totalorder %s31, 0
      %p203 = por %p201, %p202
      %s205 = sadd.s32 %s204, 1
      %p208 = scmp.eq.s32.totalorder %s25, 1
      %p209 = scmp.ne.s32.totalorder %s204, %s206
      %p210 = scmp.eq.s32.totalorder %s25, 0
      %p211 = por %p209, %p210
      %p212 = scmp.ne.s32.totalorder %s204, %s206
      %p213 = scmp.eq.s32.totalorder %s30, 1
      %p214 = por %p212, %p213
      %p215 = scmp.ne.s32.totalorder %s206, %s207
      %p216 = scmp.eq.s32.totalorder %s30, 0
      %p217 = por %p215, %p216
      %p218 = scmp.ne.s32.totalorder %s206, %s207
      %p219 = scmp.eq.s32.totalorder %s31, 1
      %p220 = por %p218, %p219
      %p222 = scmp.ne.s32.totalorder %s207, %s221
      %p223 = scmp.eq.s32.totalorder %s31, 0
      %p224 = por %p222, %p223
      %s225 = ssub.s32 %s32, %s44
      %p226 = scmp.eq.s32.totalorder %s225, 0
      %s228 = sadd.s32 %s227, 1
      %s229 = scalar_select %p226, %s227, %s228
      %p232 = pneg %p226
      %p233 = scmp.eq.s32.totalorder %s25, 1
      %p234 = por %p232, %p233
      %p235 = scmp.ne.s32.totalorder %s227, %s230
      %p236 = scmp.eq.s32.totalorder %s25, 0
      %p237 = por %p235, %p236
      %p238 = scmp.ne.s32.totalorder %s227, %s230
      %p239 = scmp.eq.s32.totalorder %s30, 1
      %p240 = por %p238, %p239
      %p241 = scmp.ne.s32.totalorder %s230, %s231
      %p242 = scmp.eq.s32.totalorder %s30, 0
      %p243 = por %p241, %p242
      %p244 = scmp.ne.s32.totalorder %s230, %s231
      %p245 = scmp.eq.s32.totalorder %s31, 1
      %p246 = por %p244, %p245
      %p248 = scmp.ne.s32.totalorder %s231, %s247
      %p249 = scmp.eq.s32.totalorder %s31, 0
      %p250 = por %p248, %p249
      %s251 = ssub.s32 %s32, %s44
      %p252 = scmp.eq.s32.totalorder %s251, 0
      %s254 = sadd.s32 %s253, 1
      %s255 = scalar_select %p252, %s253, %s254
      %p258 = pneg %p252
      %p259 = scmp.eq.s32.totalorder %s25, 1
      %p260 = por %p258, %p259
      %p261 = scmp.ne.s32.totalorder %s253, %s256
      %p262 = scmp.eq.s32.totalorder %s25, 0
      %p263 = por %p261, %p262
      %p264 = scmp.ne.s32.totalorder %s253, %s256
      %p265 = scmp.eq.s32.totalorder %s30, 1
      %p266 = por %p264, %p265
      %p267 = scmp.ne.s32.totalorder %s256, %s257
      %p268 = scmp.eq.s32.totalorder %s30, 0
      %p269 = por %p267, %p268
      %p270 = scmp.ne.s32.totalorder %s256, %s257
      %p271 = scmp.eq.s32.totalorder %s31, 1
      %p272 = por %p270, %p271
      %p274 = scmp.ne.s32.totalorder %s257, %s273
      %p275 = scmp.eq.s32.totalorder %s31, 0
      %p276 = por %p274, %p275
      %p277 = scmp.le.s32.totalorder 1, %s25
      %p278 = scmp.lt.s32.totalorder %s25, 3
      %p279 = pnand %p277, %p278
      %p280 = pneg %p279
      // Predicated region
      $region9: #{tpu_custom_call.1} parent=5 // pred_check
        _
      $region10: #{tpu_custom_call.1} parent=5 // pred_check_branch
        %282 = sbr.rel (%p279) target = $region12
      $region11: #{tpu_custom_call.1} parent=5 // pred_region
        %s283 = ssub.s32 %s25, 1
        // Predicated region
        $region13: #{tpu_custom_call.1} parent=11 // pred_check
          %p284 = pneg %p91
        $region14: #{tpu_custom_call.1} parent=11 // pred_check_branch
          %286 = sbr.rel (%p284) target = $region16
        $region15: #{tpu_custom_call.1} parent=11 // pred_region
          %p287 = scmp.lt.s32.totalorder %s35, 0
          %s288 = scalar_select %p287, %s35, 0
          %s289 = smul.addr %s288, 2
          %s290 = scalar_lea.vmem %s1, %s289
        $region16: #{tpu_custom_call.1} parent=11 // pred_fallthru
          _
        // Predicated region
        $region17: #{tpu_custom_call.1} parent=11 // pred_check
          %p291 = pneg %p112
        $region18: #{tpu_custom_call.1} parent=11 // pred_check_branch
          %293 = sbr.rel (%p291) target = $region20
        $region19: #{tpu_custom_call.1} parent=11 // pred_region
          %s295 = ssub.s32 1024, 1024
          %296 = vsyncadd [#allocation4], %s295
          %s297 = sshll.u32 [#allocation3], 4
          %s298 = int_to_ptr.vmem [resolvable:$true] %s297
          %303 = dma.hbm_to_vmem [thread:$0]  %s2, 1024, %s298, [#allocation4], 64, 64, 4
        $region20: #{tpu_custom_call.1} parent=11 // pred_fallthru
          _
        // Predicated region
        $region21: #{tpu_custom_call.1} parent=11 // pred_check
          %p304 = pneg %p133
        $region22: #{tpu_custom_call.1} parent=11 // pred_check_branch
          %306 = sbr.rel (%p304) target = $region24
        $region23: #{tpu_custom_call.1} parent=11 // pred_region
          %s308 = ssub.s32 1024, 1024
          %309 = vsyncadd [#allocation7], %s308
          %s310 = sshll.u32 [#allocation6], 4
          %s311 = int_to_ptr.vmem [resolvable:$true] %s310
          %316 = dma.hbm_to_vmem [thread:$0]  %s3, 1024, %s311, [#allocation7], 64, 64, 4
        $region24: #{tpu_custom_call.1} parent=11 // pred_fallthru
          _
        // Predicated region
        $region25: #{tpu_custom_call.1} parent=11 // pred_check
          %p317 = pneg %p154
        $region26: #{tpu_custom_call.1} parent=11 // pred_check_branch
          %319 = sbr.rel (%p317) target = $region28
        $region27: #{tpu_custom_call.1} parent=11 // pred_region
          %s321 = ssub.s32 1024, 1024
          %322 = vsyncadd [#allocation7], %s321
          %s323 = sshll.u32 [#allocation8], 4
          %s324 = int_to_ptr.vmem [resolvable:$true] %s323
          %329 = dma.hbm_to_vmem [thread:$0]  %s4, 1024, %s324, [#allocation7], 64, 64, 4
        $region28: #{tpu_custom_call.1} parent=11 // pred_fallthru
          _
        // Predicated region
        $region29: #{tpu_custom_call.1} parent=11 // pred_check
          %p330 = pneg %p175
        $region30: #{tpu_custom_call.1} parent=11 // pred_check_branch
          %332 = sbr.rel (%p330) target = $region32
        $region31: #{tpu_custom_call.1} parent=11 // pred_region
          %s334 = ssub.s32 1024, 1024
          %335 = vsyncadd [#allocation10], %s334
          %s336 = sshll.u32 [#allocation9], 4
          %s337 = int_to_ptr.vmem [resolvable:$true] %s336
          %342 = dma.hbm_to_vmem [thread:$0]  %s5, 1024, %s337, [#allocation10], 64, 64, 4
        $region32: #{tpu_custom_call.1} parent=11 // pred_fallthru
          _
        // Predicated region
        $region33: #{tpu_custom_call.1} parent=11 // pred_check
          %p343 = pneg %p196
        $region34: #{tpu_custom_call.1} parent=11 // pred_check_branch
          %345 = sbr.rel (%p343) target = $region36
        $region35: #{tpu_custom_call.1} parent=11 // pred_region
          %s347 = ssub.s32 1024, 1024
          %348 = vsyncadd [#allocation10], %s347
          %s349 = sshll.u32 [#allocation11], 4
          %s350 = int_to_ptr.vmem [resolvable:$true] %s349
          %355 = dma.hbm_to_vmem [thread:$0]  %s6, 1024, %s350, [#allocation10], 64, 64, 4
        $region36: #{tpu_custom_call.1} parent=11 // pred_fallthru
          _
        // Predicated region
        $region37: #{tpu_custom_call.1} parent=11 // pred_check
          %p356 = pneg %p217
        $region38: #{tpu_custom_call.1} parent=11 // pred_check_branch
          %358 = sbr.rel (%p356) target = $region40
        $region39: #{tpu_custom_call.1} parent=11 // pred_region
          _
        $region40: #{tpu_custom_call.1} parent=11 // pred_fallthru
          _
      $region12: #{tpu_custom_call.1} parent=5 // pred_fallthru
        _
      %p359 = scmp.lt.s32.totalorder %s25, 2
      // Predicated region
      $region41: #{tpu_custom_call.1} parent=5 // pred_check
        %p360 = pneg %p359
      $region42: #{tpu_custom_call.1} parent=5 // pred_check_branch
        %362 = sbr.rel (%p360) target = $region44
      $region43: #{tpu_custom_call.1} parent=5 // pred_region
        // Predicated region
        $region45: #{tpu_custom_call.1} parent=43 // pred_check
          %p363 = pneg %p59
        $region46: #{tpu_custom_call.1} parent=43 // pred_check_branch
          %365 = sbr.rel (%p363) target = $region48
        $region47: #{tpu_custom_call.1} parent=43 // pred_region
          %p366 = scmp.lt.s32.totalorder %s32, 1
          %s367 = scalar_select %p366, %s32, 1
          %p368 = scmp.lt.s32.totalorder %s33, 0
          %s369 = scalar_select %p368, %s33, 0
          %s370 = sadd.s32 %s369, %s367
          %s371 = smul.addr %s370, 4
          %s372 = scalar_lea.vmem %s0, %s371
        $region48: #{tpu_custom_call.1} parent=43 // pred_fallthru
          _
      $region44: #{tpu_custom_call.1} parent=5 // pred_fallthru
        _
      %p373 = scmp.le.s32.totalorder 1, %s25
      %p374 = scmp.lt.s32.totalorder %s25, 3
      %p375 = pnand %p373, %p374
      %p376 = pneg %p375
      // Predicated region
      $region49: #{tpu_custom_call.1} parent=5 // pred_check
        _
      $region50: #{tpu_custom_call.1} parent=5 // pred_check_branch
        %378 = sbr.rel (%p375) target = $region52
      $region51: #{tpu_custom_call.1} parent=5 // pred_region
        %s379 = ssub.s32 %s25, 1
        // Predicated region
        $region53: #{tpu_custom_call.1} parent=51 // pred_check
          %p380 = pneg %p112
        $region54: #{tpu_custom_call.1} parent=51 // pred_check_branch
          %382 = sbr.rel (%p380) target = $region56
        $region55: #{tpu_custom_call.1} parent=51 // pred_region
          %383 = dma.done [#allocation4], 1024
        $region56: #{tpu_custom_call.1} parent=51 // pred_fallthru
          _
        // Predicated region
        $region57: #{tpu_custom_call.1} parent=51 // pred_check
          %p384 = pneg %p133
        $region58: #{tpu_custom_call.1} parent=51 // pred_check_branch
          %386 = sbr.rel (%p384) target = $region60
        $region59: #{tpu_custom_call.1} parent=51 // pred_region
          %387 = dma.done [#allocation7], 1024
        $region60: #{tpu_custom_call.1} parent=51 // pred_fallthru
          _
        // Predicated region
        $region61: #{tpu_custom_call.1} parent=51 // pred_check
          %p388 = pneg %p154
        $region62: #{tpu_custom_call.1} parent=51 // pred_check_branch
          %390 = sbr.rel (%p388) target = $region64
        $region63: #{tpu_custom_call.1} parent=51 // pred_region
          %391 = dma.done [#allocation7], 1024
        $region64: #{tpu_custom_call.1} parent=51 // pred_fallthru
          _
        // Predicated region
        $region65: #{tpu_custom_call.1} parent=51 // pred_check
          %p392 = pneg %p175
        $region66: #{tpu_custom_call.1} parent=51 // pred_check_branch
          %394 = sbr.rel (%p392) target = $region68
        $region67: #{tpu_custom_call.1} parent=51 // pred_region
          %395 = dma.done [#allocation10], 1024
        $region68: #{tpu_custom_call.1} parent=51 // pred_fallthru
          _
        // Predicated region
        $region69: #{tpu_custom_call.1} parent=51 // pred_check
          %p396 = pneg %p196
        $region70: #{tpu_custom_call.1} parent=51 // pred_check_branch
          %398 = sbr.rel (%p396) target = $region72
        $region71: #{tpu_custom_call.1} parent=51 // pred_region
          %399 = dma.done [#allocation10], 1024
        $region72: #{tpu_custom_call.1} parent=51 // pred_fallthru
          _
        %p400 = scmp.lt.s32.totalorder %s34, 1
        %s401 = scalar_select %p400, %s34, 1
        %p402 = scmp.lt.s32.totalorder %s35, 0
        %s403 = scalar_select %p402, %s35, 0
        %s404 = sadd.s32 %s403, %s401
        %s405 = smul.addr %s404, 4
        %s406 = scalar_lea.vmem %s0, %s405
        %p407 = pneg %p65
        %p408 = pneg %p62
        %p409 = scmp.lt.s32.totalorder %s35, 0
        %s410 = scalar_select %p409, %s35, 0
        %s411 = smul.addr %s410, 2
        %s412 = scalar_lea.vmem %s1, %s411
        %p413 = pneg %p91
        %p414 = pneg %p88
        %p415 = pneg %p112
        %p416 = pneg %p109
        %p417 = pneg %p133
        %p418 = pneg %p130
        %p419 = pneg %p154
        %p420 = pneg %p151
        %p421 = pneg %p175
        %p422 = pneg %p172
        %p423 = pneg %p196
        %p424 = pneg %p193
        %p425 = pneg %p217
        %p426 = pneg %p214
        %p427 = pneg %p243
        %p428 = pneg %p240
        %s429 = sand.u32 %s230, 1
        %s430 = scalar_lea.sflag [#allocation5], %s429
        %s431 = sand.u32 %s230, 1
        %s432 = smul.addr %s431, 8
        %s433 = scalar_lea.vmem [#allocation12], %s432
        %p434 = pneg %p269
        %p435 = pneg %p266
        %s436 = sand.u32 %s256, 1
        %s437 = scalar_lea.sflag [#allocation14], %s436
        %s438 = sand.u32 %s256, 1
        %s439 = smul.addr %s438, 8
        %s440 = scalar_lea.vmem [#allocation13], %s439
        %p441 = scmp.lt.s32.totalorder %s34, 1
        %s442 = scalar_select %p441, %s34, 1
        %p443 = scmp.lt.s32.totalorder %s35, 0
        %s444 = scalar_select %p443, %s35, 0
        %s445 = sadd.s32 %s444, %s442
        %s446 = smul.addr %s445, 4
        %s447 = scalar_lea.vmem %s0, %s446
        %p448 = scmp.lt.s32.totalorder %s35, 0
        %s449 = scalar_select %p448, %s35, 0
        %s450 = smul.addr %s449, 2
        %s451 = scalar_lea.vmem %s1, %s450
        %p453 = scmp.eq.s32.totalorder %s35, 0
        // Predicated region
        $region73: #{tpu_custom_call.1} parent=51 // pred_check
          %p454 = pneg %p453
        $region74: #{tpu_custom_call.1} parent=51 // pred_check_branch
          %456 = sbr.rel (%p454) target = $region76
        $region75: #{tpu_custom_call.1} parent=51 // pred_region
          %457 = vst [vmem:[#allocation2] sm:$0xff] 0.0
        $region76: #{tpu_custom_call.1} parent=51 // pred_fallthru
          _
        %v458 = vld [vmem:[#allocation2] sm:$0xff]
        %v459 = vld [vmem:[%s447] sm:$0xf]
        %v460 = vld [vmem:[%s451] sm:$0x3]
        %vm461 = vcmask 31744
        %v463 = vsel %vm461, %v459, 0
        %vm465 = vcmask 1041408
        %v467 = vsel %vm465, %v460, 0
        %469 = vmatprep.subr.bf16.mxu0 0
        %470 = vmatpush1.bf16.msra.mxu0 0
        %471 = vmatprep.subr.bf16.mxu0 0
        %472 = vmatpush1.bf16.msra.mxu0 0
        %473 = vmatprep.subr.bf16.mxu0 0
        %474 = vmatpush1.bf16.msra.mxu0 0
        %475 = vmatprep.subr.bf16.mxu0 0
        %476 = vmatpush1.bf16.msra.mxu0 0
        %477 = vmatprep.subr.bf16.mxu0 0
        %478 = vmatpush1.bf16.msra.mxu0 0
        %479 = vmatprep.subr.bf16.mxu0 0
        %480 = vmatpush1.bf16.msra.mxu0 0
        %481 = vmatprep.subr.bf16.mxu0 0
        %482 = vmatpush1.bf16.msra.mxu0 0
        %483 = vmatprep.subr.bf16.mxu0 0
        %484 = vmatpush1.bf16.msra.mxu0 %v467
        %485 = vmatprep.subr.bf16.mxu0 0
        %486 = vmatpush2.bf16.msra.mxu0 0
        %487 = vmatprep.subr.bf16.mxu0 0
        %488 = vmatpush2.bf16.msra.mxu0 0
        %489 = vmatprep.subr.bf16.mxu0 0
        %490 = vmatpush2.bf16.msra.mxu0 0
        %491 = vmatprep.subr.bf16.mxu0 0
        %492 = vmatpush2.bf16.msra.mxu0 0
        %493 = vmatprep.subr.bf16.mxu0 0
        %494 = vmatpush2.bf16.msra.mxu0 0
        %495 = vmatprep.subr.bf16.mxu0 0
        %496 = vmatpush2.bf16.msra.mxu0 0
        %497 = vmatprep.subr.bf16.mxu0 0
        %498 = vmatpush2.bf16.msra.mxu0 0
        %499 = vmatprep.subr.bf16.mxu0 0
        %500 = vmatpush2.bf16.msra.mxu0 0
        %501 = vmatprep.mubr.bf16.mxu0 0
        %502 = vmatmul.mubr.bf16.gmra.mxu0 %v463
        %v503 = vpop.f32.mrf.mxu0
        %v504 = vadd.f32 0.0, %v503
        %v505 = vpop.f32.mrf.mxu0
        %v506 = vpop.f32.mrf.mxu0
        %v507 = vpop.f32.mrf.mxu0
        %508 = vdwg.mxu0
        %v509 = vadd.f32 %v458, %v504
        %510 = vst [vmem:[#allocation2] sm:$0xff] %v509
        // Predicated region
        $region77: #{tpu_custom_call.1} parent=51 // pred_check
          %p511 = pneg %p453
        $region78: #{tpu_custom_call.1} parent=51 // pred_check_branch
          %513 = sbr.rel (%p511) target = $region80
        $region79: #{tpu_custom_call.1} parent=51 // pred_region
          %v514 = vld [vmem:[#allocation2] sm:$0xff]
          %v515 = vld [vmem:[%s7] sm:$0x1]
          %v517 = vlaneseq
          %v518 = vshrl.u32 %v517, 7
          %v519 = vsub.s32 0, %v518
          %v520 = vrot.slane %v515, %v519
          %v522 = vadd.f32 %v514, %v520
          %v523 = vpack.c.bf16 %v522, %v522
          %v524 = vld [vmem:[#allocation3] sm:$0xf]
          %v525 = vld [vmem:[#allocation3 + $0x4] sm:$0xf]
          %v526 = vld [vmem:[#allocation3 + $0x8] sm:$0xf]
          %v527 = vld [vmem:[#allocation3 + $0xc] sm:$0xf]
          %v528 = vld [vmem:[#allocation3 + $0x10] sm:$0xf]
          %v529 = vld [vmem:[#allocation3 + $0x14] sm:$0xf]
          %v530 = vld [vmem:[#allocation3 + $0x18] sm:$0xf]
          %v531 = vld [vmem:[#allocation3 + $0x1c] sm:$0xf]
          %v532 = vld [vmem:[#allocation3 + $0x20] sm:$0xf]
          %v533 = vld [vmem:[#allocation3 + $0x24] sm:$0xf]
          %v534 = vld [vmem:[#allocation3 + $0x28] sm:$0xf]
          %v535 = vld [vmem:[#allocation3 + $0x2c] sm:$0xf]
          %v536 = vld [vmem:[#allocation3 + $0x30] sm:$0xf]
          %v537 = vld [vmem:[#allocation3 + $0x34] sm:$0xf]
          %v538 = vld [vmem:[#allocation3 + $0x38] sm:$0xf]
          %v539 = vld [vmem:[#allocation3 + $0x3c] sm:$0xf]
          %v556 = vunpack.c.l.b16 %v524
          %v557 = vunpack.c.l.b16 %v525
          %v558 = vunpack.c.l.b16 %v526
          %v559 = vunpack.c.l.b16 %v527
          %v560 = vunpack.c.l.b16 %v528
          %v561 = vunpack.c.l.b16 %v529
          %v562 = vunpack.c.l.b16 %v530
          %v563 = vunpack.c.l.b16 %v531
          %v564 = vunpack.c.l.b16 %v532
          %v565 = vunpack.c.l.b16 %v533
          %v566 = vunpack.c.l.b16 %v534
          %v567 = vunpack.c.l.b16 %v535
          %v568 = vunpack.c.l.b16 %v536
          %v569 = vunpack.c.l.b16 %v537
          %v570 = vunpack.c.l.b16 %v538
          %v571 = vunpack.c.l.b16 %v539
          %v572 = vpack.c.b16 %v557, %v556
          %v573 = vpack.c.b16 %v559, %v558
          %v574 = vpack.c.b16 %v561, %v560
          %v575 = vpack.c.b16 %v563, %v562
          %v576 = vpack.c.b16 %v565, %v564
          %v577 = vpack.c.b16 %v567, %v566
          %v578 = vpack.c.b16 %v569, %v568
          %v579 = vpack.c.b16 %v571, %v570
          %588 = vmatprep.subr.bf16.mxu0 0
          %589 = vmatpush1.bf16.msra.mxu0 %v579
          %590 = vmatprep.subr.bf16.mxu0 0
          %591 = vmatpush1.bf16.msra.mxu0 %v578
          %592 = vmatprep.subr.bf16.mxu0 0
          %593 = vmatpush1.bf16.msra.mxu0 %v577
          %594 = vmatprep.subr.bf16.mxu0 0
          %595 = vmatpush1.bf16.msra.mxu0 %v576
          %596 = vmatprep.subr.bf16.mxu0 0
          %597 = vmatpush1.bf16.msra.mxu0 %v575
          %598 = vmatprep.subr.bf16.mxu0 0
          %599 = vmatpush1.bf16.msra.mxu0 %v574
          %600 = vmatprep.subr.bf16.mxu0 0
          %601 = vmatpush1.bf16.msra.mxu0 %v573
          %602 = vmatprep.subr.bf16.mxu0 0
          %603 = vmatpush1.bf16.msra.mxu0 %v572
          %604 = vmatprep.subr.bf16.mxu0 0
          %605 = vmatpush2.bf16.msra.mxu0 0
          %606 = vmatprep.subr.bf16.mxu0 0
          %607 = vmatpush2.bf16.msra.mxu0 0
          %608 = vmatprep.subr.bf16.mxu0 0
          %609 = vmatpush2.bf16.msra.mxu0 0
          %610 = vmatprep.subr.bf16.mxu0 0
          %611 = vmatpush2.bf16.msra.mxu0 0
          %612 = vmatprep.subr.bf16.mxu0 0
          %613 = vmatpush2.bf16.msra.mxu0 0
          %614 = vmatprep.subr.bf16.mxu0 0
          %615 = vmatpush2.bf16.msra.mxu0 0
          %616 = vmatprep.subr.bf16.mxu0 0
          %617 = vmatpush2.bf16.msra.mxu0 0
          %618 = vmatprep.subr.bf16.mxu0 0
          %619 = vmatpush2.bf16.msra.mxu0 0
          %620 = vmatprep.mubr.bf16.mxu0 0
          %621 = vmatmul.mubr.bf16.gmra.mxu0 %v523
          %v622 = vpop.f32.mrf.mxu0
          %v623 = vadd.f32 0.0, %v622
          %v624 = vpop.f32.mrf.mxu0
          %v625 = vpop.f32.mrf.mxu0
          %v626 = vpop.f32.mrf.mxu0
          %627 = vdwg.mxu0
          %v628 = vld [vmem:[%s7 + $0x1] sm:$0x1]
          %v629 = vld [vmem:[%s7 + $0x2] sm:$0x1]
          %v630 = vrot.slane %v623, 4
          %v631 = vadd.f32 %v623, %v630
          %v632 = vrot.slane %v631, 2
          %v633 = vadd.f32 %v631, %v632
          %v634 = vrot.slane %v633, 1
          %v635 = vadd.f32 %v633, %v634
          %v636 = vmul.f32 %v623, %v623
          %v637 = vrot.slane %v636, 4
          %v638 = vadd.f32 %v636, %v637
          %v639 = vrot.slane %v638, 2
          %v640 = vadd.f32 %v638, %v639
          %v641 = vrot.slane %v640, 1
          %v642 = vadd.f32 %v640, %v641
          %v643 = vmul.f32 %v635, 0.125
          %v644 = vmul.f32 %v642, 0.125
          %v645 = vmul.f32 %v643, %v643
          %v646 = vsub.f32 %v644, %v645
          %v647 = vmax.f32 %v646, 0.0
          %v648 = vadd.f32 %v647, 1e-05
          %v649 = vrsqrt.pop %v648
          %v650 = vmul.f32 %v649, %v628
          %v651 = vsub.f32 0.0, %v643
          %v652 = vmul.f32 %v651, %v650
          %v653 = vadd.f32 %v652, %v629
          %v654 = vlaneseq
          %v655 = vshrl.u32 %v654, 7
          %v656 = vsub.s32 0, %v655
          %v657 = vrot.slane %v650, %v656
          %v658 = vmul.f32 %v623, %v657
          %v659 = vlaneseq
          %v660 = vshrl.u32 %v659, 7
          %v661 = vsub.s32 0, %v660
          %v662 = vrot.slane %v653, %v661
          %v663 = vadd.f32 %v658, %v662
          %v664 = vmax.f32 %v663, 0.0
          %v665 = vpack.c.bf16 %v664, %v664
          %v666 = vld [vmem:[#allocation6] sm:$0xf]
          %v667 = vld [vmem:[#allocation6 + $0x4] sm:$0xf]
          %v668 = vld [vmem:[#allocation6 + $0x8] sm:$0xf]
          %v669 = vld [vmem:[#allocation6 + $0xc] sm:$0xf]
          %v670 = vld [vmem:[#allocation6 + $0x10] sm:$0xf]
          %v671 = vld [vmem:[#allocation6 + $0x14] sm:$0xf]
          %v672 = vld [vmem:[#allocation6 + $0x18] sm:$0xf]
          %v673 = vld [vmem:[#allocation6 + $0x1c] sm:$0xf]
          %v674 = vld [vmem:[#allocation6 + $0x20] sm:$0xf]
          %v675 = vld [vmem:[#allocation6 + $0x24] sm:$0xf]
          %v676 = vld [vmem:[#allocation6 + $0x28] sm:$0xf]
          %v677 = vld [vmem:[#allocation6 + $0x2c] sm:$0xf]
          %v678 = vld [vmem:[#allocation6 + $0x30] sm:$0xf]
          %v679 = vld [vmem:[#allocation6 + $0x34] sm:$0xf]
          %v680 = vld [vmem:[#allocation6 + $0x38] sm:$0xf]
          %v681 = vld [vmem:[#allocation6 + $0x3c] sm:$0xf]
          %v698 = vunpack.c.l.b16 %v666
          %v699 = vunpack.c.l.b16 %v667
          %v700 = vunpack.c.l.b16 %v668
          %v701 = vunpack.c.l.b16 %v669
          %v702 = vunpack.c.l.b16 %v670
          %v703 = vunpack.c.l.b16 %v671
          %v704 = vunpack.c.l.b16 %v672
          %v705 = vunpack.c.l.b16 %v673
          %v706 = vunpack.c.l.b16 %v674
          %v707 = vunpack.c.l.b16 %v675
          %v708 = vunpack.c.l.b16 %v676
          %v709 = vunpack.c.l.b16 %v677
          %v710 = vunpack.c.l.b16 %v678
          %v711 = vunpack.c.l.b16 %v679
          %v712 = vunpack.c.l.b16 %v680
          %v713 = vunpack.c.l.b16 %v681
          %v714 = vpack.c.b16 %v699, %v698
          %v715 = vpack.c.b16 %v701, %v700
          %v716 = vpack.c.b16 %v703, %v702
          %v717 = vpack.c.b16 %v705, %v704
          %v718 = vpack.c.b16 %v707, %v706
          %v719 = vpack.c.b16 %v709, %v708
          %v720 = vpack.c.b16 %v711, %v710
          %v721 = vpack.c.b16 %v713, %v712
          %730 = vmatprep.subr.bf16.mxu0 0
          %731 = vmatpush1.bf16.msra.mxu0 %v721
          %732 = vmatprep.subr.bf16.mxu0 0
          %733 = vmatpush1.bf16.msra.mxu0 %v720
          %734 = vmatprep.subr.bf16.mxu0 0
          %735 = vmatpush1.bf16.msra.mxu0 %v719
          %736 = vmatprep.subr.bf16.mxu0 0
          %737 = vmatpush1.bf16.msra.mxu0 %v718
          %738 = vmatprep.subr.bf16.mxu0 0
          %739 = vmatpush1.bf16.msra.mxu0 %v717
          %740 = vmatprep.subr.bf16.mxu0 0
          %741 = vmatpush1.bf16.msra.mxu0 %v716
          %742 = vmatprep.subr.bf16.mxu0 0
          %743 = vmatpush1.bf16.msra.mxu0 %v715
          %744 = vmatprep.subr.bf16.mxu0 0
          %745 = vmatpush1.bf16.msra.mxu0 %v714
          %746 = vmatprep.subr.bf16.mxu0 0
          %747 = vmatpush2.bf16.msra.mxu0 0
          %748 = vmatprep.subr.bf16.mxu0 0
          %749 = vmatpush2.bf16.msra.mxu0 0
          %750 = vmatprep.subr.bf16.mxu0 0
          %751 = vmatpush2.bf16.msra.mxu0 0
          %752 = vmatprep.subr.bf16.mxu0 0
          %753 = vmatpush2.bf16.msra.mxu0 0
          %754 = vmatprep.subr.bf16.mxu0 0
          %755 = vmatpush2.bf16.msra.mxu0 0
          %756 = vmatprep.subr.bf16.mxu0 0
          %757 = vmatpush2.bf16.msra.mxu0 0
          %758 = vmatprep.subr.bf16.mxu0 0
          %759 = vmatpush2.bf16.msra.mxu0 0
          %760 = vmatprep.subr.bf16.mxu0 0
          %761 = vmatpush2.bf16.msra.mxu0 0
          %762 = vmatprep.mubr.bf16.mxu0 0
          %763 = vmatmul.mubr.bf16.gmra.mxu0 %v665
          %v764 = vpop.f32.mrf.mxu0
          %v765 = vadd.f32 0.0, %v764
          %v766 = vpop.f32.mrf.mxu0
          %v767 = vpop.f32.mrf.mxu0
          %v768 = vpop.f32.mrf.mxu0
          %769 = vdwg.mxu0
          %v770 = vld [vmem:[%s7 + $0x3] sm:$0x1]
          %v771 = vld [vmem:[%s7 + $0x4] sm:$0x1]
          %v772 = vrot.slane %v765, 4
          %v773 = vadd.f32 %v765, %v772
          %v774 = vrot.slane %v773, 2
          %v775 = vadd.f32 %v773, %v774
          %v776 = vrot.slane %v775, 1
          %v777 = vadd.f32 %v775, %v776
          %v778 = vmul.f32 %v765, %v765
          %v779 = vrot.slane %v778, 4
          %v780 = vadd.f32 %v778, %v779
          %v781 = vrot.slane %v780, 2
          %v782 = vadd.f32 %v780, %v781
          %v783 = vrot.slane %v782, 1
          %v784 = vadd.f32 %v782, %v783
          %v785 = vmul.f32 %v777, 0.125
          %v786 = vmul.f32 %v784, 0.125
          %v787 = vmul.f32 %v785, %v785
          %v788 = vsub.f32 %v786, %v787
          %v789 = vmax.f32 %v788, 0.0
          %v790 = vadd.f32 %v789, 1e-05
          %v791 = vrsqrt.pop %v790
          %v792 = vmul.f32 %v791, %v770
          %v793 = vsub.f32 0.0, %v785
          %v794 = vmul.f32 %v793, %v792
          %v795 = vadd.f32 %v794, %v771
          %v796 = vlaneseq
          %v797 = vshrl.u32 %v796, 7
          %v798 = vsub.s32 0, %v797
          %v799 = vrot.slane %v792, %v798
          %v800 = vmul.f32 %v765, %v799
          %v801 = vlaneseq
          %v802 = vshrl.u32 %v801, 7
          %v803 = vsub.s32 0, %v802
          %v804 = vrot.slane %v795, %v803
          %v805 = vadd.f32 %v800, %v804
          %v806 = vmax.f32 %v805, 0.0
          %v807 = vpack.c.bf16 %v806, %v806
          %v808 = vld [vmem:[#allocation8] sm:$0xf]
          %v809 = vld [vmem:[#allocation8 + $0x4] sm:$0xf]
          %v810 = vld [vmem:[#allocation8 + $0x8] sm:$0xf]
          %v811 = vld [vmem:[#allocation8 + $0xc] sm:$0xf]
          %v812 = vld [vmem:[#allocation8 + $0x10] sm:$0xf]
          %v813 = vld [vmem:[#allocation8 + $0x14] sm:$0xf]
          %v814 = vld [vmem:[#allocation8 + $0x18] sm:$0xf]
          %v815 = vld [vmem:[#allocation8 + $0x1c] sm:$0xf]
          %v816 = vld [vmem:[#allocation8 + $0x20] sm:$0xf]
          %v817 = vld [vmem:[#allocation8 + $0x24] sm:$0xf]
          %v818 = vld [vmem:[#allocation8 + $0x28] sm:$0xf]
          %v819 = vld [vmem:[#allocation8 + $0x2c] sm:$0xf]
          %v820 = vld [vmem:[#allocation8 + $0x30] sm:$0xf]
          %v821 = vld [vmem:[#allocation8 + $0x34] sm:$0xf]
          %v822 = vld [vmem:[#allocation8 + $0x38] sm:$0xf]
          %v823 = vld [vmem:[#allocation8 + $0x3c] sm:$0xf]
          %v824 = vld [vmem:[%s7 + $0x5] sm:$0x1]
          %v826 = vlaneseq
          %v827 = vshrl.u32 %v826, 7
          %v828 = vsub.s32 0, %v827
          %v829 = vrot.slane %v824, %v828
          %v847 = vunpack.c.l.b16 %v808
          %v848 = vunpack.c.l.b16 %v809
          %v849 = vunpack.c.l.b16 %v810
          %v850 = vunpack.c.l.b16 %v811
          %v851 = vunpack.c.l.b16 %v812
          %v852 = vunpack.c.l.b16 %v813
          %v853 = vunpack.c.l.b16 %v814
          %v854 = vunpack.c.l.b16 %v815
          %v855 = vunpack.c.l.b16 %v816
          %v856 = vunpack.c.l.b16 %v817
          %v857 = vunpack.c.l.b16 %v818
          %v858 = vunpack.c.l.b16 %v819
          %v859 = vunpack.c.l.b16 %v820
          %v860 = vunpack.c.l.b16 %v821
          %v861 = vunpack.c.l.b16 %v822
          %v862 = vunpack.c.l.b16 %v823
          %v863 = vpack.c.b16 %v848, %v847
          %v864 = vpack.c.b16 %v850, %v849
          %v865 = vpack.c.b16 %v852, %v851
          %v866 = vpack.c.b16 %v854, %v853
          %v867 = vpack.c.b16 %v856, %v855
          %v868 = vpack.c.b16 %v858, %v857
          %v869 = vpack.c.b16 %v860, %v859
          %v870 = vpack.c.b16 %v862, %v861
          %879 = vmatprep.subr.bf16.mxu0 0
          %880 = vmatpush1.bf16.msra.mxu0 %v870
          %881 = vmatprep.subr.bf16.mxu0 0
          %882 = vmatpush1.bf16.msra.mxu0 %v869
          %883 = vmatprep.subr.bf16.mxu0 0
          %884 = vmatpush1.bf16.msra.mxu0 %v868
          %885 = vmatprep.subr.bf16.mxu0 0
          %886 = vmatpush1.bf16.msra.mxu0 %v867
          %887 = vmatprep.subr.bf16.mxu0 0
          %888 = vmatpush1.bf16.msra.mxu0 %v866
          %889 = vmatprep.subr.bf16.mxu0 0
          %890 = vmatpush1.bf16.msra.mxu0 %v865
          %891 = vmatprep.subr.bf16.mxu0 0
          %892 = vmatpush1.bf16.msra.mxu0 %v864
          %893 = vmatprep.subr.bf16.mxu0 0
          %894 = vmatpush1.bf16.msra.mxu0 %v863
          %895 = vmatprep.subr.bf16.mxu0 0
          %896 = vmatpush2.bf16.msra.mxu0 0
          %897 = vmatprep.subr.bf16.mxu0 0
          %898 = vmatpush2.bf16.msra.mxu0 0
          %899 = vmatprep.subr.bf16.mxu0 0
          %900 = vmatpush2.bf16.msra.mxu0 0
          %901 = vmatprep.subr.bf16.mxu0 0
          %902 = vmatpush2.bf16.msra.mxu0 0
          %903 = vmatprep.subr.bf16.mxu0 0
          %904 = vmatpush2.bf16.msra.mxu0 0
          %905 = vmatprep.subr.bf16.mxu0 0
          %906 = vmatpush2.bf16.msra.mxu0 0
          %907 = vmatprep.subr.bf16.mxu0 0
          %908 = vmatpush2.bf16.msra.mxu0 0
          %909 = vmatprep.subr.bf16.mxu0 0
          %910 = vmatpush2.bf16.msra.mxu0 0
          %911 = vmatprep.mubr.bf16.mxu0 0
          %912 = vmatmul.mubr.bf16.gmra.mxu0 %v807
          %v913 = vpop.f32.mrf.mxu0
          %v914 = vadd.f32 %v829, %v913
          %v915 = vpop.f32.mrf.mxu0
          %v916 = vpop.f32.mrf.mxu0
          %v917 = vpop.f32.mrf.mxu0
          %918 = vdwg.mxu0
          %v919 = vrot.slane %v914, 4
          %v920 = vadd.f32 %v914, %v919
          %v921 = vrot.slane %v920, 2
          %v922 = vadd.f32 %v920, %v921
          %v923 = vrot.slane %v922, 1
          %v924 = vadd.f32 %v922, %v923
          %v925 = vmul.f32 %v914, %v914
          %v926 = vrot.slane %v925, 4
          %v927 = vadd.f32 %v925, %v926
          %v928 = vrot.slane %v927, 2
          %v929 = vadd.f32 %v927, %v928
          %v930 = vrot.slane %v929, 1
          %v931 = vadd.f32 %v929, %v930
          %v932 = vmul.f32 %v924, 0.125
          %v933 = vmul.f32 %v931, 0.125
          %v934 = vmul.f32 %v932, %v932
          %v935 = vsub.f32 %v933, %v934
          %v936 = vmax.f32 %v935, 0.0
          %v937 = vadd.f32 %v936, 1e-05
          %v938 = vrsqrt.pop %v937
          %v939 = vsub.f32 0.0, %v932
          %v940 = vmul.f32 %v939, %v938
          %v941 = vmul.f32 %v914, %v938
          %v942 = vadd.f32 %v941, %v940
          %v943 = vpack.c.bf16 %v942, %v942
          %v944 = vld [vmem:[#allocation9] sm:$0xf]
          %v945 = vld [vmem:[#allocation9 + $0x4] sm:$0xf]
          %v946 = vld [vmem:[#allocation9 + $0x8] sm:$0xf]
          %v947 = vld [vmem:[#allocation9 + $0xc] sm:$0xf]
          %v948 = vld [vmem:[#allocation9 + $0x10] sm:$0xf]
          %v949 = vld [vmem:[#allocation9 + $0x14] sm:$0xf]
          %v950 = vld [vmem:[#allocation9 + $0x18] sm:$0xf]
          %v951 = vld [vmem:[#allocation9 + $0x1c] sm:$0xf]
          %v952 = vld [vmem:[#allocation9 + $0x20] sm:$0xf]
          %v953 = vld [vmem:[#allocation9 + $0x24] sm:$0xf]
          %v954 = vld [vmem:[#allocation9 + $0x28] sm:$0xf]
          %v955 = vld [vmem:[#allocation9 + $0x2c] sm:$0xf]
          %v956 = vld [vmem:[#allocation9 + $0x30] sm:$0xf]
          %v957 = vld [vmem:[#allocation9 + $0x34] sm:$0xf]
          %v958 = vld [vmem:[#allocation9 + $0x38] sm:$0xf]
          %v959 = vld [vmem:[#allocation9 + $0x3c] sm:$0xf]
          %v976 = vunpack.c.l.b16 %v944
          %v977 = vunpack.c.l.b16 %v945
          %v978 = vunpack.c.l.b16 %v946
          %v979 = vunpack.c.l.b16 %v947
          %v980 = vunpack.c.l.b16 %v948
          %v981 = vunpack.c.l.b16 %v949
          %v982 = vunpack.c.l.b16 %v950
          %v983 = vunpack.c.l.b16 %v951
          %v984 = vunpack.c.l.b16 %v952
          %v985 = vunpack.c.l.b16 %v953
          %v986 = vunpack.c.l.b16 %v954
          %v987 = vunpack.c.l.b16 %v955
          %v988 = vunpack.c.l.b16 %v956
          %v989 = vunpack.c.l.b16 %v957
          %v990 = vunpack.c.l.b16 %v958
          %v991 = vunpack.c.l.b16 %v959
          %v992 = vpack.c.b16 %v977, %v976
          %v993 = vpack.c.b16 %v979, %v978
          %v994 = vpack.c.b16 %v981, %v980
          %v995 = vpack.c.b16 %v983, %v982
          %v996 = vpack.c.b16 %v985, %v984
          %v997 = vpack.c.b16 %v987, %v986
          %v998 = vpack.c.b16 %v989, %v988
          %v999 = vpack.c.b16 %v991, %v990
          %1008 = vmatprep.subr.bf16.mxu0 0
          %1009 = vmatpush1.bf16.msra.mxu0 %v999
          %1010 = vmatprep.subr.bf16.mxu0 0
          %1011 = vmatpush1.bf16.msra.mxu0 %v998
          %1012 = vmatprep.subr.bf16.mxu0 0
          %1013 = vmatpush1.bf16.msra.mxu0 %v997
          %1014 = vmatprep.subr.bf16.mxu0 0
          %1015 = vmatpush1.bf16.msra.mxu0 %v996
          %1016 = vmatprep.subr.bf16.mxu0 0
          %1017 = vmatpush1.bf16.msra.mxu0 %v995
          %1018 = vmatprep.subr.bf16.mxu0 0
          %1019 = vmatpush1.bf16.msra.mxu0 %v994
          %1020 = vmatprep.subr.bf16.mxu0 0
          %1021 = vmatpush1.bf16.msra.mxu0 %v993
          %1022 = vmatprep.subr.bf16.mxu0 0
          %1023 = vmatpush1.bf16.msra.mxu0 %v992
          %1024 = vmatprep.subr.bf16.mxu0 0
          %1025 = vmatpush2.bf16.msra.mxu0 0
          %1026 = vmatprep.subr.bf16.mxu0 0
          %1027 = vmatpush2.bf16.msra.mxu0 0
          %1028 = vmatprep.subr.bf16.mxu0 0
          %1029 = vmatpush2.bf16.msra.mxu0 0
          %1030 = vmatprep.subr.bf16.mxu0 0
          %1031 = vmatpush2.bf16.msra.mxu0 0
          %1032 = vmatprep.subr.bf16.mxu0 0
          %1033 = vmatpush2.bf16.msra.mxu0 0
          %1034 = vmatprep.subr.bf16.mxu0 0
          %1035 = vmatpush2.bf16.msra.mxu0 0
          %1036 = vmatprep.subr.bf16.mxu0 0
          %1037 = vmatpush2.bf16.msra.mxu0 0
          %1038 = vmatprep.subr.bf16.mxu0 0
          %1039 = vmatpush2.bf16.msra.mxu0 0
          %1040 = vmatprep.mubr.bf16.mxu0 0
          %1041 = vmatmul.mubr.bf16.gmra.mxu0 %v943
          %v1042 = vpop.f32.mrf.mxu0
          %v1043 = vadd.f32 0.0, %v1042
          %v1044 = vpop.f32.mrf.mxu0
          %v1045 = vpop.f32.mrf.mxu0
          %v1046 = vpop.f32.mrf.mxu0
          %1047 = vdwg.mxu0
          %v1048 = vld [vmem:[%s7 + $0x6] sm:$0x1]
          %v1049 = vld [vmem:[%s7 + $0x7] sm:$0x1]
          %v1050 = vrot.slane %v1043, 4
          %v1051 = vadd.f32 %v1043, %v1050
          %v1052 = vrot.slane %v1051, 2
          %v1053 = vadd.f32 %v1051, %v1052
          %v1054 = vrot.slane %v1053, 1
          %v1055 = vadd.f32 %v1053, %v1054
          %v1056 = vmul.f32 %v1043, %v1043
          %v1057 = vrot.slane %v1056, 4
          %v1058 = vadd.f32 %v1056, %v1057
          %v1059 = vrot.slane %v1058, 2
          %v1060 = vadd.f32 %v1058, %v1059
          %v1061 = vrot.slane %v1060, 1
          %v1062 = vadd.f32 %v1060, %v1061
          %v1063 = vmul.f32 %v1055, 0.125
          %v1064 = vmul.f32 %v1062, 0.125
          %v1065 = vmul.f32 %v1063, %v1063
          %v1066 = vsub.f32 %v1064, %v1065
          %v1067 = vmax.f32 %v1066, 0.0
          %v1068 = vadd.f32 %v1067, 1e-05
          %v1069 = vrsqrt.pop %v1068
          %v1070 = vmul.f32 %v1069, %v1048
          %v1071 = vsub.f32 0.0, %v1063
          %v1072 = vmul.f32 %v1071, %v1070
          %v1073 = vadd.f32 %v1072, %v1049
          %v1074 = vlaneseq
          %v1075 = vshrl.u32 %v1074, 7
          %v1076 = vsub.s32 0, %v1075
          %v1077 = vrot.slane %v1070, %v1076
          %v1078 = vmul.f32 %v1043, %v1077
          %v1079 = vlaneseq
          %v1080 = vshrl.u32 %v1079, 7
          %v1081 = vsub.s32 0, %v1080
          %v1082 = vrot.slane %v1073, %v1081
          %v1083 = vadd.f32 %v1078, %v1082
          %v1084 = vmax.f32 %v1083, 0.0
          %v1085 = vpack.c.bf16 %v1084, %v1084
          %v1086 = vld [vmem:[#allocation11] sm:$0xf]
          %v1087 = vld [vmem:[#allocation11 + $0x4] sm:$0xf]
          %v1088 = vld [vmem:[#allocation11 + $0x8] sm:$0xf]
          %v1089 = vld [vmem:[#allocation11 + $0xc] sm:$0xf]
          %v1090 = vld [vmem:[#allocation11 + $0x10] sm:$0xf]
          %v1091 = vld [vmem:[#allocation11 + $0x14] sm:$0xf]
          %v1092 = vld [vmem:[#allocation11 + $0x18] sm:$0xf]
          %v1093 = vld [vmem:[#allocation11 + $0x1c] sm:$0xf]
          %v1094 = vld [vmem:[#allocation11 + $0x20] sm:$0xf]
          %v1095 = vld [vmem:[#allocation11 + $0x24] sm:$0xf]
          %v1096 = vld [vmem:[#allocation11 + $0x28] sm:$0xf]
          %v1097 = vld [vmem:[#allocation11 + $0x2c] sm:$0xf]
          %v1098 = vld [vmem:[#allocation11 + $0x30] sm:$0xf]
          %v1099 = vld [vmem:[#allocation11 + $0x34] sm:$0xf]
          %v1100 = vld [vmem:[#allocation11 + $0x38] sm:$0xf]
          %v1101 = vld [vmem:[#allocation11 + $0x3c] sm:$0xf]
          %v1102 = vld [vmem:[%s7 + $0x8] sm:$0x1]
          %v1104 = vlaneseq
          %v1105 = vshrl.u32 %v1104, 7
          %v1106 = vsub.s32 0, %v1105
          %v1107 = vrot.slane %v1102, %v1106
          %v1125 = vunpack.c.l.b16 %v1086
          %v1126 = vunpack.c.l.b16 %v1087
          %v1127 = vunpack.c.l.b16 %v1088
          %v1128 = vunpack.c.l.b16 %v1089
          %v1129 = vunpack.c.l.b16 %v1090
          %v1130 = vunpack.c.l.b16 %v1091
          %v1131 = vunpack.c.l.b16 %v1092
          %v1132 = vunpack.c.l.b16 %v1093
          %v1133 = vunpack.c.l.b16 %v1094
          %v1134 = vunpack.c.l.b16 %v1095
          %v1135 = vunpack.c.l.b16 %v1096
          %v1136 = vunpack.c.l.b16 %v1097
          %v1137 = vunpack.c.l.b16 %v1098
          %v1138 = vunpack.c.l.b16 %v1099
          %v1139 = vunpack.c.l.b16 %v1100
          %v1140 = vunpack.c.l.b16 %v1101
          %v1141 = vpack.c.b16 %v1126, %v1125
          %v1142 = vpack.c.b16 %v1128, %v1127
          %v1143 = vpack.c.b16 %v1130, %v1129
          %v1144 = vpack.c.b16 %v1132, %v1131
          %v1145 = vpack.c.b16 %v1134, %v1133
          %v1146 = vpack.c.b16 %v1136, %v1135
          %v1147 = vpack.c.b16 %v1138, %v1137
          %v1148 = vpack.c.b16 %v1140, %v1139
          %1157 = vmatprep.subr.bf16.mxu0 0
          %1158 = vmatpush1.bf16.msra.mxu0 %v1148
          %1159 = vmatprep.subr.bf16.mxu0 0
          %1160 = vmatpush1.bf16.msra.mxu0 %v1147
          %1161 = vmatprep.subr.bf16.mxu0 0
          %1162 = vmatpush1.bf16.msra.mxu0 %v1146
          %1163 = vmatprep.subr.bf16.mxu0 0
          %1164 = vmatpush1.bf16.msra.mxu0 %v1145
          %1165 = vmatprep.subr.bf16.mxu0 0
          %1166 = vmatpush1.bf16.msra.mxu0 %v1144
          %1167 = vmatprep.subr.bf16.mxu0 0
          %1168 = vmatpush1.bf16.msra.mxu0 %v1143
          %1169 = vmatprep.subr.bf16.mxu0 0
          %1170 = vmatpush1.bf16.msra.mxu0 %v1142
          %1171 = vmatprep.subr.bf16.mxu0 0
          %1172 = vmatpush1.bf16.msra.mxu0 %v1141
          %1173 = vmatprep.subr.bf16.mxu0 0
          %1174 = vmatpush2.bf16.msra.mxu0 0
          %1175 = vmatprep.subr.bf16.mxu0 0
          %1176 = vmatpush2.bf16.msra.mxu0 0
          %1177 = vmatprep.subr.bf16.mxu0 0
          %1178 = vmatpush2.bf16.msra.mxu0 0
          %1179 = vmatprep.subr.bf16.mxu0 0
          %1180 = vmatpush2.bf16.msra.mxu0 0
          %1181 = vmatprep.subr.bf16.mxu0 0
          %1182 = vmatpush2.bf16.msra.mxu0 0
          %1183 = vmatprep.subr.bf16.mxu0 0
          %1184 = vmatpush2.bf16.msra.mxu0 0
          %1185 = vmatprep.subr.bf16.mxu0 0
          %1186 = vmatpush2.bf16.msra.mxu0 0
          %1187 = vmatprep.subr.bf16.mxu0 0
          %1188 = vmatpush2.bf16.msra.mxu0 0
          %1189 = vmatprep.mubr.bf16.mxu0 0
          %1190 = vmatmul.mubr.bf16.gmra.mxu0 %v1085
          %v1191 = vpop.f32.mrf.mxu0
          %v1192 = vadd.f32 %v1107, %v1191
          %v1193 = vpop.f32.mrf.mxu0
          %v1194 = vpop.f32.mrf.mxu0
          %v1195 = vpop.f32.mrf.mxu0
          %1196 = vdwg.mxu0
          %1197 = vst [vmem:[%s433] sm:$0xff] %v1192
          %1198 = vst [vmem:[%s440] sm:$0xff] %v942
        $region80: #{tpu_custom_call.1} parent=51 // pred_fallthru
          _
        %s1199 = sand.u32 %s230, 1
        %s1200 = scalar_lea.sflag [#allocation5], %s1199
        %s1201 = sand.u32 %s230, 1
        %s1202 = smul.addr %s1201, 8
        %s1203 = scalar_lea.vmem [#allocation12], %s1202
        %s1204 = sand.u32 %s256, 1
        %s1205 = scalar_lea.sflag [#allocation14], %s1204
        %s1206 = sand.u32 %s256, 1
        %s1207 = smul.addr %s1206, 8
        %s1208 = scalar_lea.vmem [#allocation13], %s1207
        // Predicated region
        $region81: #{tpu_custom_call.1} parent=51 // pred_check
          %p1209 = pneg %p240
        $region82: #{tpu_custom_call.1} parent=51 // pred_check_branch
          %1211 = sbr.rel (%p1209) target = $region84
        $region83: #{tpu_custom_call.1} parent=51 // pred_region
          %s1213 = ssub.s32 128, 128
          %1214 = vsyncadd %s1200, %s1213
          %s1215 = smul.addr %s34, 128
          %s1216 = scalar_lea.hbm %s8, %s1215
          %s1218 = sshll.u32 %s1203, 4
          %s1219 = int_to_ptr.vmem [resolvable:$true] %s1218
          %1221 = dma.vmem_to_hbm [thread:$0]  %s1219, 128, %s1216, %s1200
        $region84: #{tpu_custom_call.1} parent=51 // pred_fallthru
          _
        // Predicated region
        $region85: #{tpu_custom_call.1} parent=51 // pred_check
          %p1222 = pneg %p266
        $region86: #{tpu_custom_call.1} parent=51 // pred_check_branch
          %1224 = sbr.rel (%p1222) target = $region88
        $region87: #{tpu_custom_call.1} parent=51 // pred_region
          %s1226 = ssub.s32 128, 128
          %1227 = vsyncadd %s1205, %s1226
          %s1228 = smul.addr %s34, 128
          %s1229 = scalar_lea.hbm %s9, %s1228
          %s1231 = sshll.u32 %s1208, 4
          %s1232 = int_to_ptr.vmem [resolvable:$true] %s1231
          %1234 = dma.vmem_to_hbm [thread:$0]  %s1232, 128, %s1229, %s1205
        $region88: #{tpu_custom_call.1} parent=51 // pred_fallthru
          _
      $region52: #{tpu_custom_call.1} parent=5 // pred_fallthru
        _
      %p1235 = scmp.le.s32.totalorder 2, %s25
      // Predicated region
      $region89: #{tpu_custom_call.1} parent=5 // pred_check
        %p1236 = pneg %p1235
      $region90: #{tpu_custom_call.1} parent=5 // pred_check_branch
        %1238 = sbr.rel (%p1236) target = $region92
      $region91: #{tpu_custom_call.1} parent=5 // pred_region
        %s1239 = ssub.s32 %s25, 2
        // Predicated region
        $region93: #{tpu_custom_call.1} parent=91 // pred_check
          %p1240 = pneg %p246
        $region94: #{tpu_custom_call.1} parent=91 // pred_check_branch
          %1242 = sbr.rel (%p1240) target = $region96
        $region95: #{tpu_custom_call.1} parent=91 // pred_region
          %s1243 = sand.u32 %s231, 1
          %s1244 = scalar_lea.sflag [#allocation5], %s1243
          %s1245 = sand.u32 %s231, 1
          %s1246 = smul.addr %s1245, 8
          %s1247 = scalar_lea.vmem [#allocation12], %s1246
          %1248 = dma.done %s1244, 128
        $region96: #{tpu_custom_call.1} parent=91 // pred_fallthru
          _
        // Predicated region
        $region97: #{tpu_custom_call.1} parent=91 // pred_check
          %p1249 = pneg %p272
        $region98: #{tpu_custom_call.1} parent=91 // pred_check_branch
          %1251 = sbr.rel (%p1249) target = $region100
        $region99: #{tpu_custom_call.1} parent=91 // pred_region
          %s1252 = sand.u32 %s257, 1
          %s1253 = scalar_lea.sflag [#allocation14], %s1252
          %s1254 = sand.u32 %s257, 1
          %s1255 = smul.addr %s1254, 8
          %s1256 = scalar_lea.vmem [#allocation13], %s1255
          %1257 = dma.done %s1253, 128
        $region100: #{tpu_custom_call.1} parent=91 // pred_fallthru
          _
      $region92: #{tpu_custom_call.1} parent=5 // pred_fallthru
        _
    $region6: #{tpu_custom_call.1} parent=1 // loop_footer
      %s29 = sadd.s32 1, %s25
    $region7: #{tpu_custom_call.1} parent=1 // loop_footer_branch
      %24 = sbr.rel target = $region3
    $region8: #{tpu_custom_call.1} parent=1 // loop_exit
      _
    %1258 = vsyncpa [#allocation4], 1
    %s1259 = scalar_lea.sflag [#allocation4], 1
    %1260 = vsyncpa %s1259, 1
    %1261 = vsyncpa [#allocation7], 1
    %1262 = vsyncpa [#allocation10], 1
    %1263 = vsyncpa [#allocation5], 1
    %s1264 = scalar_lea.sflag [#allocation5], 1
    %1265 = vsyncpa %s1264, 1
    %1266 = vsyncpa [#allocation14], 1
    %s1267 = scalar_lea.sflag [#allocation14], 1
    %1268 = vsyncpa %s1267, 1

</llo_original>
